<compile_context>
chip_gen: v6e
topology: v6e:2x2x1
jax: 0.10.0
libtpu: 0.0.40
codegen_flags: <defaults>
</compile_context>

<pallas_src>
import numpy as np
import jax
import jax.numpy as jnp
from jax.experimental import pallas as pl
from jax.experimental.pallas import tpu as pltpu

# ----------------------------- static config (small shapes) -----------------------------
B = 2
H = W = 8
C = 32                      # dim
NUM_HEADS = 4
HD = C // NUM_HEADS         # head dim = 8
WS = 4                      # window_size
SHIFT = 2                   # shift_size (0 <= SHIFT < WS)
MLP_RATIO = 4.0
HIDDEN = int(C * MLP_RATIO)  # 128
NUM_PROMPT = 10
L = H * W                   # 64
N = WS * WS                 # 16 tokens per window
NW = (H // WS) * (W // WS)  # windows per image = 4
B_ = B * NW                 # total windows
ATTN_SCALE = HD ** (-0.5)
PROMPT_SCALE = C ** (-0.5)
LN_EPS = 1e-5
NEG_INF = -1e9              # cross-window mask in the block-diagonal attention bias

# TODO(synk): prompt_proj is assumed to be nn.Linear(dim, dim); dropout / drop_path are
#             identity since all rates are 0 in this configuration.


# ----------------------------- small math helpers -----------------------------
def _layernorm(x, g, b):
    mu = jnp.mean(x, axis=-1, keepdims=True)
    var = jnp.mean(jnp.square(x - mu), axis=-1, keepdims=True)
    return (x - mu) * jax.lax.rsqrt(var + LN_EPS) * g + b


def _softmax_kernel(x):
    # in-kernel softmax: divide via approximate reciprocal (EUP slot, effectively free)
    x = x - jnp.max(x, axis=-1, keepdims=True)
    e = jnp.exp(x)
    return e * pl.reciprocal(jnp.sum(e, axis=-1, keepdims=True), approx=True)


def _softmax_ref(x):
    x = x - jnp.max(x, axis=-1, keepdims=True)
    e = jnp.exp(x)
    return e / jnp.sum(e, axis=-1, keepdims=True)


def _gelu_tanh(x):
    # tanh-approx GELU (jnp.tanh lowers to the EUP); |err| vs exact erf GELU ~1e-3.
    c = 0.7978845608028654  # sqrt(2/pi)
    return 0.5 * x * (1.0 + jnp.tanh(c * (x + 0.044715 * x * x * x)))


def _bf16(x):
    return x.astype(jnp.bfloat16)


# ----------------------------- window partition / reverse (reference glue) -----------------------------
def window_partition_jnp(x, ws):
    b, h, w, c = x.shape
    x = x.reshape(b, h // ws, ws, w // ws, ws, c)
    return jnp.transpose(x, (0, 1, 3, 2, 4, 5)).reshape(-1, ws, ws, c)


def window_reverse_jnp(windows, ws, h, w):
    b = windows.shape[0] // ((h * w) // (ws * ws))
    x = windows.reshape(b, h // ws, w // ws, ws, ws, -1)
    return jnp.transpose(x, (0, 1, 3, 2, 4, 5)).reshape(b, h, w, -1)


def window_partition_np(x, ws):
    b, h, w, c = x.shape
    x = x.reshape(b, h // ws, ws, w // ws, ws, c)
    return x.transpose(0, 1, 3, 2, 4, 5).reshape(-1, ws, ws, c)


# ----------------------------- fused Pallas kernel -----------------------------
def _swin_block_kernel(x_ref, perm_ref, permt_ref, g1_ref, b1_ref, wqkv_ref, bqkv_ref,
                       wproj_ref, bproj_ref, bias_ref, prompt_ref,
                       g2_ref, b2_ref, w1_ref, b1m_ref, w2_ref, b2m_ref,
                       wp_ref, bp_ref, o_ref, y_sc, x1_sc):
    f32 = jnp.float32
    x = x_ref[0]                                   # (L, C) original token order == shortcut
    perm = perm_ref[...]                           # (L, L) bf16 0/1: shift + window partition
    permt = permt_ref[...]                         # (L, L) bf16 0/1: its transpose (reverse)

    # ---- norm1 + cyclic shift + window partition (permutation matmul on the MXU) ----
    xn = _layernorm(x, g1_ref[...], b1_ref[...])
    xw = jnp.dot(perm, _bf16(xn), preferred_element_type=f32)          # (L, C) window-major

    # ---- QKV projection (ATTN_SCALE pre-folded into W_q / b_q) ----
    qkv = jnp.dot(_bf16(xw), wqkv_ref[...], preferred_element_type=f32) + bqkv_ref[...]

    # ---- per-head attention over ALL windows at once.  bias_ref[h] is block-diagonal:
    #      rel-pos bias + shift mask on each window's (N,N) block, -1e9 across windows. ----
    for h in range(NUM_HEADS):
        q = _bf16(qkv[:, h * HD:(h + 1) * HD])                          # (L, HD), pre-scaled
        k = _bf16(qkv[:, C + h * HD:C + (h + 1) * HD])
        v = _bf16(qkv[:, 2 * C + h * HD:2 * C + (h + 1) * HD])
        s = jax.lax.dot_general(q, k, (((1,), (1,)), ((), ())),
                                preferred_element_type=f32)             # (L, L)
        p = _softmax_kernel(s + bias_ref[h])
        y_sc[:, pl.ds(h * HD, HD)] = jnp.dot(_bf16(p), v, preferred_element_type=f32)

    # ---- output projection + window reverse / un-shift ----
    y = jnp.dot(_bf16(y_sc[...]), wproj_ref[...], preferred_element_type=f32) + bproj_ref[...]
    xa = jnp.dot(permt, _bf16(y), preferred_element_type=f32)           # (L, C) original order

    # ---- prompt cross-attention (PROMPT_SCALE pre-folded into the prompt) ----
    pa = jax.lax.dot_general(prompt_ref[...], _bf16(xa), (((1,), (1,)), ((), ())),
                             preferred_element_type=f32)                # (num, L)
    pa = _softmax_kernel(pa)
    po = jnp.dot(_bf16(pa), _bf16(xa), preferred_element_type=f32)      # (num, C)

    # shortcut + attention branch, prompt output scattered into the first `num` rows
    x1_sc[...] = x + xa
    x1_sc[pl.ds(0, NUM_PROMPT), :] = x1_sc[pl.ds(0, NUM_PROMPT), :] + po
    x1 = x1_sc[...]

    # ---- norm2 + MLP (tanh GELU) + prompt_proj + residuals ----
    xn2 = _layernorm(x1, g2_ref[...], b2_ref[...])
    hid = jnp.dot(_bf16(xn2), w1_ref[...], preferred_element_type=f32) + b1m_ref[...]
    hid = _gelu_tanh(hid)
    mlp = jnp.dot(_bf16(hid), w2_ref[...], preferred_element_type=f32) + b2m_ref[...]
    pproj = jnp.dot(_bf16(x1), wp_ref[...], preferred_element_type=f32) + bp_ref[...]
    o_ref[0] = x1 + mlp + pproj


def _bcast_spec(shape):
    if len(shape) == 2:
        return pl.BlockSpec(shape, lambda i: (0, 0))
    return pl.BlockSpec(shape, lambda i: (0, 0, 0))


def swin_block_forward(x, KP):
    return pl.pallas_call(
        _swin_block_kernel,
        out_shape=jax.ShapeDtypeStruct((B, L, C), jnp.float32),
        grid=(B,),
        in_specs=[
            pl.BlockSpec((1, L, C), lambda i: (i, 0, 0)),         # x
            _bcast_spec((L, L)),                                   # perm  (bf16)
            _bcast_spec((L, L)),                                   # perm^T (bf16)
            _bcast_spec((1, C)), _bcast_spec((1, C)),              # g1, b1
            _bcast_spec((C, 3 * C)), _bcast_spec((1, 3 * C)),      # wqkv (bf16), bqkv
            _bcast_spec((C, C)), _bcast_spec((1, C)),              # wproj (bf16), bproj
            _bcast_spec((NUM_HEADS, L, L)),                        # block-diag bias (+masks)
            _bcast_spec((NUM_PROMPT, C)),                          # prompt (scaled, bf16)
            _bcast_spec((1, C)), _bcast_spec((1, C)),              # g2, b2
            _bcast_spec((C, HIDDEN)), _bcast_spec((1, HIDDEN)),    # w1 (bf16), b1m
            _bcast_spec((HIDDEN, C)), _bcast_spec((1, C)),         # w2 (bf16), b2m
            _bcast_spec((C, C)), _bcast_spec((1, C)),              # wp (bf16), bp
        ],
        out_specs=pl.BlockSpec((1, L, C), lambda i: (i, 0, 0)),
        scratch_shapes=[pltpu.VMEM((L, C), jnp.float32),           # attention head outputs
                        pltpu.VMEM((L, C), jnp.float32)],          # x1 = shortcut + attn + prompt
        compiler_params=pltpu.CompilerParams(dimension_semantics=("parallel",)),
    )(x, KP['perm'], KP['permt'], KP['g1'], KP['b1'], KP['wqkv'], KP['bqkv'],
      KP['wproj'], KP['bproj'], KP['bias'], KP['prompt'],
      KP['g2'], KP['b2'], KP['w1'], KP['b1m'], KP['w2'], KP['b2m'],
      KP['wp'], KP['bp'])


# ----------------------------- pure-JAX reference (mirrors the PyTorch forward) -----------------------------
def reference_forward(x, P, rel_bias, attn_mask):
    shortcut = x
    xn = _layernorm(x, P['g1'], P['b1'])
    xv = xn.reshape(B, H, W, C)
    if SHIFT > 0:
        xv = jnp.roll(xv, shift=(-SHIFT, -SHIFT), axis=(1, 2))
    xw = window_partition_jnp(xv, WS).reshape(-1, N, C)
    qkv = xw @ P['wqkv'] + P['bqkv']
    qkv = qkv.reshape(B_, N, 3, NUM_HEADS, HD).transpose(2, 0, 3, 1, 4)
    q, k, v = qkv[0] * ATTN_SCALE, qkv[1], qkv[2]
    attn = jnp.einsum('bhnd,bhmd->bhnm', q, k)
    attn = attn + rel_bias[None]
    if SHIFT > 0:
        attn = attn.reshape(B, NW, NUM_HEADS, N, N) + attn_mask[None, :, None]
        attn = attn.reshape(B_, NUM_HEADS, N, N)
    attn = _softmax_ref(attn)
    y = jnp.einsum('bhnm,bhmd->bhnd', attn, v).transpose(0, 2, 1, 3).reshape(B_, N, C)
    y = y @ P['wproj'] + P['bproj']
    sx = window_reverse_jnp(y.reshape(-1, WS, WS, C), WS, H, W)
    if SHIFT > 0:
        sx = jnp.roll(sx, shift=(SHIFT, SHIFT), axis=(1, 2))
    xa = sx.reshape(B, L, C)
    pattn = _softmax_ref(jnp.einsum('nc,blc->bnl', P['prompt'], xa) * PROMPT_SCALE)
    po = jnp.einsum('bnl,blc->bnc', pattn, xa)
    xa = xa + jnp.concatenate([po, jnp.zeros((B, L - NUM_PROMPT, C), xa.dtype)], axis=1)
    x1 = shortcut + xa
    xn2 = _layernorm(x1, P['g2'], P['b2'])
    mlp = jax.nn.gelu(xn2 @ P['w1'] + P['b1m'], approximate=False) @ P['w2'] + P['b2m']
    pproj = x1 @ P['wp'] + P['bp']
    return x1 + mlp + pproj


# ----------------------------- static buffers (rel pos index, shift mask, permutation, bias) -----------------------------
def _relative_position_index():
    coords = np.stack(np.meshgrid(np.arange(WS), np.arange(WS), indexing='ij'))  # (2, WS, WS)
    cf = coords.reshape(2, -1)
    rel = (cf[:, :, None] - cf[:, None, :]).transpose(1, 2, 0).astype(np.int64)
    rel[:, :, 0] += WS - 1
    rel[:, :, 1] += WS - 1
    rel[:, :, 0] *= 2 * WS - 1
    return rel.sum(-1)                                  # (N, N)


def _build_attn_mask():
    if SHIFT == 0:
        return np.zeros((NW, N, N), np.float32)
    img_mask = np.zeros((1, H, W, 1), np.float32)
    cnt = 0
    slices = (slice(0, -WS), slice(-WS, -SHIFT), slice(-SHIFT, None))
    for hs in slices:
        for ws_ in slices:
            img_mask[:, hs, ws_, :] = cnt
            cnt += 1
    mw = window_partition_np(img_mask, WS).reshape(-1, N)
    am = mw[:, None, :] - mw[:, :, None]
    return np.where(am != 0, -100.0, 0.0).astype(np.float32)  # (NW, N, N)


def _build_window_perm():
    # row j of the windowed/window-major layout comes from original token idx[j]
    # (cyclic shift by (-SHIFT,-SHIFT) followed by window partition).
    idx = np.zeros((L,), np.int64)
    p = 0
    for hb in range(H // WS):
        for wb in range(W // WS):
            for i in range(WS):
                for j in range(WS):
                    oh = (hb * WS + i + SHIFT) % H
                    ow = (wb * WS + j + SHIFT) % W
                    idx[p] = oh * W + ow
                    p += 1
    perm = np.zeros((L, L), np.float32)
    perm[np.arange(L), idx] = 1.0
    return perm                                         # xw = perm @ x ; x = perm.T @ xw


def _build_blockdiag_bias(rel_bias_np, attn_mask_np):
    # (NUM_HEADS, L, L): per-window rel-pos bias + shift mask on the diagonal blocks,
    # -1e9 everywhere else so cross-window pairs vanish in the softmax.
    bias = np.full((NUM_HEADS, L, L), NEG_INF, np.float32)
    for w in range(NW):
        s = w * N
        for h in range(NUM_HEADS):
            bias[h, s:s + N, s:s + N] = rel_bias_np[h] + attn_mask_np[w]
    return bias


# ----------------------------- main -----------------------------
if __name__ == "__main__":
    key = jax.random.PRNGKey(0)
    kx, kp = jax.random.split(key)
    ks = jax.random.split(kp, 16)

    def nrm(k, shape, std=0.02):
        return (std * jax.random.normal(k, shape)).astype(jnp.float32)

    # deterministic synthetic parameters (shapes follow the module __init__);
    # all Linear weights stored as (in, out).
    P = {
        'g1':    1.0 + nrm(ks[0], (1, C), 0.1),
        'b1':    nrm(ks[1], (1, C), 0.1),
        'wqkv':  nrm(ks[2], (C, 3 * C)),
        'bqkv':  nrm(ks[3], (1, 3 * C)),
        'wproj': nrm(ks[4], (C, C)),
        'bproj': nrm(ks[5], (1, C)),
        'rel_table': nrm(ks[6], ((2 * WS - 1) * (2 * WS - 1), NUM_HEADS)),
        'g2':    1.0 + nrm(ks[7], (1, C), 0.1),
        'b2':    nrm(ks[8], (1, C), 0.1),
        'w1':    nrm(ks[9], (C, HIDDEN)),
        'b1m':   nrm(ks[10], (1, HIDDEN)),
        'w2':    nrm(ks[11], (HIDDEN, C)),
        'b2m':   nrm(ks[12], (1, C)),
        'prompt': nrm(ks[13], (NUM_PROMPT, C)),
        'wp':    nrm(ks[14], (C, C)),
        'bp':    nrm(ks[15], (1, C)),
    }

    x = jax.random.normal(kx, (B, L, C), jnp.float32)

    # relative position bias (nH, N, N) and shift mask (NW, N, N)
    rpi = _relative_position_index()
    rel_bias = P['rel_table'][rpi.reshape(-1)].reshape(N, N, NUM_HEADS)
    rel_bias = jnp.transpose(rel_bias, (2, 0, 1)).astype(jnp.float32)
    attn_mask_np = _build_attn_mask()
    attn_mask = jnp.asarray(attn_mask_np)

    # --- kernel-ready parameters: static weight rewrites (scales folded, bf16 matmul operands) ---
    perm_np = _build_window_perm()
    bias_np = _build_blockdiag_bias(np.asarray(rel_bias), attn_mask_np)
    wqkv_s = P['wqkv'].at[:, :C].multiply(ATTN_SCALE)     # fold attn scale into W_q
    bqkv_s = P['bqkv'].at[:, :C].multiply(ATTN_SCALE)     # ... and b_q
    KP = {
        'perm':  jnp.asarray(perm_np, jnp.bfloat16),
        'permt': jnp.asarray(perm_np.T, jnp.bfloat16),
        'g1': P['g1'], 'b1': P['b1'],
        'wqkv': wqkv_s.astype(jnp.bfloat16), 'bqkv': bqkv_s,
        'wproj': P['wproj'].astype(jnp.bfloat16), 'bproj': P['bproj'],
        'bias': jnp.asarray(bias_np),
        'prompt': (P['prompt'] * PROMPT_SCALE).astype(jnp.bfloat16),
        'g2': P['g2'], 'b2': P['b2'],
        'w1': P['w1'].astype(jnp.bfloat16), 'b1m': P['b1m'],
        'w2': P['w2'].astype(jnp.bfloat16), 'b2m': P['b2m'],
        'wp': P['wp'].astype(jnp.bfloat16), 'bp': P['bp'],
    }

    fwd = jax.jit(lambda xx: swin_block_forward(xx, KP))
    out = fwd(x)
    jax.block_until_ready(out)

    ref = reference_forward(x, P, rel_bias, attn_mask)
    # tolerance is intentionally 2e-2: kernel uses bf16 MXU operands (f32 accumulation),
    # tanh-approx GELU and approximate-reciprocal softmax; reference is exact f32.
    np.testing.assert_allclose(np.asarray(out), np.asarray(ref), rtol=2e-2, atol=2e-2)

    print("KERNEL_OK")
</pallas_src>

<mosaic_0001>
module attributes {stable_mosaic.version = 11 : i64} {
  func.func @_swin_block_kernel(%arg0: i32, %arg1: memref<1x64x32xf32, #tpu.memory_space<vmem>>, %arg2: memref<64x64xbf16, #tpu.memory_space<vmem>>, %arg3: memref<64x64xbf16, #tpu.memory_space<vmem>>, %arg4: memref<1x32xf32, #tpu.memory_space<vmem>>, %arg5: memref<1x32xf32, #tpu.memory_space<vmem>>, %arg6: memref<32x96xbf16, #tpu.memory_space<vmem>>, %arg7: memref<1x96xf32, #tpu.memory_space<vmem>>, %arg8: memref<32x32xbf16, #tpu.memory_space<vmem>>, %arg9: memref<1x32xf32, #tpu.memory_space<vmem>>, %arg10: memref<4x64x64xf32, #tpu.memory_space<vmem>>, %arg11: memref<10x32xbf16, #tpu.memory_space<vmem>>, %arg12: memref<1x32xf32, #tpu.memory_space<vmem>>, %arg13: memref<1x32xf32, #tpu.memory_space<vmem>>, %arg14: memref<32x128xbf16, #tpu.memory_space<vmem>>, %arg15: memref<1x128xf32, #tpu.memory_space<vmem>>, %arg16: memref<128x32xbf16, #tpu.memory_space<vmem>>, %arg17: memref<1x32xf32, #tpu.memory_space<vmem>>, %arg18: memref<32x32xbf16, #tpu.memory_space<vmem>>, %arg19: memref<1x32xf32, #tpu.memory_space<vmem>>, %arg20: memref<1x64x32xf32, #tpu.memory_space<vmem>>, %arg21: memref<64x32xf32, #tpu.memory_space<vmem>>, %arg22: memref<64x32xf32, #tpu.memory_space<vmem>>) attributes {dimension_semantics = [#tpu.dimension_semantics<parallel>], iteration_bounds = array<i64: 2>, scalar_prefetch = 0 : i64, scratch_operands = 2 : i64, tpu.core_type = #tpu.core_type<tc>, window_params = [{transform_indices = @transform_0, window_bounds = array<i64: 1, 64, 32>}, {pipeline_mode = #tpu.pipeline_mode<synchronous>, transform_indices = @transform_1, window_bounds = array<i64: 64, 64>}, {pipeline_mode = #tpu.pipeline_mode<synchronous>, transform_indices = @transform_2, window_bounds = array<i64: 64, 64>}, {pipeline_mode = #tpu.pipeline_mode<synchronous>, transform_indices = @transform_3, window_bounds = array<i64: 1, 32>}, {pipeline_mode = #tpu.pipeline_mode<synchronous>, transform_indices = @transform_4, window_bounds = array<i64: 1, 32>}, {pipeline_mode = #tpu.pipeline_mode<synchronous>, transform_indices = @transform_5, window_bounds = array<i64: 32, 96>}, {pipeline_mode = #tpu.pipeline_mode<synchronous>, transform_indices = @transform_6, window_bounds = array<i64: 1, 96>}, {pipeline_mode = #tpu.pipeline_mode<synchronous>, transform_indices = @transform_7, window_bounds = array<i64: 32, 32>}, {pipeline_mode = #tpu.pipeline_mode<synchronous>, transform_indices = @transform_8, window_bounds = array<i64: 1, 32>}, {pipeline_mode = #tpu.pipeline_mode<synchronous>, transform_indices = @transform_9, window_bounds = array<i64: 4, 64, 64>}, {pipeline_mode = #tpu.pipeline_mode<synchronous>, transform_indices = @transform_10, window_bounds = array<i64: 10, 32>}, {pipeline_mode = #tpu.pipeline_mode<synchronous>, transform_indices = @transform_11, window_bounds = array<i64: 1, 32>}, {pipeline_mode = #tpu.pipeline_mode<synchronous>, transform_indices = @transform_12, window_bounds = array<i64: 1, 32>}, {pipeline_mode = #tpu.pipeline_mode<synchronous>, transform_indices = @transform_13, window_bounds = array<i64: 32, 128>}, {pipeline_mode = #tpu.pipeline_mode<synchronous>, transform_indices = @transform_14, window_bounds = array<i64: 1, 128>}, {pipeline_mode = #tpu.pipeline_mode<synchronous>, transform_indices = @transform_15, window_bounds = array<i64: 128, 32>}, {pipeline_mode = #tpu.pipeline_mode<synchronous>, transform_indices = @transform_16, window_bounds = array<i64: 1, 32>}, {pipeline_mode = #tpu.pipeline_mode<synchronous>, transform_indices = @transform_17, window_bounds = array<i64: 32, 32>}, {pipeline_mode = #tpu.pipeline_mode<synchronous>, transform_indices = @transform_18, window_bounds = array<i64: 1, 32>}, {transform_indices = @transform_19, window_bounds = array<i64: 1, 64, 32>}]} {
    %c0 = arith.constant 0 : index
    %c0_0 = arith.constant 0 : index
    %c0_1 = arith.constant 0 : index
    %0 = vector.load %arg1[%c0, %c0_0, %c0_1] : memref<1x64x32xf32, #tpu.memory_space<vmem>>, vector<1x64x32xf32>
    %1 = vector.shape_cast %0 : vector<1x64x32xf32> to vector<64x32xf32>
    %c0_2 = arith.constant 0 : index
    %c0_3 = arith.constant 0 : index
    %2 = vector.load %arg2[%c0_2, %c0_3] : memref<64x64xbf16, #tpu.memory_space<vmem>>, vector<64x64xbf16>
    %c0_4 = arith.constant 0 : index
    %c0_5 = arith.constant 0 : index
    %3 = vector.load %arg3[%c0_4, %c0_5] : memref<64x64xbf16, #tpu.memory_space<vmem>>, vector<64x64xbf16>
    %c0_6 = arith.constant 0 : index
    %c0_7 = arith.constant 0 : index
    %4 = vector.load %arg4[%c0_6, %c0_7] : memref<1x32xf32, #tpu.memory_space<vmem>>, vector<1x32xf32>
    %c0_8 = arith.constant 0 : index
    %c0_9 = arith.constant 0 : index
    %5 = vector.load %arg5[%c0_8, %c0_9] : memref<1x32xf32, #tpu.memory_space<vmem>>, vector<1x32xf32>
    %cst = arith.constant dense<0.000000e+00> : vector<64xf32>
    %6 = vector.multi_reduction <add>, %1, %cst [1] : vector<64x32xf32> to vector<64xf32>
    %7 = vector.shape_cast %6 : vector<64xf32> to vector<64x1xf32>
    %cst_10 = arith.constant 3.200000e+01 : f32
    %8 = vector.broadcast %cst_10 : f32 to vector<64x1xf32>
    %9 = arith.divf %7, %8 : vector<64x1xf32>
    %10 = vector.broadcast %9 : vector<64x1xf32> to vector<64x32xf32>
    %11 = arith.subf %1, %10 : vector<64x32xf32>
    %12 = arith.mulf %11, %11 : vector<64x32xf32>
    %cst_11 = arith.constant dense<0.000000e+00> : vector<64xf32>
    %13 = vector.multi_reduction <add>, %12, %cst_11 [1] : vector<64x32xf32> to vector<64xf32>
    %14 = vector.shape_cast %13 : vector<64xf32> to vector<64x1xf32>
    %cst_12 = arith.constant 3.200000e+01 : f32
    %15 = vector.broadcast %cst_12 : f32 to vector<64x1xf32>
    %16 = arith.divf %14, %15 : vector<64x1xf32>
    %17 = vector.broadcast %9 : vector<64x1xf32> to vector<64x32xf32>
    %18 = arith.subf %1, %17 : vector<64x32xf32>
    %cst_13 = arith.constant 9.99999974E-6 : f32
    %19 = vector.broadcast %cst_13 : f32 to vector<64x1xf32>
    %20 = arith.addf %16, %19 : vector<64x1xf32>
    %21 = math.rsqrt %20 : vector<64x1xf32>
    %22 = vector.broadcast %21 : vector<64x1xf32> to vector<64x32xf32>
    %23 = arith.mulf %18, %22 : vector<64x32xf32>
    %24 = vector.broadcast %4 : vector<1x32xf32> to vector<64x32xf32>
    %25 = arith.mulf %23, %24 : vector<64x32xf32>
    %26 = vector.broadcast %5 : vector<1x32xf32> to vector<64x32xf32>
    %27 = arith.addf %25, %26 : vector<64x32xf32>
    %28 = arith.truncf %27 : vector<64x32xf32> to vector<64x32xbf16>
    %cst_14 = arith.constant dense<0.000000e+00> : vector<64x32xf32>
    %29 = tpu.matmul %2, %28, %cst_14 {dimension_numbers = #tpu.dot_dimension_numbers<[1], [0], [0], [1], [0, 0, 1, 1], [], []>} : vector<64x64xbf16>, vector<64x32xbf16>, vector<64x32xf32> -> vector<64x32xf32>
    %30 = arith.truncf %29 : vector<64x32xf32> to vector<64x32xbf16>
    %c0_15 = arith.constant 0 : index
    %c0_16 = arith.constant 0 : index
    %31 = vector.load %arg6[%c0_15, %c0_16] : memref<32x96xbf16, #tpu.memory_space<vmem>>, vector<32x96xbf16>
    %cst_17 = arith.constant dense<0.000000e+00> : vector<64x96xf32>
    %32 = tpu.matmul %30, %31, %cst_17 {dimension_numbers = #tpu.dot_dimension_numbers<[1], [0], [0], [1], [0, 0, 1, 1], [], []>} : vector<64x32xbf16>, vector<32x96xbf16>, vector<64x96xf32> -> vector<64x96xf32>
    %c0_18 = arith.constant 0 : index
    %c0_19 = arith.constant 0 : index
    %33 = vector.load %arg7[%c0_18, %c0_19] : memref<1x96xf32, #tpu.memory_space<vmem>>, vector<1x96xf32>
    %34 = vector.broadcast %33 : vector<1x96xf32> to vector<64x96xf32>
    %35 = arith.addf %32, %34 : vector<64x96xf32>
    %36 = vector.extract_strided_slice %35 {offsets = [0, 0], sizes = [64, 8], strides = [1, 1]} : vector<64x96xf32> to vector<64x8xf32>
    %37 = arith.truncf %36 : vector<64x8xf32> to vector<64x8xbf16>
    %38 = vector.extract_strided_slice %35 {offsets = [0, 32], sizes = [64, 8], strides = [1, 1]} : vector<64x96xf32> to vector<64x8xf32>
    %39 = arith.truncf %38 : vector<64x8xf32> to vector<64x8xbf16>
    %40 = vector.extract_strided_slice %35 {offsets = [0, 64], sizes = [64, 8], strides = [1, 1]} : vector<64x96xf32> to vector<64x8xf32>
    %41 = arith.truncf %40 : vector<64x8xf32> to vector<64x8xbf16>
    %cst_20 = arith.constant dense<0.000000e+00> : vector<64x64xf32>
    %42 = tpu.matmul %37, %39, %cst_20 {dimension_numbers = #tpu.dot_dimension_numbers<[1], [1], [0], [0], [0, 0, 1, 0], [], []>} : vector<64x8xbf16>, vector<64x8xbf16>, vector<64x64xf32> -> vector<64x64xf32>
    %c0_21 = arith.constant 0 : index
    %c0_22 = arith.constant 0 : index
    %c0_23 = arith.constant 0 : index
    %43 = vector.load %arg10[%c0_21, %c0_22, %c0_23] : memref<4x64x64xf32, #tpu.memory_space<vmem>>, vector<1x64x64xf32>
    %44 = vector.shape_cast %43 : vector<1x64x64xf32> to vector<64x64xf32>
    %45 = arith.addf %42, %44 : vector<64x64xf32>
    %cst_24 = arith.constant dense<0xFF800000> : vector<64xf32>
    %46 = vector.multi_reduction <maximumf>, %45, %cst_24 [1] : vector<64x64xf32> to vector<64xf32>
    %47 = vector.shape_cast %46 : vector<64xf32> to vector<64x1xf32>
    %48 = vector.broadcast %47 : vector<64x1xf32> to vector<64x64xf32>
    %49 = arith.subf %45, %48 : vector<64x64xf32>
    %50 = math.exp %49 : vector<64x64xf32>
    %cst_25 = arith.constant dense<0.000000e+00> : vector<64xf32>
    %51 = vector.multi_reduction <add>, %50, %cst_25 [1] : vector<64x64xf32> to vector<64xf32>
    %52 = vector.shape_cast %51 : vector<64xf32> to vector<64x1xf32>
    %53 = tpu.reciprocal %52 {approx = true} : vector<64x1xf32> -> vector<64x1xf32>
    %54 = vector.broadcast %53 : vector<64x1xf32> to vector<64x64xf32>
    %55 = arith.mulf %50, %54 : vector<64x64xf32>
    %56 = arith.truncf %55 : vector<64x64xf32> to vector<64x64xbf16>
    %cst_26 = arith.constant dense<0.000000e+00> : vector<64x8xf32>
    %57 = tpu.matmul %56, %41, %cst_26 {dimension_numbers = #tpu.dot_dimension_numbers<[1], [0], [0], [1], [0, 0, 1, 1], [], []>} : vector<64x64xbf16>, vector<64x8xbf16>, vector<64x8xf32> -> vector<64x8xf32>
    %c0_27 = arith.constant 0 : index
    %c0_28 = arith.constant 0 : index
    %58 = vector.load %arg21[%c0_27, %c0_28] : memref<64x32xf32, #tpu.memory_space<vmem>>, vector<64x8xf32>
    tpu.vector_store %arg21[%c0_27, %c0_28], %57 {strides = array<i32>} : memref<64x32xf32, #tpu.memory_space<vmem>>, vector<64x8xf32>,
    %59 = vector.extract_strided_slice %35 {offsets = [0, 8], sizes = [64, 8], strides = [1, 1]} : vector<64x96xf32> to vector<64x8xf32>
    %60 = arith.truncf %59 : vector<64x8xf32> to vector<64x8xbf16>
    %61 = vector.extract_strided_slice %35 {offsets = [0, 40], sizes = [64, 8], strides = [1, 1]} : vector<64x96xf32> to vector<64x8xf32>
    %62 = arith.truncf %61 : vector<64x8xf32> to vector<64x8xbf16>
    %63 = vector.extract_strided_slice %35 {offsets = [0, 72], sizes = [64, 8], strides = [1, 1]} : vector<64x96xf32> to vector<64x8xf32>
    %64 = arith.truncf %63 : vector<64x8xf32> to vector<64x8xbf16>
    %cst_29 = arith.constant dense<0.000000e+00> : vector<64x64xf32>
    %65 = tpu.matmul %60, %62, %cst_29 {dimension_numbers = #tpu.dot_dimension_numbers<[1], [1], [0], [0], [0, 0, 1, 0], [], []>} : vector<64x8xbf16>, vector<64x8xbf16>, vector<64x64xf32> -> vector<64x64xf32>
    %c1 = arith.constant 1 : index
    %c0_30 = arith.constant 0 : index
    %c0_31 = arith.constant 0 : index
    %66 = vector.load %arg10[%c1, %c0_30, %c0_31] : memref<4x64x64xf32, #tpu.memory_space<vmem>>, vector<1x64x64xf32>
    %67 = vector.shape_cast %66 : vector<1x64x64xf32> to vector<64x64xf32>
    %68 = arith.addf %65, %67 : vector<64x64xf32>
    %cst_32 = arith.constant dense<0xFF800000> : vector<64xf32>
    %69 = vector.multi_reduction <maximumf>, %68, %cst_32 [1] : vector<64x64xf32> to vector<64xf32>
    %70 = vector.shape_cast %69 : vector<64xf32> to vector<64x1xf32>
    %71 = vector.broadcast %70 : vector<64x1xf32> to vector<64x64xf32>
    %72 = arith.subf %68, %71 : vector<64x64xf32>
    %73 = math.exp %72 : vector<64x64xf32>
    %cst_33 = arith.constant dense<0.000000e+00> : vector<64xf32>
    %74 = vector.multi_reduction <add>, %73, %cst_33 [1] : vector<64x64xf32> to vector<64xf32>
    %75 = vector.shape_cast %74 : vector<64xf32> to vector<64x1xf32>
    %76 = tpu.reciprocal %75 {approx = true} : vector<64x1xf32> -> vector<64x1xf32>
    %77 = vector.broadcast %76 : vector<64x1xf32> to vector<64x64xf32>
    %78 = arith.mulf %73, %77 : vector<64x64xf32>
    %79 = arith.truncf %78 : vector<64x64xf32> to vector<64x64xbf16>
    %cst_34 = arith.constant dense<0.000000e+00> : vector<64x8xf32>
    %80 = tpu.matmul %79, %64, %cst_34 {dimension_numbers = #tpu.dot_dimension_numbers<[1], [0], [0], [1], [0, 0, 1, 1], [], []>} : vector<64x64xbf16>, vector<64x8xbf16>, vector<64x8xf32> -> vector<64x8xf32>
    %c0_35 = arith.constant 0 : index
    %c8 = arith.constant 8 : index
    %81 = vector.load %arg21[%c0_35, %c8] : memref<64x32xf32, #tpu.memory_space<vmem>>, vector<64x8xf32>
    tpu.vector_store %arg21[%c0_35, %c8], %80 {strides = array<i32>} : memref<64x32xf32, #tpu.memory_space<vmem>>, vector<64x8xf32>,
    %82 = vector.extract_strided_slice %35 {offsets = [0, 16], sizes = [64, 8], strides = [1, 1]} : vector<64x96xf32> to vector<64x8xf32>
    %83 = arith.truncf %82 : vector<64x8xf32> to vector<64x8xbf16>
    %84 = vector.extract_strided_slice %35 {offsets = [0, 48], sizes = [64, 8], strides = [1, 1]} : vector<64x96xf32> to vector<64x8xf32>
    %85 = arith.truncf %84 : vector<64x8xf32> to vector<64x8xbf16>
    %86 = vector.extract_strided_slice %35 {offsets = [0, 80], sizes = [64, 8], strides = [1, 1]} : vector<64x96xf32> to vector<64x8xf32>
    %87 = arith.truncf %86 : vector<64x8xf32> to vector<64x8xbf16>
    %cst_36 = arith.constant dense<0.000000e+00> : vector<64x64xf32>
    %88 = tpu.matmul %83, %85, %cst_36 {dimension_numbers = #tpu.dot_dimension_numbers<[1], [1], [0], [0], [0, 0, 1, 0], [], []>} : vector<64x8xbf16>, vector<64x8xbf16>, vector<64x64xf32> -> vector<64x64xf32>
    %c2 = arith.constant 2 : index
    %c0_37 = arith.constant 0 : index
    %c0_38 = arith.constant 0 : index
    %89 = vector.load %arg10[%c2, %c0_37, %c0_38] : memref<4x64x64xf32, #tpu.memory_space<vmem>>, vector<1x64x64xf32>
    %90 = vector.shape_cast %89 : vector<1x64x64xf32> to vector<64x64xf32>
    %91 = arith.addf %88, %90 : vector<64x64xf32>
    %cst_39 = arith.constant dense<0xFF800000> : vector<64xf32>
    %92 = vector.multi_reduction <maximumf>, %91, %cst_39 [1] : vector<64x64xf32> to vector<64xf32>
    %93 = vector.shape_cast %92 : vector<64xf32> to vector<64x1xf32>
    %94 = vector.broadcast %93 : vector<64x1xf32> to vector<64x64xf32>
    %95 = arith.subf %91, %94 : vector<64x64xf32>
    %96 = math.exp %95 : vector<64x64xf32>
    %cst_40 = arith.constant dense<0.000000e+00> : vector<64xf32>
    %97 = vector.multi_reduction <add>, %96, %cst_40 [1] : vector<64x64xf32> to vector<64xf32>
    %98 = vector.shape_cast %97 : vector<64xf32> to vector<64x1xf32>
    %99 = tpu.reciprocal %98 {approx = true} : vector<64x1xf32> -> vector<64x1xf32>
    %100 = vector.broadcast %99 : vector<64x1xf32> to vector<64x64xf32>
    %101 = arith.mulf %96, %100 : vector<64x64xf32>
    %102 = arith.truncf %101 : vector<64x64xf32> to vector<64x64xbf16>
    %cst_41 = arith.constant dense<0.000000e+00> : vector<64x8xf32>
    %103 = tpu.matmul %102, %87, %cst_41 {dimension_numbers = #tpu.dot_dimension_numbers<[1], [0], [0], [1], [0, 0, 1, 1], [], []>} : vector<64x64xbf16>, vector<64x8xbf16>, vector<64x8xf32> -> vector<64x8xf32>
    %c0_42 = arith.constant 0 : index
    %c16 = arith.constant 16 : index
    %104 = vector.load %arg21[%c0_42, %c16] : memref<64x32xf32, #tpu.memory_space<vmem>>, vector<64x8xf32>
    tpu.vector_store %arg21[%c0_42, %c16], %103 {strides = array<i32>} : memref<64x32xf32, #tpu.memory_space<vmem>>, vector<64x8xf32>,
    %105 = vector.extract_strided_slice %35 {offsets = [0, 24], sizes = [64, 8], strides = [1, 1]} : vector<64x96xf32> to vector<64x8xf32>
    %106 = arith.truncf %105 : vector<64x8xf32> to vector<64x8xbf16>
    %107 = vector.extract_strided_slice %35 {offsets = [0, 56], sizes = [64, 8], strides = [1, 1]} : vector<64x96xf32> to vector<64x8xf32>
    %108 = arith.truncf %107 : vector<64x8xf32> to vector<64x8xbf16>
    %109 = vector.extract_strided_slice %35 {offsets = [0, 88], sizes = [64, 8], strides = [1, 1]} : vector<64x96xf32> to vector<64x8xf32>
    %110 = arith.truncf %109 : vector<64x8xf32> to vector<64x8xbf16>
    %cst_43 = arith.constant dense<0.000000e+00> : vector<64x64xf32>
    %111 = tpu.matmul %106, %108, %cst_43 {dimension_numbers = #tpu.dot_dimension_numbers<[1], [1], [0], [0], [0, 0, 1, 0], [], []>} : vector<64x8xbf16>, vector<64x8xbf16>, vector<64x64xf32> -> vector<64x64xf32>
    %c3 = arith.constant 3 : index
    %c0_44 = arith.constant 0 : index
    %c0_45 = arith.constant 0 : index
    %112 = vector.load %arg10[%c3, %c0_44, %c0_45] : memref<4x64x64xf32, #tpu.memory_space<vmem>>, vector<1x64x64xf32>
    %113 = vector.shape_cast %112 : vector<1x64x64xf32> to vector<64x64xf32>
    %114 = arith.addf %111, %113 : vector<64x64xf32>
    %cst_46 = arith.constant dense<0xFF800000> : vector<64xf32>
    %115 = vector.multi_reduction <maximumf>, %114, %cst_46 [1] : vector<64x64xf32> to vector<64xf32>
    %116 = vector.shape_cast %115 : vector<64xf32> to vector<64x1xf32>
    %117 = vector.broadcast %116 : vector<64x1xf32> to vector<64x64xf32>
    %118 = arith.subf %114, %117 : vector<64x64xf32>
    %119 = math.exp %118 : vector<64x64xf32>
    %cst_47 = arith.constant dense<0.000000e+00> : vector<64xf32>
    %120 = vector.multi_reduction <add>, %119, %cst_47 [1] : vector<64x64xf32> to vector<64xf32>
    %121 = vector.shape_cast %120 : vector<64xf32> to vector<64x1xf32>
    %122 = tpu.reciprocal %121 {approx = true} : vector<64x1xf32> -> vector<64x1xf32>
    %123 = vector.broadcast %122 : vector<64x1xf32> to vector<64x64xf32>
    %124 = arith.mulf %119, %123 : vector<64x64xf32>
    %125 = arith.truncf %124 : vector<64x64xf32> to vector<64x64xbf16>
    %cst_48 = arith.constant dense<0.000000e+00> : vector<64x8xf32>
    %126 = tpu.matmul %125, %110, %cst_48 {dimension_numbers = #tpu.dot_dimension_numbers<[1], [0], [0], [1], [0, 0, 1, 1], [], []>} : vector<64x64xbf16>, vector<64x8xbf16>, vector<64x8xf32> -> vector<64x8xf32>
    %c0_49 = arith.constant 0 : index
    %c24 = arith.constant 24 : index
    %127 = vector.load %arg21[%c0_49, %c24] : memref<64x32xf32, #tpu.memory_space<vmem>>, vector<64x8xf32>
    tpu.vector_store %arg21[%c0_49, %c24], %126 {strides = array<i32>} : memref<64x32xf32, #tpu.memory_space<vmem>>, vector<64x8xf32>,
    %c0_50 = arith.constant 0 : index
    %c0_51 = arith.constant 0 : index
    %128 = vector.load %arg21[%c0_50, %c0_51] : memref<64x32xf32, #tpu.memory_space<vmem>>, vector<64x32xf32>
    %129 = arith.truncf %128 : vector<64x32xf32> to vector<64x32xbf16>
    %c0_52 = arith.constant 0 : index
    %c0_53 = arith.constant 0 : index
    %130 = vector.load %arg8[%c0_52, %c0_53] : memref<32x32xbf16, #tpu.memory_space<vmem>>, vector<32x32xbf16>
    %cst_54 = arith.constant dense<0.000000e+00> : vector<64x32xf32>
    %131 = tpu.matmul %129, %130, %cst_54 {dimension_numbers = #tpu.dot_dimension_numbers<[1], [0], [0], [1], [0, 0, 1, 1], [], []>} : vector<64x32xbf16>, vector<32x32xbf16>, vector<64x32xf32> -> vector<64x32xf32>
    %c0_55 = arith.constant 0 : index
    %c0_56 = arith.constant 0 : index
    %132 = vector.load %arg9[%c0_55, %c0_56] : memref<1x32xf32, #tpu.memory_space<vmem>>, vector<1x32xf32>
    %133 = vector.broadcast %132 : vector<1x32xf32> to vector<64x32xf32>
    %134 = arith.addf %131, %133 : vector<64x32xf32>
    %135 = arith.truncf %134 : vector<64x32xf32> to vector<64x32xbf16>
    %cst_57 = arith.constant dense<0.000000e+00> : vector<64x32xf32>
    %136 = tpu.matmul %3, %135, %cst_57 {dimension_numbers = #tpu.dot_dimension_numbers<[1], [0], [0], [1], [0, 0, 1, 1], [], []>} : vector<64x64xbf16>, vector<64x32xbf16>, vector<64x32xf32> -> vector<64x32xf32>
    %c0_58 = arith.constant 0 : index
    %c0_59 = arith.constant 0 : index
    %137 = vector.load %arg11[%c0_58, %c0_59] : memref<10x32xbf16, #tpu.memory_space<vmem>>, vector<10x32xbf16>
    %138 = arith.truncf %136 : vector<64x32xf32> to vector<64x32xbf16>
    %cst_60 = arith.constant dense<0.000000e+00> : vector<10x64xf32>
    %139 = tpu.matmul %137, %138, %cst_60 {dimension_numbers = #tpu.dot_dimension_numbers<[1], [1], [0], [0], [0, 0, 1, 0], [], []>} : vector<10x32xbf16>, vector<64x32xbf16>, vector<10x64xf32> -> vector<10x64xf32>
    %cst_61 = arith.constant dense<0xFF800000> : vector<10xf32>
    %140 = vector.multi_reduction <maximumf>, %139, %cst_61 [1] : vector<10x64xf32> to vector<10xf32>
    %141 = vector.shape_cast %140 : vector<10xf32> to vector<10x1xf32>
    %142 = vector.broadcast %141 : vector<10x1xf32> to vector<10x64xf32>
    %143 = arith.subf %139, %142 : vector<10x64xf32>
    %144 = math.exp %143 : vector<10x64xf32>
    %cst_62 = arith.constant dense<0.000000e+00> : vector<10xf32>
    %145 = vector.multi_reduction <add>, %144, %cst_62 [1] : vector<10x64xf32> to vector<10xf32>
    %146 = vector.shape_cast %145 : vector<10xf32> to vector<10x1xf32>
    %147 = tpu.reciprocal %146 {approx = true} : vector<10x1xf32> -> vector<10x1xf32>
    %148 = vector.broadcast %147 : vector<10x1xf32> to vector<10x64xf32>
    %149 = arith.mulf %144, %148 : vector<10x64xf32>
    %150 = arith.truncf %149 : vector<10x64xf32> to vector<10x64xbf16>
    %151 = arith.truncf %136 : vector<64x32xf32> to vector<64x32xbf16>
    %cst_63 = arith.constant dense<0.000000e+00> : vector<10x32xf32>
    %152 = tpu.matmul %150, %151, %cst_63 {dimension_numbers = #tpu.dot_dimension_numbers<[1], [0], [0], [1], [0, 0, 1, 1], [], []>} : vector<10x64xbf16>, vector<64x32xbf16>, vector<10x32xf32> -> vector<10x32xf32>
    %153 = arith.addf %1, %136 : vector<64x32xf32>
    %c0_64 = arith.constant 0 : index
    %c0_65 = arith.constant 0 : index
    %154 = vector.load %arg22[%c0_64, %c0_65] : memref<64x32xf32, #tpu.memory_space<vmem>>, vector<64x32xf32>
    tpu.vector_store %arg22[%c0_64, %c0_65], %153 {strides = array<i32>} : memref<64x32xf32, #tpu.memory_space<vmem>>, vector<64x32xf32>,
    %c0_66 = arith.constant 0 : index
    %c0_67 = arith.constant 0 : index
    %155 = vector.load %arg22[%c0_66, %c0_67] : memref<64x32xf32, #tpu.memory_space<vmem>>, vector<10x32xf32>
    %156 = arith.addf %155, %152 : vector<10x32xf32>
    %c0_68 = arith.constant 0 : index
    %c0_69 = arith.constant 0 : index
    %157 = vector.load %arg22[%c0_68, %c0_69] : memref<64x32xf32, #tpu.memory_space<vmem>>, vector<10x32xf32>
    tpu.vector_store %arg22[%c0_68, %c0_69], %156 {strides = array<i32>} : memref<64x32xf32, #tpu.memory_space<vmem>>, vector<10x32xf32>,
    %c0_70 = arith.constant 0 : index
    %c0_71 = arith.constant 0 : index
    %158 = vector.load %arg22[%c0_70, %c0_71] : memref<64x32xf32, #tpu.memory_space<vmem>>, vector<64x32xf32>
    %c0_72 = arith.constant 0 : index
    %c0_73 = arith.constant 0 : index
    %159 = vector.load %arg12[%c0_72, %c0_73] : memref<1x32xf32, #tpu.memory_space<vmem>>, vector<1x32xf32>
    %c0_74 = arith.constant 0 : index
    %c0_75 = arith.constant 0 : index
    %160 = vector.load %arg13[%c0_74, %c0_75] : memref<1x32xf32, #tpu.memory_space<vmem>>, vector<1x32xf32>
    %cst_76 = arith.constant dense<0.000000e+00> : vector<64xf32>
    %161 = vector.multi_reduction <add>, %158, %cst_76 [1] : vector<64x32xf32> to vector<64xf32>
    %162 = vector.shape_cast %161 : vector<64xf32> to vector<64x1xf32>
    %cst_77 = arith.constant 3.200000e+01 : f32
    %163 = vector.broadcast %cst_77 : f32 to vector<64x1xf32>
    %164 = arith.divf %162, %163 : vector<64x1xf32>
    %165 = vector.broadcast %164 : vector<64x1xf32> to vector<64x32xf32>
    %166 = arith.subf %158, %165 : vector<64x32xf32>
    %167 = arith.mulf %166, %166 : vector<64x32xf32>
    %cst_78 = arith.constant dense<0.000000e+00> : vector<64xf32>
    %168 = vector.multi_reduction <add>, %167, %cst_78 [1] : vector<64x32xf32> to vector<64xf32>
    %169 = vector.shape_cast %168 : vector<64xf32> to vector<64x1xf32>
    %cst_79 = arith.constant 3.200000e+01 : f32
    %170 = vector.broadcast %cst_79 : f32 to vector<64x1xf32>
    %171 = arith.divf %169, %170 : vector<64x1xf32>
    %172 = vector.broadcast %164 : vector<64x1xf32> to vector<64x32xf32>
    %173 = arith.subf %158, %172 : vector<64x32xf32>
    %cst_80 = arith.constant 9.99999974E-6 : f32
    %174 = vector.broadcast %cst_80 : f32 to vector<64x1xf32>
    %175 = arith.addf %171, %174 : vector<64x1xf32>
    %176 = math.rsqrt %175 : vector<64x1xf32>
    %177 = vector.broadcast %176 : vector<64x1xf32> to vector<64x32xf32>
    %178 = arith.mulf %173, %177 : vector<64x32xf32>
    %179 = vector.broadcast %159 : vector<1x32xf32> to vector<64x32xf32>
    %180 = arith.mulf %178, %179 : vector<64x32xf32>
    %181 = vector.broadcast %160 : vector<1x32xf32> to vector<64x32xf32>
    %182 = arith.addf %180, %181 : vector<64x32xf32>
    %183 = arith.truncf %182 : vector<64x32xf32> to vector<64x32xbf16>
    %c0_81 = arith.constant 0 : index
    %c0_82 = arith.constant 0 : index
    %184 = vector.load %arg14[%c0_81, %c0_82] : memref<32x128xbf16, #tpu.memory_space<vmem>>, vector<32x128xbf16>
    %cst_83 = arith.constant dense<0.000000e+00> : vector<64x128xf32>
    %185 = tpu.matmul %183, %184, %cst_83 {dimension_numbers = #tpu.dot_dimension_numbers<[1], [0], [0], [1], [0, 0, 1, 1], [], []>} : vector<64x32xbf16>, vector<32x128xbf16>, vector<64x128xf32> -> vector<64x128xf32>
    %c0_84 = arith.constant 0 : index
    %c0_85 = arith.constant 0 : index
    %186 = vector.load %arg15[%c0_84, %c0_85] : memref<1x128xf32, #tpu.memory_space<vmem>>, vector<1x128xf32>
    %187 = vector.broadcast %186 : vector<1x128xf32> to vector<64x128xf32>
    %188 = arith.addf %185, %187 : vector<64x128xf32>
    %cst_86 = arith.constant 5.000000e-01 : f32
    %189 = vector.broadcast %cst_86 : f32 to vector<64x128xf32>
    %190 = arith.mulf %189, %188 : vector<64x128xf32>
    %cst_87 = arith.constant 4.471500e-02 : f32
    %191 = vector.broadcast %cst_87 : f32 to vector<64x128xf32>
    %192 = arith.mulf %191, %188 : vector<64x128xf32>
    %193 = arith.mulf %192, %188 : vector<64x128xf32>
    %194 = arith.mulf %193, %188 : vector<64x128xf32>
    %195 = arith.addf %188, %194 : vector<64x128xf32>
    %cst_88 = arith.constant 0.797884583 : f32
    %196 = vector.broadcast %cst_88 : f32 to vector<64x128xf32>
    %197 = arith.mulf %196, %195 : vector<64x128xf32>
    %198 = math.tanh %197 : vector<64x128xf32>
    %cst_89 = arith.constant 1.000000e+00 : f32
    %199 = vector.broadcast %cst_89 : f32 to vector<64x128xf32>
    %200 = arith.addf %199, %198 : vector<64x128xf32>
    %201 = arith.mulf %190, %200 : vector<64x128xf32>
    %202 = arith.truncf %201 : vector<64x128xf32> to vector<64x128xbf16>
    %c0_90 = arith.constant 0 : index
    %c0_91 = arith.constant 0 : index
    %203 = vector.load %arg16[%c0_90, %c0_91] : memref<128x32xbf16, #tpu.memory_space<vmem>>, vector<128x32xbf16>
    %cst_92 = arith.constant dense<0.000000e+00> : vector<64x32xf32>
    %204 = tpu.matmul %202, %203, %cst_92 {dimension_numbers = #tpu.dot_dimension_numbers<[1], [0], [0], [1], [0, 0, 1, 1], [], []>} : vector<64x128xbf16>, vector<128x32xbf16>, vector<64x32xf32> -> vector<64x32xf32>
    %c0_93 = arith.constant 0 : index
    %c0_94 = arith.constant 0 : index
    %205 = vector.load %arg17[%c0_93, %c0_94] : memref<1x32xf32, #tpu.memory_space<vmem>>, vector<1x32xf32>
    %206 = vector.broadcast %205 : vector<1x32xf32> to vector<64x32xf32>
    %207 = arith.addf %204, %206 : vector<64x32xf32>
    %208 = arith.truncf %158 : vector<64x32xf32> to vector<64x32xbf16>
    %c0_95 = arith.constant 0 : index
    %c0_96 = arith.constant 0 : index
    %209 = vector.load %arg18[%c0_95, %c0_96] : memref<32x32xbf16, #tpu.memory_space<vmem>>, vector<32x32xbf16>
    %cst_97 = arith.constant dense<0.000000e+00> : vector<64x32xf32>
    %210 = tpu.matmul %208, %209, %cst_97 {dimension_numbers = #tpu.dot_dimension_numbers<[1], [0], [0], [1], [0, 0, 1, 1], [], []>} : vector<64x32xbf16>, vector<32x32xbf16>, vector<64x32xf32> -> vector<64x32xf32>
    %c0_98 = arith.constant 0 : index
    %c0_99 = arith.constant 0 : index
    %211 = vector.load %arg19[%c0_98, %c0_99] : memref<1x32xf32, #tpu.memory_space<vmem>>, vector<1x32xf32>
    %212 = vector.broadcast %211 : vector<1x32xf32> to vector<64x32xf32>
    %213 = arith.addf %210, %212 : vector<64x32xf32>
    %214 = arith.addf %158, %207 : vector<64x32xf32>
    %215 = arith.addf %214, %213 : vector<64x32xf32>
    %c0_100 = arith.constant 0 : index
    %c0_101 = arith.constant 0 : index
    %c0_102 = arith.constant 0 : index
    %216 = vector.load %arg20[%c0_100, %c0_101, %c0_102] : memref<1x64x32xf32, #tpu.memory_space<vmem>>, vector<1x64x32xf32>
    %217 = vector.shape_cast %216 : vector<1x64x32xf32> to vector<64x32xf32>
    %218 = vector.shape_cast %215 : vector<64x32xf32> to vector<1x64x32xf32>
    tpu.vector_store %arg20[%c0_100, %c0_101, %c0_102], %218 {strides = array<i32>} : memref<1x64x32xf32, #tpu.memory_space<vmem>>, vector<1x64x32xf32>,
    return
  }
  func.func @transform_0(%arg0: i32) -> (i32, i32, i32) {
    %c0_i32 = arith.constant 0 : i32
    %c0_i32_0 = arith.constant 0 : i32
    %c0_i32_1 = arith.constant 0 : i32
    return %arg0, %c0_i32, %c0_i32_0 : i32, i32, i32
  }
  func.func @transform_1(%arg0: i32) -> (i32, i32) {
    %c0_i32 = arith.constant 0 : i32
    %c0_i32_0 = arith.constant 0 : i32
    %c0_i32_1 = arith.constant 0 : i32
    return %c0_i32, %c0_i32_0 : i32, i32
  }
  func.func @transform_2(%arg0: i32) -> (i32, i32) {
    %c0_i32 = arith.constant 0 : i32
    %c0_i32_0 = arith.constant 0 : i32
    %c0_i32_1 = arith.constant 0 : i32
    return %c0_i32, %c0_i32_0 : i32, i32
  }
  func.func @transform_3(%arg0: i32) -> (i32, i32) {
    %c0_i32 = arith.constant 0 : i32
    %c0_i32_0 = arith.constant 0 : i32
    %c0_i32_1 = arith.constant 0 : i32
    return %c0_i32, %c0_i32_0 : i32, i32
  }
  func.func @transform_4(%arg0: i32) -> (i32, i32) {
    %c0_i32 = arith.constant 0 : i32
    %c0_i32_0 = arith.constant 0 : i32
    %c0_i32_1 = arith.constant 0 : i32
    return %c0_i32, %c0_i32_0 : i32, i32
  }
  func.func @transform_5(%arg0: i32) -> (i32, i32) {
    %c0_i32 = arith.constant 0 : i32
    %c0_i32_0 = arith.constant 0 : i32
    %c0_i32_1 = arith.constant 0 : i32
    return %c0_i32, %c0_i32_0 : i32, i32
  }
  func.func @transform_6(%arg0: i32) -> (i32, i32) {
    %c0_i32 = arith.constant 0 : i32
    %c0_i32_0 = arith.constant 0 : i32
    %c0_i32_1 = arith.constant 0 : i32
    return %c0_i32, %c0_i32_0 : i32, i32
  }
  func.func @transform_7(%arg0: i32) -> (i32, i32) {
    %c0_i32 = arith.constant 0 : i32
    %c0_i32_0 = arith.constant 0 : i32
    %c0_i32_1 = arith.constant 0 : i32
    return %c0_i32, %c0_i32_0 : i32, i32
  }
  func.func @transform_8(%arg0: i32) -> (i32, i32) {
    %c0_i32 = arith.constant 0 : i32
    %c0_i32_0 = arith.constant 0 : i32
    %c0_i32_1 = arith.constant 0 : i32
    return %c0_i32, %c0_i32_0 : i32, i32
  }
  func.func @transform_9(%arg0: i32) -> (i32, i32, i32) {
    %c0_i32 = arith.constant 0 : i32
    %c0_i32_0 = arith.constant 0 : i32
    %c0_i32_1 = arith.constant 0 : i32
    %c0_i32_2 = arith.constant 0 : i32
    return %c0_i32, %c0_i32_0, %c0_i32_1 : i32, i32, i32
  }
  func.func @transform_10(%arg0: i32) -> (i32, i32) {
    %c0_i32 = arith.constant 0 : i32
    %c0_i32_0 = arith.constant 0 : i32
    %c0_i32_1 = arith.constant 0 : i32
    return %c0_i32, %c0_i32_0 : i32, i32
  }
  func.func @transform_11(%arg0: i32) -> (i32, i32) {
    %c0_i32 = arith.constant 0 : i32
    %c0_i32_0 = arith.constant 0 : i32
    %c0_i32_1 = arith.constant 0 : i32
    return %c0_i32, %c0_i32_0 : i32, i32
  }
  func.func @transform_12(%arg0: i32) -> (i32, i32) {
    %c0_i32 = arith.constant 0 : i32
    %c0_i32_0 = arith.constant 0 : i32
    %c0_i32_1 = arith.constant 0 : i32
    return %c0_i32, %c0_i32_0 : i32, i32
  }
  func.func @transform_13(%arg0: i32) -> (i32, i32) {
    %c0_i32 = arith.constant 0 : i32
    %c0_i32_0 = arith.constant 0 : i32
    %c0_i32_1 = arith.constant 0 : i32
    return %c0_i32, %c0_i32_0 : i32, i32
  }
  func.func @transform_14(%arg0: i32) -> (i32, i32) {
    %c0_i32 = arith.constant 0 : i32
    %c0_i32_0 = arith.constant 0 : i32
    %c0_i32_1 = arith.constant 0 : i32
    return %c0_i32, %c0_i32_0 : i32, i32
  }
  func.func @transform_15(%arg0: i32) -> (i32, i32) {
    %c0_i32 = arith.constant 0 : i32
    %c0_i32_0 = arith.constant 0 : i32
    %c0_i32_1 = arith.constant 0 : i32
    return %c0_i32, %c0_i32_0 : i32, i32
  }
  func.func @transform_16(%arg0: i32) -> (i32, i32) {
    %c0_i32 = arith.constant 0 : i32
    %c0_i32_0 = arith.constant 0 : i32
    %c0_i32_1 = arith.constant 0 : i32
    return %c0_i32, %c0_i32_0 : i32, i32
  }
  func.func @transform_17(%arg0: i32) -> (i32, i32) {
    %c0_i32 = arith.constant 0 : i32
    %c0_i32_0 = arith.constant 0 : i32
    %c0_i32_1 = arith.constant 0 : i32
    return %c0_i32, %c0_i32_0 : i32, i32
  }
  func.func @transform_18(%arg0: i32) -> (i32, i32) {
    %c0_i32 = arith.constant 0 : i32
    %c0_i32_0 = arith.constant 0 : i32
    %c0_i32_1 = arith.constant 0 : i32
    return %c0_i32, %c0_i32_0 : i32, i32
  }
  func.func @transform_19(%arg0: i32) -> (i32, i32, i32) {
    %c0_i32 = arith.constant 0 : i32
    %c0_i32_0 = arith.constant 0 : i32
    %c0_i32_1 = arith.constant 0 : i32
    return %arg0, %c0_i32, %c0_i32_0 : i32, i32, i32
  }
}

</mosaic_0001>

<llo_original>
// kernel: _lambda_.1
$region0: #{_lambda_.1}
  #allocation0 [shape = 'u32[]', space=smem, size = 0x4, offset = 0x4, fixed_abs, tag = 'smem constant byte address 0x4 - core index']
  #allocation1 [shape = 'u32[144,128]{1,0:T(1,128)}', space=vmem, size = 0x12000, scoped, tag = 'internal scratch']
  #allocation2 [shape = 'f32[64,32]{1,0:T(8,128)}', space=vmem, size = 0x8000, scoped, tag = 'scratch operand']
  #allocation3 [shape = 'f32[64,32]{1,0:T(8,128)}', space=vmem, size = 0x8000, scoped, tag = 'scratch operand']
  %s0 = inlined_call_operand.vmem [shape: f32[2,64,32], index: 0, kind: input, shape index: {}]
  %s1 = inlined_call_operand.vmem [shape: bf16[64,64], index: 1, kind: input, shape index: {}]
  %s2 = inlined_call_operand.vmem [shape: bf16[64,64], index: 2, kind: input, shape index: {}]
  %s3 = inlined_call_operand.hbm [shape: f32[1,32], index: 3, kind: input, shape index: {}]
  %s4 = inlined_call_operand.hbm [shape: f32[1,32], index: 4, kind: input, shape index: {}]
  %s5 = inlined_call_operand.vmem [shape: bf16[32,96], index: 5, kind: input, shape index: {}]
  %s6 = inlined_call_operand.hbm [shape: f32[1,96], index: 6, kind: input, shape index: {}]
  %s7 = inlined_call_operand.vmem [shape: bf16[32,32], index: 7, kind: input, shape index: {}]
  %s8 = inlined_call_operand.vmem [shape: f32[1,32], index: 8, kind: input, shape index: {}]
  %s9 = inlined_call_operand.hbm [shape: f32[4,64,64], index: 9, kind: input, shape index: {}]
  %s10 = inlined_call_operand.vmem [shape: bf16[10,32], index: 10, kind: input, shape index: {}]
  %s11 = inlined_call_operand.vmem [shape: f32[1,32], index: 11, kind: input, shape index: {}]
  %s12 = inlined_call_operand.vmem [shape: f32[1,32], index: 12, kind: input, shape index: {}]
  %s13 = inlined_call_operand.vmem [shape: bf16[32,128], index: 13, kind: input, shape index: {}]
  %s14 = inlined_call_operand.vmem [shape: f32[1,128], index: 14, kind: input, shape index: {}]
  %s15 = inlined_call_operand.vmem [shape: bf16[128,32], index: 15, kind: input, shape index: {}]
  %s16 = inlined_call_operand.vmem [shape: f32[1,32], index: 16, kind: input, shape index: {}]
  %s17 = inlined_call_operand.vmem [shape: bf16[32,32], index: 17, kind: input, shape index: {}]
  %s18 = inlined_call_operand.vmem [shape: f32[1,32], index: 18, kind: input, shape index: {}]
  %s19 = inlined_call_operand.vmem [shape: f32[2,64,32], index: 19, kind: output, shape index: {}]
  %s20 = sld [smem:[#allocation0]]
  $region125: #{_lambda_.1} parent=0
    _
  %s22 = ssub.s32 1, %s20
  %s23 = scalar_select 0, %s22, %s20
  $region1: #{_lambda_.1} parent=0
    #allocation4 [shape = 'u8[512]{0}', space=vmem, size = 0x400, scoped, tag = 'input window, operand 3, single buffered']
    #allocation5 [shape = 's32[2]{0}', space=sflag, size = 0x8, scoped, tag = 'scoped memory for _lambda_.1']
    #allocation6 [shape = 'u8[512]{0}', space=vmem, size = 0x400, scoped, tag = 'input window, operand 4, single buffered']
    #allocation7 [shape = 's32[1]{0}', space=sflag, size = 0x4, scoped, tag = 'scoped memory for _lambda_.1']
    #allocation8 [shape = 'u8[512]{0}', space=vmem, size = 0x400, scoped, tag = 'input window, operand 6, single buffered']
    #allocation9 [shape = 'u8[131072]{0}', space=vmem, size = 0x20000, scoped, tag = 'input window, operand 9, single buffered']
    #allocation10 [shape = 's32[1]{0}', space=sflag, size = 0x4, scoped, tag = 'scoped memory for _lambda_.1']
    %24 = vsyncpa [#allocation5], 0
    %25 = vsyncpa [#allocation7], 0
    %26 = vsyncpa [#allocation10], 0
    loop: start=0, step=1, limit=4
    $region2: #{_lambda_.1} parent=1 // loop_pre_header
      _
    $region3: #{_lambda_.1} parent=1 // loop_header
      %s28 = sphi 0, %s32
      %p29 = scmp.ge.s32.totalorder %s28, 4
      %s38 = sphi 0, %s40
      %s41 = sphi 0, %s38
      %s42 = sphi 0, %s41
      %s58 = sphi 0, %s42
      %s62 = sphi 0, %s62
      %s64 = sphi 0, %s62
      %s65 = sphi 0, %s64
      %s79 = sphi 0, %s65
      %s83 = sphi 0, %s83
      %s85 = sphi 0, %s83
      %s86 = sphi 0, %s85
      %s100 = sphi 0, %s86
      %s104 = sphi 0, %s104
      %s106 = sphi 0, %s104
      %s107 = sphi 0, %s106
      %s121 = sphi 0, %s107
      %s125 = sphi 0, %s125
      %s127 = sphi 0, %s125
      %s128 = sphi 0, %s127
      %s142 = sphi 0, %s128
      %s146 = sphi 0, %s146
      %s148 = sphi 0, %s146
      %s149 = sphi 0, %s148
      %s163 = sphi 0, %s149
      %s167 = sphi 0, %s167
      %s169 = sphi 0, %s167
      %s170 = sphi 0, %s169
      %s184 = sphi 0, %s170
      %s188 = sphi 0, %s188
      %s190 = sphi 0, %s188
      %s191 = sphi 0, %s190
      %s205 = sphi 0, %s191
      %s209 = sphi 0, %s209
      %s211 = sphi 0, %s209
      %s212 = sphi 0, %s211
      %s226 = sphi 0, %s212
      %s230 = sphi 0, %s230
      %s232 = sphi 0, %s230
      %s233 = sphi 0, %s232
      %s247 = sphi 0, %s233
      %s251 = sphi 0, %s251
      %s253 = sphi 0, %s251
      %s254 = sphi 0, %s253
      %s268 = sphi 0, %s254
      %s272 = sphi 0, %s272
      %s274 = sphi 0, %s272
      %s275 = sphi 0, %s274
      %s289 = sphi 0, %s275
      %s293 = sphi 0, %s293
      %s295 = sphi 0, %s293
      %s296 = sphi 0, %s295
      %s310 = sphi 0, %s296
      %s314 = sphi 0, %s314
      %s316 = sphi 0, %s314
      %s317 = sphi 0, %s316
      %s331 = sphi 0, %s317
      %s335 = sphi 0, %s335
      %s337 = sphi 0, %s335
      %s338 = sphi 0, %s337
      %s352 = sphi 0, %s338
      %s356 = sphi 0, %s356
      %s358 = sphi 0, %s356
      %s359 = sphi 0, %s358
      %s373 = sphi 0, %s359
      %s377 = sphi 0, %s377
      %s379 = sphi 0, %s377
      %s380 = sphi 0, %s379
      %s394 = sphi 0, %s380
      %s398 = sphi 0, %s398
      %s400 = sphi 0, %s398
      %s401 = sphi 0, %s400
      %s415 = sphi 0, %s401
      %s419 = sphi 0, %s419
      %s421 = sphi 0, %s419
      %s422 = sphi 0, %s421
      %s436 = sphi 0, %s422
      %s442 = sphi 0, %s444
      %s445 = sphi 0, %s442
      %s446 = sphi 0, %s445
      %s462 = sphi 0, %s446
    $region4: #{_lambda_.1} parent=1 // loop_header_branch
      %31 = sbr.rel (%p29) target = $region8
    $region5: #{_lambda_.1} parent=1 // loop_body
      %s33 = ssub.s32 %s28, 1
      %s34 = ssub.s32 %s28, 2
      %s35 = sadd.s32 %s28, 1
      %s36 = ssub.s32 %s28, %s35
      %p37 = scmp.eq.s32.totalorder %s36, 0
      %s39 = sadd.s32 %s38, 1
      %s40 = scalar_select %p37, %s38, %s39
      %p43 = pneg %p37
      %p44 = scmp.eq.s32.totalorder %s28, 1
      %p45 = por %p43, %p44
      %p46 = scmp.ne.s32.totalorder %s38, %s41
      %p47 = scmp.eq.s32.totalorder %s28, 0
      %p48 = por %p46, %p47
      %p49 = scmp.ne.s32.totalorder %s38, %s41
      %p50 = scmp.eq.s32.totalorder %s33, 1
      %p51 = por %p49, %p50
      %p52 = scmp.ne.s32.totalorder %s41, %s42
      %p53 = scmp.eq.s32.totalorder %s33, 0
      %p54 = por %p52, %p53
      %p55 = scmp.ne.s32.totalorder %s41, %s42
      %p56 = scmp.eq.s32.totalorder %s34, 1
      %p57 = por %p55, %p56
      %p59 = scmp.ne.s32.totalorder %s42, %s58
      %p60 = scmp.eq.s32.totalorder %s34, 0
      %p61 = por %p59, %p60
      %s63 = sadd.s32 %s62, 1
      %p66 = scmp.eq.s32.totalorder %s28, 1
      %p67 = scmp.ne.s32.totalorder %s62, %s64
      %p68 = scmp.eq.s32.totalorder %s28, 0
      %p69 = por %p67, %p68
      %p70 = scmp.ne.s32.totalorder %s62, %s64
      %p71 = scmp.eq.s32.totalorder %s33, 1
      %p72 = por %p70, %p71
      %p73 = scmp.ne.s32.totalorder %s64, %s65
      %p74 = scmp.eq.s32.totalorder %s33, 0
      %p75 = por %p73, %p74
      %p76 = scmp.ne.s32.totalorder %s64, %s65
      %p77 = scmp.eq.s32.totalorder %s34, 1
      %p78 = por %p76, %p77
      %p80 = scmp.ne.s32.totalorder %s65, %s79
      %p81 = scmp.eq.s32.totalorder %s34, 0
      %p82 = por %p80, %p81
      %s84 = sadd.s32 %s83, 1
      %p87 = scmp.eq.s32.totalorder %s28, 1
      %p88 = scmp.ne.s32.totalorder %s83, %s85
      %p89 = scmp.eq.s32.totalorder %s28, 0
      %p90 = por %p88, %p89
      %p91 = scmp.ne.s32.totalorder %s83, %s85
      %p92 = scmp.eq.s32.totalorder %s33, 1
      %p93 = por %p91, %p92
      %p94 = scmp.ne.s32.totalorder %s85, %s86
      %p95 = scmp.eq.s32.totalorder %s33, 0
      %p96 = por %p94, %p95
      %p97 = scmp.ne.s32.totalorder %s85, %s86
      %p98 = scmp.eq.s32.totalorder %s34, 1
      %p99 = por %p97, %p98
      %p101 = scmp.ne.s32.totalorder %s86, %s100
      %p102 = scmp.eq.s32.totalorder %s34, 0
      %p103 = por %p101, %p102
      %s105 = sadd.s32 %s104, 1
      %p108 = scmp.eq.s32.totalorder %s28, 1
      %p109 = scmp.ne.s32.totalorder %s104, %s106
      %p110 = scmp.eq.s32.totalorder %s28, 0
      %p111 = por %p109, %p110
      %p112 = scmp.ne.s32.totalorder %s104, %s106
      %p113 = scmp.eq.s32.totalorder %s33, 1
      %p114 = por %p112, %p113
      %p115 = scmp.ne.s32.totalorder %s106, %s107
      %p116 = scmp.eq.s32.totalorder %s33, 0
      %p117 = por %p115, %p116
      %p118 = scmp.ne.s32.totalorder %s106, %s107
      %p119 = scmp.eq.s32.totalorder %s34, 1
      %p120 = por %p118, %p119
      %p122 = scmp.ne.s32.totalorder %s107, %s121
      %p123 = scmp.eq.s32.totalorder %s34, 0
      %p124 = por %p122, %p123
      %s126 = sadd.s32 %s125, 1
      %p129 = scmp.eq.s32.totalorder %s28, 1
      %p130 = scmp.ne.s32.totalorder %s125, %s127
      %p131 = scmp.eq.s32.totalorder %s28, 0
      %p132 = por %p130, %p131
      %p133 = scmp.ne.s32.totalorder %s125, %s127
      %p134 = scmp.eq.s32.totalorder %s33, 1
      %p135 = por %p133, %p134
      %p136 = scmp.ne.s32.totalorder %s127, %s128
      %p137 = scmp.eq.s32.totalorder %s33, 0
      %p138 = por %p136, %p137
      %p139 = scmp.ne.s32.totalorder %s127, %s128
      %p140 = scmp.eq.s32.totalorder %s34, 1
      %p141 = por %p139, %p140
      %p143 = scmp.ne.s32.totalorder %s128, %s142
      %p144 = scmp.eq.s32.totalorder %s34, 0
      %p145 = por %p143, %p144
      %s147 = sadd.s32 %s146, 1
      %p150 = scmp.eq.s32.totalorder %s28, 1
      %p151 = scmp.ne.s32.totalorder %s146, %s148
      %p152 = scmp.eq.s32.totalorder %s28, 0
      %p153 = por %p151, %p152
      %p154 = scmp.ne.s32.totalorder %s146, %s148
      %p155 = scmp.eq.s32.totalorder %s33, 1
      %p156 = por %p154, %p155
      %p157 = scmp.ne.s32.totalorder %s148, %s149
      %p158 = scmp.eq.s32.totalorder %s33, 0
      %p159 = por %p157, %p158
      %p160 = scmp.ne.s32.totalorder %s148, %s149
      %p161 = scmp.eq.s32.totalorder %s34, 1
      %p162 = por %p160, %p161
      %p164 = scmp.ne.s32.totalorder %s149, %s163
      %p165 = scmp.eq.s32.totalorder %s34, 0
      %p166 = por %p164, %p165
      %s168 = sadd.s32 %s167, 1
      %p171 = scmp.eq.s32.totalorder %s28, 1
      %p172 = scmp.ne.s32.totalorder %s167, %s169
      %p173 = scmp.eq.s32.totalorder %s28, 0
      %p174 = por %p172, %p173
      %p175 = scmp.ne.s32.totalorder %s167, %s169
      %p176 = scmp.eq.s32.totalorder %s33, 1
      %p177 = por %p175, %p176
      %p178 = scmp.ne.s32.totalorder %s169, %s170
      %p179 = scmp.eq.s32.totalorder %s33, 0
      %p180 = por %p178, %p179
      %p181 = scmp.ne.s32.totalorder %s169, %s170
      %p182 = scmp.eq.s32.totalorder %s34, 1
      %p183 = por %p181, %p182
      %p185 = scmp.ne.s32.totalorder %s170, %s184
      %p186 = scmp.eq.s32.totalorder %s34, 0
      %p187 = por %p185, %p186
      %s189 = sadd.s32 %s188, 1
      %p192 = scmp.eq.s32.totalorder %s28, 1
      %p193 = scmp.ne.s32.totalorder %s188, %s190
      %p194 = scmp.eq.s32.totalorder %s28, 0
      %p195 = por %p193, %p194
      %p196 = scmp.ne.s32.totalorder %s188, %s190
      %p197 = scmp.eq.s32.totalorder %s33, 1
      %p198 = por %p196, %p197
      %p199 = scmp.ne.s32.totalorder %s190, %s191
      %p200 = scmp.eq.s32.totalorder %s33, 0
      %p201 = por %p199, %p200
      %p202 = scmp.ne.s32.totalorder %s190, %s191
      %p203 = scmp.eq.s32.totalorder %s34, 1
      %p204 = por %p202, %p203
      %p206 = scmp.ne.s32.totalorder %s191, %s205
      %p207 = scmp.eq.s32.totalorder %s34, 0
      %p208 = por %p206, %p207
      %s210 = sadd.s32 %s209, 1
      %p213 = scmp.eq.s32.totalorder %s28, 1
      %p214 = scmp.ne.s32.totalorder %s209, %s211
      %p215 = scmp.eq.s32.totalorder %s28, 0
      %p216 = por %p214, %p215
      %p217 = scmp.ne.s32.totalorder %s209, %s211
      %p218 = scmp.eq.s32.totalorder %s33, 1
      %p219 = por %p217, %p218
      %p220 = scmp.ne.s32.totalorder %s211, %s212
      %p221 = scmp.eq.s32.totalorder %s33, 0
      %p222 = por %p220, %p221
      %p223 = scmp.ne.s32.totalorder %s211, %s212
      %p224 = scmp.eq.s32.totalorder %s34, 1
      %p225 = por %p223, %p224
      %p227 = scmp.ne.s32.totalorder %s212, %s226
      %p228 = scmp.eq.s32.totalorder %s34, 0
      %p229 = por %p227, %p228
      %s231 = sadd.s32 %s230, 1
      %p234 = scmp.eq.s32.totalorder %s28, 1
      %p235 = scmp.ne.s32.totalorder %s230, %s232
      %p236 = scmp.eq.s32.totalorder %s28, 0
      %p237 = por %p235, %p236
      %p238 = scmp.ne.s32.totalorder %s230, %s232
      %p239 = scmp.eq.s32.totalorder %s33, 1
      %p240 = por %p238, %p239
      %p241 = scmp.ne.s32.totalorder %s232, %s233
      %p242 = scmp.eq.s32.totalorder %s33, 0
      %p243 = por %p241, %p242
      %p244 = scmp.ne.s32.totalorder %s232, %s233
      %p245 = scmp.eq.s32.totalorder %s34, 1
      %p246 = por %p244, %p245
      %p248 = scmp.ne.s32.totalorder %s233, %s247
      %p249 = scmp.eq.s32.totalorder %s34, 0
      %p250 = por %p248, %p249
      %s252 = sadd.s32 %s251, 1
      %p255 = scmp.eq.s32.totalorder %s28, 1
      %p256 = scmp.ne.s32.totalorder %s251, %s253
      %p257 = scmp.eq.s32.totalorder %s28, 0
      %p258 = por %p256, %p257
      %p259 = scmp.ne.s32.totalorder %s251, %s253
      %p260 = scmp.eq.s32.totalorder %s33, 1
      %p261 = por %p259, %p260
      %p262 = scmp.ne.s32.totalorder %s253, %s254
      %p263 = scmp.eq.s32.totalorder %s33, 0
      %p264 = por %p262, %p263
      %p265 = scmp.ne.s32.totalorder %s253, %s254
      %p266 = scmp.eq.s32.totalorder %s34, 1
      %p267 = por %p265, %p266
      %p269 = scmp.ne.s32.totalorder %s254, %s268
      %p270 = scmp.eq.s32.totalorder %s34, 0
      %p271 = por %p269, %p270
      %s273 = sadd.s32 %s272, 1
      %p276 = scmp.eq.s32.totalorder %s28, 1
      %p277 = scmp.ne.s32.totalorder %s272, %s274
      %p278 = scmp.eq.s32.totalorder %s28, 0
      %p279 = por %p277, %p278
      %p280 = scmp.ne.s32.totalorder %s272, %s274
      %p281 = scmp.eq.s32.totalorder %s33, 1
      %p282 = por %p280, %p281
      %p283 = scmp.ne.s32.totalorder %s274, %s275
      %p284 = scmp.eq.s32.totalorder %s33, 0
      %p285 = por %p283, %p284
      %p286 = scmp.ne.s32.totalorder %s274, %s275
      %p287 = scmp.eq.s32.totalorder %s34, 1
      %p288 = por %p286, %p287
      %p290 = scmp.ne.s32.totalorder %s275, %s289
      %p291 = scmp.eq.s32.totalorder %s34, 0
      %p292 = por %p290, %p291
      %s294 = sadd.s32 %s293, 1
      %p297 = scmp.eq.s32.totalorder %s28, 1
      %p298 = scmp.ne.s32.totalorder %s293, %s295
      %p299 = scmp.eq.s32.totalorder %s28, 0
      %p300 = por %p298, %p299
      %p301 = scmp.ne.s32.totalorder %s293, %s295
      %p302 = scmp.eq.s32.totalorder %s33, 1
      %p303 = por %p301, %p302
      %p304 = scmp.ne.s32.totalorder %s295, %s296
      %p305 = scmp.eq.s32.totalorder %s33, 0
      %p306 = por %p304, %p305
      %p307 = scmp.ne.s32.totalorder %s295, %s296
      %p308 = scmp.eq.s32.totalorder %s34, 1
      %p309 = por %p307, %p308
      %p311 = scmp.ne.s32.totalorder %s296, %s310
      %p312 = scmp.eq.s32.totalorder %s34, 0
      %p313 = por %p311, %p312
      %s315 = sadd.s32 %s314, 1
      %p318 = scmp.eq.s32.totalorder %s28, 1
      %p319 = scmp.ne.s32.totalorder %s314, %s316
      %p320 = scmp.eq.s32.totalorder %s28, 0
      %p321 = por %p319, %p320
      %p322 = scmp.ne.s32.totalorder %s314, %s316
      %p323 = scmp.eq.s32.totalorder %s33, 1
      %p324 = por %p322, %p323
      %p325 = scmp.ne.s32.totalorder %s316, %s317
      %p326 = scmp.eq.s32.totalorder %s33, 0
      %p327 = por %p325, %p326
      %p328 = scmp.ne.s32.totalorder %s316, %s317
      %p329 = scmp.eq.s32.totalorder %s34, 1
      %p330 = por %p328, %p329
      %p332 = scmp.ne.s32.totalorder %s317, %s331
      %p333 = scmp.eq.s32.totalorder %s34, 0
      %p334 = por %p332, %p333
      %s336 = sadd.s32 %s335, 1
      %p339 = scmp.eq.s32.totalorder %s28, 1
      %p340 = scmp.ne.s32.totalorder %s335, %s337
      %p341 = scmp.eq.s32.totalorder %s28, 0
      %p342 = por %p340, %p341
      %p343 = scmp.ne.s32.totalorder %s335, %s337
      %p344 = scmp.eq.s32.totalorder %s33, 1
      %p345 = por %p343, %p344
      %p346 = scmp.ne.s32.totalorder %s337, %s338
      %p347 = scmp.eq.s32.totalorder %s33, 0
      %p348 = por %p346, %p347
      %p349 = scmp.ne.s32.totalorder %s337, %s338
      %p350 = scmp.eq.s32.totalorder %s34, 1
      %p351 = por %p349, %p350
      %p353 = scmp.ne.s32.totalorder %s338, %s352
      %p354 = scmp.eq.s32.totalorder %s34, 0
      %p355 = por %p353, %p354
      %s357 = sadd.s32 %s356, 1
      %p360 = scmp.eq.s32.totalorder %s28, 1
      %p361 = scmp.ne.s32.totalorder %s356, %s358
      %p362 = scmp.eq.s32.totalorder %s28, 0
      %p363 = por %p361, %p362
      %p364 = scmp.ne.s32.totalorder %s356, %s358
      %p365 = scmp.eq.s32.totalorder %s33, 1
      %p366 = por %p364, %p365
      %p367 = scmp.ne.s32.totalorder %s358, %s359
      %p368 = scmp.eq.s32.totalorder %s33, 0
      %p369 = por %p367, %p368
      %p370 = scmp.ne.s32.totalorder %s358, %s359
      %p371 = scmp.eq.s32.totalorder %s34, 1
      %p372 = por %p370, %p371
      %p374 = scmp.ne.s32.totalorder %s359, %s373
      %p375 = scmp.eq.s32.totalorder %s34, 0
      %p376 = por %p374, %p375
      %s378 = sadd.s32 %s377, 1
      %p381 = scmp.eq.s32.totalorder %s28, 1
      %p382 = scmp.ne.s32.totalorder %s377, %s379
      %p383 = scmp.eq.s32.totalorder %s28, 0
      %p384 = por %p382, %p383
      %p385 = scmp.ne.s32.totalorder %s377, %s379
      %p386 = scmp.eq.s32.totalorder %s33, 1
      %p387 = por %p385, %p386
      %p388 = scmp.ne.s32.totalorder %s379, %s380
      %p389 = scmp.eq.s32.totalorder %s33, 0
      %p390 = por %p388, %p389
      %p391 = scmp.ne.s32.totalorder %s379, %s380
      %p392 = scmp.eq.s32.totalorder %s34, 1
      %p393 = por %p391, %p392
      %p395 = scmp.ne.s32.totalorder %s380, %s394
      %p396 = scmp.eq.s32.totalorder %s34, 0
      %p397 = por %p395, %p396
      %s399 = sadd.s32 %s398, 1
      %p402 = scmp.eq.s32.totalorder %s28, 1
      %p403 = scmp.ne.s32.totalorder %s398, %s400
      %p404 = scmp.eq.s32.totalorder %s28, 0
      %p405 = por %p403, %p404
      %p406 = scmp.ne.s32.totalorder %s398, %s400
      %p407 = scmp.eq.s32.totalorder %s33, 1
      %p408 = por %p406, %p407
      %p409 = scmp.ne.s32.totalorder %s400, %s401
      %p410 = scmp.eq.s32.totalorder %s33, 0
      %p411 = por %p409, %p410
      %p412 = scmp.ne.s32.totalorder %s400, %s401
      %p413 = scmp.eq.s32.totalorder %s34, 1
      %p414 = por %p412, %p413
      %p416 = scmp.ne.s32.totalorder %s401, %s415
      %p417 = scmp.eq.s32.totalorder %s34, 0
      %p418 = por %p416, %p417
      %s420 = sadd.s32 %s419, 1
      %p423 = scmp.eq.s32.totalorder %s28, 1
      %p424 = scmp.ne.s32.totalorder %s419, %s421
      %p425 = scmp.eq.s32.totalorder %s28, 0
      %p426 = por %p424, %p425
      %p427 = scmp.ne.s32.totalorder %s419, %s421
      %p428 = scmp.eq.s32.totalorder %s33, 1
      %p429 = por %p427, %p428
      %p430 = scmp.ne.s32.totalorder %s421, %s422
      %p431 = scmp.eq.s32.totalorder %s33, 0
      %p432 = por %p430, %p431
      %p433 = scmp.ne.s32.totalorder %s421, %s422
      %p434 = scmp.eq.s32.totalorder %s34, 1
      %p435 = por %p433, %p434
      %p437 = scmp.ne.s32.totalorder %s422, %s436
      %p438 = scmp.eq.s32.totalorder %s34, 0
      %p439 = por %p437, %p438
      %s440 = ssub.s32 %s28, %s35
      %p441 = scmp.eq.s32.totalorder %s440, 0
      %s443 = sadd.s32 %s442, 1
      %s444 = scalar_select %p441, %s442, %s443
      %p447 = pneg %p441
      %p448 = scmp.eq.s32.totalorder %s28, 1
      %p449 = por %p447, %p448
      %p450 = scmp.ne.s32.totalorder %s442, %s445
      %p451 = scmp.eq.s32.totalorder %s28, 0
      %p452 = por %p450, %p451
      %p453 = scmp.ne.s32.totalorder %s442, %s445
      %p454 = scmp.eq.s32.totalorder %s33, 1
      %p455 = por %p453, %p454
      %p456 = scmp.ne.s32.totalorder %s445, %s446
      %p457 = scmp.eq.s32.totalorder %s33, 0
      %p458 = por %p456, %p457
      %p459 = scmp.ne.s32.totalorder %s445, %s446
      %p460 = scmp.eq.s32.totalorder %s34, 1
      %p461 = por %p459, %p460
      %p463 = scmp.ne.s32.totalorder %s446, %s462
      %p464 = scmp.eq.s32.totalorder %s34, 0
      %p465 = por %p463, %p464
      %p466 = scmp.le.s32.totalorder 1, %s28
      %p467 = scmp.lt.s32.totalorder %s28, 3
      %p468 = pnand %p466, %p467
      %p469 = pneg %p468
      // Predicated region
      $region9: #{_lambda_.1} parent=5 // pred_check
        _
      $region10: #{_lambda_.1} parent=5 // pred_check_branch
        %471 = sbr.rel (%p468) target = $region12
      $region11: #{_lambda_.1} parent=5 // pred_region
        %s472 = ssub.s32 %s28, 1
        // Predicated region
        $region13: #{_lambda_.1} parent=11 // pred_check
          %p473 = pneg %p75
        $region14: #{_lambda_.1} parent=11 // pred_check_branch
          %475 = sbr.rel (%p473) target = $region16
        $region15: #{_lambda_.1} parent=11 // pred_region
          _
        $region16: #{_lambda_.1} parent=11 // pred_fallthru
          _
        // Predicated region
        $region17: #{_lambda_.1} parent=11 // pred_check
          %p476 = pneg %p96
        $region18: #{_lambda_.1} parent=11 // pred_check_branch
          %478 = sbr.rel (%p476) target = $region20
        $region19: #{_lambda_.1} parent=11 // pred_region
          _
        $region20: #{_lambda_.1} parent=11 // pred_fallthru
          _
        // Predicated region
        $region21: #{_lambda_.1} parent=11 // pred_check
          %p479 = pneg %p117
        $region22: #{_lambda_.1} parent=11 // pred_check_branch
          %481 = sbr.rel (%p479) target = $region24
        $region23: #{_lambda_.1} parent=11 // pred_region
          %s483 = ssub.s32 16, 16
          %484 = vsyncadd [#allocation5], %s483
          %s486 = sshll.u32 [#allocation4], 4
          %s487 = int_to_ptr.vmem [resolvable:$true] %s486
          %489 = dma.hbm_to_vmem [thread:$0]  %s3, 16, %s487, [#allocation5]
        $region24: #{_lambda_.1} parent=11 // pred_fallthru
          _
        // Predicated region
        $region25: #{_lambda_.1} parent=11 // pred_check
          %p490 = pneg %p138
        $region26: #{_lambda_.1} parent=11 // pred_check_branch
          %492 = sbr.rel (%p490) target = $region28
        $region27: #{_lambda_.1} parent=11 // pred_region
          %s494 = ssub.s32 16, 16
          %495 = vsyncadd [#allocation7], %s494
          %s497 = sshll.u32 [#allocation6], 4
          %s498 = int_to_ptr.vmem [resolvable:$true] %s497
          %500 = dma.hbm_to_vmem [thread:$0]  %s4, 16, %s498, [#allocation7]
        $region28: #{_lambda_.1} parent=11 // pred_fallthru
          _
        // Predicated region
        $region29: #{_lambda_.1} parent=11 // pred_check
          %p501 = pneg %p159
        $region30: #{_lambda_.1} parent=11 // pred_check_branch
          %503 = sbr.rel (%p501) target = $region32
        $region31: #{_lambda_.1} parent=11 // pred_region
          _
        $region32: #{_lambda_.1} parent=11 // pred_fallthru
          _
        // Predicated region
        $region33: #{_lambda_.1} parent=11 // pred_check
          %p504 = pneg %p180
        $region34: #{_lambda_.1} parent=11 // pred_check_branch
          %506 = sbr.rel (%p504) target = $region36
        $region35: #{_lambda_.1} parent=11 // pred_region
          %s508 = ssub.s32 16, 16
          %509 = vsyncadd [#allocation7], %s508
          %s511 = sshll.u32 [#allocation8], 4
          %s512 = int_to_ptr.vmem [resolvable:$true] %s511
          %514 = dma.hbm_to_vmem [thread:$0]  %s6, 16, %s512, [#allocation7]
        $region36: #{_lambda_.1} parent=11 // pred_fallthru
          _
        // Predicated region
        $region37: #{_lambda_.1} parent=11 // pred_check
          %p515 = pneg %p201
        $region38: #{_lambda_.1} parent=11 // pred_check_branch
          %517 = sbr.rel (%p515) target = $region40
        $region39: #{_lambda_.1} parent=11 // pred_region
          _
        $region40: #{_lambda_.1} parent=11 // pred_fallthru
          _
        // Predicated region
        $region41: #{_lambda_.1} parent=11 // pred_check
          %p518 = pneg %p222
        $region42: #{_lambda_.1} parent=11 // pred_check_branch
          %520 = sbr.rel (%p518) target = $region44
        $region43: #{_lambda_.1} parent=11 // pred_region
          _
        $region44: #{_lambda_.1} parent=11 // pred_fallthru
          _
        // Predicated region
        $region45: #{_lambda_.1} parent=11 // pred_check
          %p521 = pneg %p243
        $region46: #{_lambda_.1} parent=11 // pred_check_branch
          %523 = sbr.rel (%p521) target = $region48
        $region47: #{_lambda_.1} parent=11 // pred_region
          %s525 = ssub.s32 4096, 4096
          %526 = vsyncadd [#allocation10], %s525
          %s527 = sshll.u32 [#allocation9], 4
          %s528 = int_to_ptr.vmem [resolvable:$true] %s527
          %533 = dma.hbm_to_vmem [thread:$0]  %s9, 4096, %s528, [#allocation10], 128, 128, 8
        $region48: #{_lambda_.1} parent=11 // pred_fallthru
          _
        // Predicated region
        $region49: #{_lambda_.1} parent=11 // pred_check
          %p534 = pneg %p264
        $region50: #{_lambda_.1} parent=11 // pred_check_branch
          %536 = sbr.rel (%p534) target = $region52
        $region51: #{_lambda_.1} parent=11 // pred_region
          _
        $region52: #{_lambda_.1} parent=11 // pred_fallthru
          _
        // Predicated region
        $region53: #{_lambda_.1} parent=11 // pred_check
          %p537 = pneg %p285
        $region54: #{_lambda_.1} parent=11 // pred_check_branch
          %539 = sbr.rel (%p537) target = $region56
        $region55: #{_lambda_.1} parent=11 // pred_region
          _
        $region56: #{_lambda_.1} parent=11 // pred_fallthru
          _
        // Predicated region
        $region57: #{_lambda_.1} parent=11 // pred_check
          %p540 = pneg %p306
        $region58: #{_lambda_.1} parent=11 // pred_check_branch
          %542 = sbr.rel (%p540) target = $region60
        $region59: #{_lambda_.1} parent=11 // pred_region
          _
        $region60: #{_lambda_.1} parent=11 // pred_fallthru
          _
        // Predicated region
        $region61: #{_lambda_.1} parent=11 // pred_check
          %p543 = pneg %p327
        $region62: #{_lambda_.1} parent=11 // pred_check_branch
          %545 = sbr.rel (%p543) target = $region64
        $region63: #{_lambda_.1} parent=11 // pred_region
          _
        $region64: #{_lambda_.1} parent=11 // pred_fallthru
          _
        // Predicated region
        $region65: #{_lambda_.1} parent=11 // pred_check
          %p546 = pneg %p348
        $region66: #{_lambda_.1} parent=11 // pred_check_branch
          %548 = sbr.rel (%p546) target = $region68
        $region67: #{_lambda_.1} parent=11 // pred_region
          _
        $region68: #{_lambda_.1} parent=11 // pred_fallthru
          _
        // Predicated region
        $region69: #{_lambda_.1} parent=11 // pred_check
          %p549 = pneg %p369
        $region70: #{_lambda_.1} parent=11 // pred_check_branch
          %551 = sbr.rel (%p549) target = $region72
        $region71: #{_lambda_.1} parent=11 // pred_region
          _
        $region72: #{_lambda_.1} parent=11 // pred_fallthru
          _
        // Predicated region
        $region73: #{_lambda_.1} parent=11 // pred_check
          %p552 = pneg %p390
        $region74: #{_lambda_.1} parent=11 // pred_check_branch
          %554 = sbr.rel (%p552) target = $region76
        $region75: #{_lambda_.1} parent=11 // pred_region
          _
        $region76: #{_lambda_.1} parent=11 // pred_fallthru
          _
        // Predicated region
        $region77: #{_lambda_.1} parent=11 // pred_check
          %p555 = pneg %p411
        $region78: #{_lambda_.1} parent=11 // pred_check_branch
          %557 = sbr.rel (%p555) target = $region80
        $region79: #{_lambda_.1} parent=11 // pred_region
          _
        $region80: #{_lambda_.1} parent=11 // pred_fallthru
          _
        // Predicated region
        $region81: #{_lambda_.1} parent=11 // pred_check
          %p558 = pneg %p432
        $region82: #{_lambda_.1} parent=11 // pred_check_branch
          %560 = sbr.rel (%p558) target = $region84
        $region83: #{_lambda_.1} parent=11 // pred_region
          _
        $region84: #{_lambda_.1} parent=11 // pred_fallthru
          _
      $region12: #{_lambda_.1} parent=5 // pred_fallthru
        _
      %p561 = scmp.lt.s32.totalorder %s28, 2
      // Predicated region
      $region85: #{_lambda_.1} parent=5 // pred_check
        %p562 = pneg %p561
      $region86: #{_lambda_.1} parent=5 // pred_check_branch
        %564 = sbr.rel (%p562) target = $region88
      $region87: #{_lambda_.1} parent=5 // pred_region
        // Predicated region
        $region89: #{_lambda_.1} parent=87 // pred_check
          %p565 = pneg %p48
        $region90: #{_lambda_.1} parent=87 // pred_check_branch
          %567 = sbr.rel (%p565) target = $region92
        $region91: #{_lambda_.1} parent=87 // pred_region
          %p568 = scmp.lt.s32.totalorder %s28, 1
          %s569 = scalar_select %p568, %s28, 1
          %s570 = smul.addr %s569, 8
          %s571 = smul.addr %s570, 8
          %s572 = scalar_lea.vmem %s0, %s571
        $region92: #{_lambda_.1} parent=87 // pred_fallthru
          _
      $region88: #{_lambda_.1} parent=5 // pred_fallthru
        _
      %p573 = scmp.le.s32.totalorder 1, %s28
      %p574 = scmp.lt.s32.totalorder %s28, 3
      %p575 = pnand %p573, %p574
      %p576 = pneg %p575
      // Predicated region
      $region93: #{_lambda_.1} parent=5 // pred_check
        _
      $region94: #{_lambda_.1} parent=5 // pred_check_branch
        %578 = sbr.rel (%p575) target = $region96
      $region95: #{_lambda_.1} parent=5 // pred_region
        %s579 = ssub.s32 %s28, 1
        // Predicated region
        $region97: #{_lambda_.1} parent=95 // pred_check
          %p580 = pneg %p117
        $region98: #{_lambda_.1} parent=95 // pred_check_branch
          %582 = sbr.rel (%p580) target = $region100
        $region99: #{_lambda_.1} parent=95 // pred_region
          %583 = dma.done [#allocation5], 16
        $region100: #{_lambda_.1} parent=95 // pred_fallthru
          _
        // Predicated region
        $region101: #{_lambda_.1} parent=95 // pred_check
          %p584 = pneg %p138
        $region102: #{_lambda_.1} parent=95 // pred_check_branch
          %586 = sbr.rel (%p584) target = $region104
        $region103: #{_lambda_.1} parent=95 // pred_region
          %587 = dma.done [#allocation7], 16
        $region104: #{_lambda_.1} parent=95 // pred_fallthru
          _
        // Predicated region
        $region105: #{_lambda_.1} parent=95 // pred_check
          %p588 = pneg %p180
        $region106: #{_lambda_.1} parent=95 // pred_check_branch
          %590 = sbr.rel (%p588) target = $region108
        $region107: #{_lambda_.1} parent=95 // pred_region
          %591 = dma.done [#allocation7], 16
        $region108: #{_lambda_.1} parent=95 // pred_fallthru
          _
        // Predicated region
        $region109: #{_lambda_.1} parent=95 // pred_check
          %p592 = pneg %p243
        $region110: #{_lambda_.1} parent=95 // pred_check_branch
          %594 = sbr.rel (%p592) target = $region112
        $region111: #{_lambda_.1} parent=95 // pred_region
          %595 = dma.done [#allocation10], 4096
        $region112: #{_lambda_.1} parent=95 // pred_fallthru
          _
        %p596 = scmp.lt.s32.totalorder %s33, 1
        %s597 = scalar_select %p596, %s33, 1
        %s598 = smul.addr %s597, 8
        %s599 = smul.addr %s598, 8
        %s600 = scalar_lea.vmem %s0, %s599
        %p601 = pneg %p54
        %p602 = pneg %p51
        %p603 = pneg %p75
        %p604 = pneg %p72
        %p605 = pneg %p96
        %p606 = pneg %p93
        %p607 = pneg %p117
        %p608 = pneg %p114
        %p609 = pneg %p138
        %p610 = pneg %p135
        %p611 = pneg %p159
        %p612 = pneg %p156
        %p613 = pneg %p180
        %p614 = pneg %p177
        %p615 = pneg %p201
        %p616 = pneg %p198
        %p617 = pneg %p222
        %p618 = pneg %p219
        %p619 = pneg %p243
        %p620 = pneg %p240
        %p621 = pneg %p264
        %p622 = pneg %p261
        %p623 = pneg %p285
        %p624 = pneg %p282
        %p625 = pneg %p306
        %p626 = pneg %p303
        %p627 = pneg %p327
        %p628 = pneg %p324
        %p629 = pneg %p348
        %p630 = pneg %p345
        %p631 = pneg %p369
        %p632 = pneg %p366
        %p633 = pneg %p390
        %p634 = pneg %p387
        %p635 = pneg %p411
        %p636 = pneg %p408
        %p637 = pneg %p432
        %p638 = pneg %p429
        %p639 = pneg %p458
        %p640 = pneg %p455
        %p641 = scmp.lt.s32.totalorder %s33, 1
        %s642 = scalar_select %p641, %s33, 1
        %s643 = smul.addr %s642, 8
        %s644 = smul.addr %s643, 8
        %s645 = scalar_lea.vmem %s19, %s644
        %p646 = scmp.lt.s32.totalorder %s33, 1
        %s647 = scalar_select %p646, %s33, 1
        %s648 = smul.addr %s647, 8
        %s649 = smul.addr %s648, 8
        %s650 = scalar_lea.vmem %s0, %s649
        %p651 = scmp.lt.s32.totalorder %s33, 1
        %s652 = scalar_select %p651, %s33, 1
        %s653 = smul.addr %s652, 8
        %s654 = smul.addr %s653, 8
        %s655 = scalar_lea.vmem %s19, %s654
        %v657 = vld [vmem:[%s650] sm:$0xff]
        %v658 = vld [vmem:[%s650 + $0x8] sm:$0xff]
        %v659 = vld [vmem:[%s650 + $0x10] sm:$0xff]
        %v660 = vld [vmem:[%s650 + $0x18] sm:$0xff]
        %v661 = vld [vmem:[%s650 + $0x20] sm:$0xff]
        %v662 = vld [vmem:[%s650 + $0x28] sm:$0xff]
        %v663 = vld [vmem:[%s650 + $0x30] sm:$0xff]
        %v664 = vld [vmem:[%s650 + $0x38] sm:$0xff]
        %v665 = vld [vmem:[%s1] sm:$0xf]
        %v666 = vld [vmem:[%s1 + $0x4] sm:$0xf]
        %v667 = vld [vmem:[%s1 + $0x8] sm:$0xf]
        %v668 = vld [vmem:[%s1 + $0xc] sm:$0xf]
        %v669 = vld [vmem:[%s1 + $0x10] sm:$0xf]
        %v670 = vld [vmem:[%s1 + $0x14] sm:$0xf]
        %v671 = vld [vmem:[%s1 + $0x18] sm:$0xf]
        %v672 = vld [vmem:[%s1 + $0x1c] sm:$0xf]
        %v673 = vld [vmem:[%s2] sm:$0xf]
        %v674 = vld [vmem:[%s2 + $0x4] sm:$0xf]
        %v675 = vld [vmem:[%s2 + $0x8] sm:$0xf]
        %v676 = vld [vmem:[%s2 + $0xc] sm:$0xf]
        %v677 = vld [vmem:[%s2 + $0x10] sm:$0xf]
        %v678 = vld [vmem:[%s2 + $0x14] sm:$0xf]
        %v679 = vld [vmem:[%s2 + $0x18] sm:$0xf]
        %v680 = vld [vmem:[%s2 + $0x1c] sm:$0xf]
        %v681 = vld [vmem:[#allocation4] sm:$0x1]
        %v682 = vld [vmem:[#allocation6] sm:$0x1]
        %vm683 = vcmask 261120
        %v684 = vsel %vm683, %v657, 0.0
        %685 = vadd.xlane.f32.xlu0 %v684
        %v686 = vpop.xlane.xlu0 %685
        %v687 = vsel %vm683, %v658, 0.0
        %688 = vadd.xlane.f32.xlu0 %v687
        %v689 = vpop.xlane.xlu0 %688
        %v690 = vsel %vm683, %v659, 0.0
        %691 = vadd.xlane.f32.xlu0 %v690
        %v692 = vpop.xlane.xlu0 %691
        %v693 = vsel %vm683, %v660, 0.0
        %694 = vadd.xlane.f32.xlu0 %v693
        %v695 = vpop.xlane.xlu0 %694
        %v696 = vsel %vm683, %v661, 0.0
        %697 = vadd.xlane.f32.xlu0 %v696
        %v698 = vpop.xlane.xlu0 %697
        %v699 = vsel %vm683, %v662, 0.0
        %700 = vadd.xlane.f32.xlu0 %v699
        %v701 = vpop.xlane.xlu0 %700
        %v702 = vsel %vm683, %v663, 0.0
        %703 = vadd.xlane.f32.xlu0 %v702
        %v704 = vpop.xlane.xlu0 %703
        %v705 = vsel %vm683, %v664, 0.0
        %706 = vadd.xlane.f32.xlu0 %v705
        %v707 = vpop.xlane.xlu0 %706
        %v708 = vrcp.pop 32.0
        %v709 = vmul.f32 %v686, %v708
        %v710 = vmul.f32 %v689, %v708
        %v711 = vmul.f32 %v692, %v708
        %v712 = vmul.f32 %v695, %v708
        %v713 = vmul.f32 %v698, %v708
        %v714 = vmul.f32 %v701, %v708
        %v715 = vmul.f32 %v704, %v708
        %v716 = vmul.f32 %v707, %v708
        %v717 = vsub.f32 %v657, %v709
        %v718 = vsub.f32 %v658, %v710
        %v719 = vsub.f32 %v659, %v711
        %v720 = vsub.f32 %v660, %v712
        %v721 = vsub.f32 %v661, %v713
        %v722 = vsub.f32 %v662, %v714
        %v723 = vsub.f32 %v663, %v715
        %v724 = vsub.f32 %v664, %v716
        %v725 = vmul.f32 %v717, %v717
        %v726 = vmul.f32 %v718, %v718
        %v727 = vmul.f32 %v719, %v719
        %v728 = vmul.f32 %v720, %v720
        %v729 = vmul.f32 %v721, %v721
        %v730 = vmul.f32 %v722, %v722
        %v731 = vmul.f32 %v723, %v723
        %v732 = vmul.f32 %v724, %v724
        %v733 = vsel %vm683, %v725, 0.0
        %734 = vadd.xlane.f32.xlu0 %v733
        %v735 = vpop.xlane.xlu0 %734
        %v736 = vsel %vm683, %v726, 0.0
        %737 = vadd.xlane.f32.xlu0 %v736
        %v738 = vpop.xlane.xlu0 %737
        %v739 = vsel %vm683, %v727, 0.0
        %740 = vadd.xlane.f32.xlu0 %v739
        %v741 = vpop.xlane.xlu0 %740
        %v742 = vsel %vm683, %v728, 0.0
        %743 = vadd.xlane.f32.xlu0 %v742
        %v744 = vpop.xlane.xlu0 %743
        %v745 = vsel %vm683, %v729, 0.0
        %746 = vadd.xlane.f32.xlu0 %v745
        %v747 = vpop.xlane.xlu0 %746
        %v748 = vsel %vm683, %v730, 0.0
        %749 = vadd.xlane.f32.xlu0 %v748
        %v750 = vpop.xlane.xlu0 %749
        %v751 = vsel %vm683, %v731, 0.0
        %752 = vadd.xlane.f32.xlu0 %v751
        %v753 = vpop.xlane.xlu0 %752
        %v754 = vsel %vm683, %v732, 0.0
        %755 = vadd.xlane.f32.xlu0 %v754
        %v756 = vpop.xlane.xlu0 %755
        %v757 = vmul.f32 %v735, %v708
        %v758 = vmul.f32 %v738, %v708
        %v759 = vmul.f32 %v741, %v708
        %v760 = vmul.f32 %v744, %v708
        %v761 = vmul.f32 %v747, %v708
        %v762 = vmul.f32 %v750, %v708
        %v763 = vmul.f32 %v753, %v708
        %v764 = vmul.f32 %v756, %v708
        %v765 = vadd.f32 %v757, 1e-05
        %v766 = vadd.f32 %v758, 1e-05
        %v767 = vadd.f32 %v759, 1e-05
        %v768 = vadd.f32 %v760, 1e-05
        %v769 = vadd.f32 %v761, 1e-05
        %v770 = vadd.f32 %v762, 1e-05
        %v771 = vadd.f32 %v763, 1e-05
        %v772 = vadd.f32 %v764, 1e-05
        %v773 = vrsqrt.pop %v765
        %v774 = vrsqrt.pop %v766
        %v775 = vrsqrt.pop %v767
        %v776 = vrsqrt.pop %v768
        %v777 = vrsqrt.pop %v769
        %v778 = vrsqrt.pop %v770
        %v779 = vrsqrt.pop %v771
        %v780 = vrsqrt.pop %v772
        %v781 = vmul.f32 %v717, %v773
        %v782 = vmul.f32 %v718, %v774
        %v783 = vmul.f32 %v719, %v775
        %v784 = vmul.f32 %v720, %v776
        %v785 = vmul.f32 %v721, %v777
        %v786 = vmul.f32 %v722, %v778
        %v787 = vmul.f32 %v723, %v779
        %v788 = vmul.f32 %v724, %v780
        %v790 = vlaneseq
        %v791 = vshrl.u32 %v790, 7
        %v792 = vsub.s32 0, %v791
        %v793 = vrot.slane %v681, %v792
        %v795 = vmul.f32 %v781, %v793
        %v796 = vmul.f32 %v782, %v793
        %v797 = vmul.f32 %v783, %v793
        %v798 = vmul.f32 %v784, %v793
        %v799 = vmul.f32 %v785, %v793
        %v800 = vmul.f32 %v786, %v793
        %v801 = vmul.f32 %v787, %v793
        %v802 = vmul.f32 %v788, %v793
        %v804 = vlaneseq
        %v805 = vshrl.u32 %v804, 7
        %v806 = vsub.s32 0, %v805
        %v807 = vrot.slane %v682, %v806
        %v809 = vadd.f32 %v795, %v807
        %v810 = vadd.f32 %v796, %v807
        %v811 = vadd.f32 %v797, %v807
        %v812 = vadd.f32 %v798, %v807
        %v813 = vadd.f32 %v799, %v807
        %v814 = vadd.f32 %v800, %v807
        %v815 = vadd.f32 %v801, %v807
        %v816 = vadd.f32 %v802, %v807
        %v817 = vpack.c.bf16 %v810, %v809
        %v818 = vpack.c.bf16 %v812, %v811
        %v819 = vpack.c.bf16 %v814, %v813
        %v820 = vpack.c.bf16 %v816, %v815
        %v829 = vunpack.c.l.b16 %v665
        %v830 = vunpack.c.l.b16 %v666
        %v831 = vunpack.c.l.b16 %v667
        %v832 = vunpack.c.l.b16 %v668
        %v833 = vunpack.c.l.b16 %v669
        %v834 = vunpack.c.l.b16 %v670
        %v835 = vunpack.c.l.b16 %v671
        %v836 = vunpack.c.l.b16 %v672
        %v837 = vpack.c.b16 %v830, %v829
        %v838 = vpack.c.b16 %v832, %v831
        %v839 = vpack.c.b16 %v834, %v833
        %v840 = vpack.c.b16 %v836, %v835
        %vm841 = vcmask 523264
        %v843 = vsel %vm841, %v837, 0
        %v846 = vsel %vm841, %v838, 0
        %v849 = vsel %vm841, %v839, 0
        %v852 = vsel %vm841, %v840, 0
        %854 = vmatprep.subr.bf16.mxu0 0
        %855 = vmatpush1.bf16.msra.mxu0 0
        %856 = vmatprep.subr.bf16.mxu0 0
        %857 = vmatpush1.bf16.msra.mxu0 0
        %858 = vmatprep.subr.bf16.mxu0 0
        %859 = vmatpush1.bf16.msra.mxu0 0
        %860 = vmatprep.subr.bf16.mxu0 0
        %861 = vmatpush1.bf16.msra.mxu0 0
        %862 = vmatprep.subr.bf16.mxu0 0
        %863 = vmatpush1.bf16.msra.mxu0 %v820
        %864 = vmatprep.subr.bf16.mxu0 0
        %865 = vmatpush1.bf16.msra.mxu0 %v819
        %866 = vmatprep.subr.bf16.mxu0 0
        %867 = vmatpush1.bf16.msra.mxu0 %v818
        %868 = vmatprep.subr.bf16.mxu0 0
        %869 = vmatpush1.bf16.msra.mxu0 %v817
        %870 = vmatprep.subr.bf16.mxu0 0
        %871 = vmatpush2.bf16.msra.mxu0 0
        %872 = vmatprep.subr.bf16.mxu0 0
        %873 = vmatpush2.bf16.msra.mxu0 0
        %874 = vmatprep.subr.bf16.mxu0 0
        %875 = vmatpush2.bf16.msra.mxu0 0
        %876 = vmatprep.subr.bf16.mxu0 0
        %877 = vmatpush2.bf16.msra.mxu0 0
        %878 = vmatprep.subr.bf16.mxu0 0
        %879 = vmatpush2.bf16.msra.mxu0 0
        %880 = vmatprep.subr.bf16.mxu0 0
        %881 = vmatpush2.bf16.msra.mxu0 0
        %882 = vmatprep.subr.bf16.mxu0 0
        %883 = vmatpush2.bf16.msra.mxu0 0
        %884 = vmatprep.subr.bf16.mxu0 0
        %885 = vmatpush2.bf16.msra.mxu0 0
        %886 = vmatprep.mubr.bf16.mxu0 0
        %887 = vmatmul.mubr.bf16.gmra.mxu0 %v843
        %v888 = vpop.f32.mrf.mxu0
        %v889 = vadd.f32 0.0, %v888
        %v890 = vpop.f32.mrf.mxu0
        %v891 = vpop.f32.mrf.mxu0
        %v892 = vadd.f32 0.0, %v891
        %v893 = vpop.f32.mrf.mxu0
        %894 = vmatprep.mubr.bf16.mxu0 0
        %895 = vmatmul.mubr.bf16.gmra.mxu0 %v846
        %v896 = vpop.f32.mrf.mxu0
        %v897 = vadd.f32 0.0, %v896
        %v898 = vpop.f32.mrf.mxu0
        %v899 = vpop.f32.mrf.mxu0
        %v900 = vadd.f32 0.0, %v899
        %v901 = vpop.f32.mrf.mxu0
        %902 = vmatprep.mubr.bf16.mxu0 0
        %903 = vmatmul.mubr.bf16.gmra.mxu0 %v849
        %v904 = vpop.f32.mrf.mxu0
        %v905 = vadd.f32 0.0, %v904
        %v906 = vpop.f32.mrf.mxu0
        %v907 = vpop.f32.mrf.mxu0
        %v908 = vadd.f32 0.0, %v907
        %v909 = vpop.f32.mrf.mxu0
        %910 = vmatprep.mubr.bf16.mxu0 0
        %911 = vmatmul.mubr.bf16.gmra.mxu0 %v852
        %v912 = vpop.f32.mrf.mxu0
        %v913 = vadd.f32 0.0, %v912
        %v914 = vpop.f32.mrf.mxu0
        %v915 = vpop.f32.mrf.mxu0
        %v916 = vadd.f32 0.0, %v915
        %v917 = vpop.f32.mrf.mxu0
        %918 = vdwg.mxu0
        %v919 = vpack.c.bf16 %v892, %v889
        %v920 = vpack.c.bf16 %v900, %v897
        %v921 = vpack.c.bf16 %v908, %v905
        %v922 = vpack.c.bf16 %v916, %v913
        %v923 = vld [vmem:[%s5] sm:$0xf]
        %v924 = vld [vmem:[%s5 + $0x4] sm:$0xf]
        %v925 = vld [vmem:[%s5 + $0x8] sm:$0xf]
        %v926 = vld [vmem:[%s5 + $0xc] sm:$0xf]
        %v927 = vld [vmem:[#allocation8] sm:$0x1]
        %v929 = vlaneseq
        %v930 = vshrl.u32 %v929, 7
        %v931 = vsub.s32 0, %v930
        %v932 = vrot.slane %v927, %v931
        %v938 = vunpack.c.l.b16 %v923
        %v939 = vunpack.c.l.b16 %v924
        %v940 = vunpack.c.l.b16 %v925
        %v941 = vunpack.c.l.b16 %v926
        %v942 = vpack.c.b16 %v939, %v938
        %v943 = vpack.c.b16 %v941, %v940
        %v947 = vsel %vm683, %v919, 0
        %v950 = vsel %vm683, %v920, 0
        %v953 = vsel %vm683, %v921, 0
        %v956 = vsel %vm683, %v922, 0
        %958 = vmatprep.subr.bf16.mxu0 0
        %959 = vmatpush1.bf16.msra.mxu0 0
        %960 = vmatprep.subr.bf16.mxu0 0
        %961 = vmatpush1.bf16.msra.mxu0 0
        %962 = vmatprep.subr.bf16.mxu0 0
        %963 = vmatpush1.bf16.msra.mxu0 0
        %964 = vmatprep.subr.bf16.mxu0 0
        %965 = vmatpush1.bf16.msra.mxu0 0
        %966 = vmatprep.subr.bf16.mxu0 0
        %967 = vmatpush1.bf16.msra.mxu0 0
        %968 = vmatprep.subr.bf16.mxu0 0
        %969 = vmatpush1.bf16.msra.mxu0 0
        %970 = vmatprep.subr.bf16.mxu0 0
        %971 = vmatpush1.bf16.msra.mxu0 %v943
        %972 = vmatprep.subr.bf16.mxu0 0
        %973 = vmatpush1.bf16.msra.mxu0 %v942
        %974 = vmatprep.subr.bf16.mxu0 0
        %975 = vmatpush2.bf16.msra.mxu0 0
        %976 = vmatprep.subr.bf16.mxu0 0
        %977 = vmatpush2.bf16.msra.mxu0 0
        %978 = vmatprep.subr.bf16.mxu0 0
        %979 = vmatpush2.bf16.msra.mxu0 0
        %980 = vmatprep.subr.bf16.mxu0 0
        %981 = vmatpush2.bf16.msra.mxu0 0
        %982 = vmatprep.subr.bf16.mxu0 0
        %983 = vmatpush2.bf16.msra.mxu0 0
        %984 = vmatprep.subr.bf16.mxu0 0
        %985 = vmatpush2.bf16.msra.mxu0 0
        %986 = vmatprep.subr.bf16.mxu0 0
        %987 = vmatpush2.bf16.msra.mxu0 0
        %988 = vmatprep.subr.bf16.mxu0 0
        %989 = vmatpush2.bf16.msra.mxu0 0
        %990 = vmatprep.mubr.bf16.mxu0 0
        %991 = vmatmul.mubr.bf16.gmra.mxu0 %v947
        %v992 = vpop.f32.mrf.mxu0
        %v993 = vadd.f32 %v932, %v992
        %v994 = vpop.f32.mrf.mxu0
        %v995 = vpop.f32.mrf.mxu0
        %v996 = vadd.f32 %v932, %v995
        %v997 = vpop.f32.mrf.mxu0
        %998 = vmatprep.mubr.bf16.mxu0 0
        %999 = vmatmul.mubr.bf16.gmra.mxu0 %v950
        %v1000 = vpop.f32.mrf.mxu0
        %v1001 = vadd.f32 %v932, %v1000
        %v1002 = vpop.f32.mrf.mxu0
        %v1003 = vpop.f32.mrf.mxu0
        %v1004 = vadd.f32 %v932, %v1003
        %v1005 = vpop.f32.mrf.mxu0
        %1006 = vmatprep.mubr.bf16.mxu0 0
        %1007 = vmatmul.mubr.bf16.gmra.mxu0 %v953
        %v1008 = vpop.f32.mrf.mxu0
        %v1009 = vadd.f32 %v932, %v1008
        %v1010 = vpop.f32.mrf.mxu0
        %v1011 = vpop.f32.mrf.mxu0
        %v1012 = vadd.f32 %v932, %v1011
        %v1013 = vpop.f32.mrf.mxu0
        %1014 = vmatprep.mubr.bf16.mxu0 0
        %1015 = vmatmul.mubr.bf16.gmra.mxu0 %v956
        %v1016 = vpop.f32.mrf.mxu0
        %v1017 = vadd.f32 %v932, %v1016
        %v1018 = vpop.f32.mrf.mxu0
        %v1019 = vpop.f32.mrf.mxu0
        %v1020 = vadd.f32 %v932, %v1019
        %v1021 = vpop.f32.mrf.mxu0
        %1022 = vdwg.mxu0
        %v1023 = vpack.c.bf16 %v996, %v993
        %v1024 = vpack.c.bf16 %v1004, %v1001
        %v1025 = vpack.c.bf16 %v1012, %v1009
        %v1026 = vpack.c.bf16 %v1020, %v1017
        %v1027 = vld [vmem:[#allocation9] sm:$0xff]
        %v1028 = vld [vmem:[#allocation9 + $0x8] sm:$0xff]
        %v1029 = vld [vmem:[#allocation9 + $0x10] sm:$0xff]
        %v1030 = vld [vmem:[#allocation9 + $0x18] sm:$0xff]
        %v1031 = vld [vmem:[#allocation9 + $0x20] sm:$0xff]
        %v1032 = vld [vmem:[#allocation9 + $0x28] sm:$0xff]
        %v1033 = vld [vmem:[#allocation9 + $0x30] sm:$0xff]
        %v1034 = vld [vmem:[#allocation9 + $0x38] sm:$0xff]
        %1039 = vrot.lane.b32.xlu0 %v1023, 96
        %v1040 = vpop.permute.xlu0 %1039
        %1041 = vrot.lane.b32.xlu0 %v1024, 96
        %v1042 = vpop.permute.xlu0 %1041
        %1043 = vrot.lane.b32.xlu0 %v1025, 96
        %v1044 = vpop.permute.xlu0 %1043
        %1045 = vrot.lane.b32.xlu0 %v1026, 96
        %v1046 = vpop.permute.xlu0 %1045
        %vm1047 = vcmask 64512
        %v1049 = vsel %vm1047, %v1023, 0
        %v1052 = vsel %vm1047, %v1024, 0
        %v1055 = vsel %vm1047, %v1025, 0
        %v1058 = vsel %vm1047, %v1026, 0
        %v1061 = vsel %vm1047, %v1040, 0
        %v1064 = vsel %vm1047, %v1042, 0
        %v1067 = vsel %vm1047, %v1044, 0
        %v1070 = vsel %vm1047, %v1046, 0
        %1072 = vmatprep.subr.bf16.mxu0 0
        %1073 = vmatpush1.bf16.xpose.msra.mxu0 0
        %1074 = vmatprep.subr.bf16.mxu0 0
        %1075 = vmatpush1.bf16.xpose.msra.mxu0 0
        %1076 = vmatprep.subr.bf16.mxu0 0
        %1077 = vmatpush1.bf16.xpose.msra.mxu0 0
        %1078 = vmatprep.subr.bf16.mxu0 0
        %1079 = vmatpush1.bf16.xpose.msra.mxu0 0
        %1080 = vmatprep.subr.bf16.mxu0 0
        %1081 = vmatpush1.bf16.xpose.msra.mxu0 %v1070
        %1082 = vmatprep.subr.bf16.mxu0 0
        %1083 = vmatpush1.bf16.xpose.msra.mxu0 %v1067
        %1084 = vmatprep.subr.bf16.mxu0 0
        %1085 = vmatpush1.bf16.xpose.msra.mxu0 %v1064
        %1086 = vmatprep.subr.bf16.mxu0 0
        %1087 = vmatpush1.bf16.xpose.msra.mxu0 %v1061
        %1088 = vmatprep.subr.bf16.mxu0 0
        %1089 = vmatpush2.bf16.xpose.msra.mxu0 0
        %1090 = vmatprep.subr.bf16.mxu0 0
        %1091 = vmatpush2.bf16.xpose.msra.mxu0 0
        %1092 = vmatprep.subr.bf16.mxu0 0
        %1093 = vmatpush2.bf16.xpose.msra.mxu0 0
        %1094 = vmatprep.subr.bf16.mxu0 0
        %1095 = vmatpush2.bf16.xpose.msra.mxu0 0
        %1096 = vmatprep.subr.bf16.mxu0 0
        %1097 = vmatpush2.bf16.xpose.msra.mxu0 0
        %1098 = vmatprep.subr.bf16.mxu0 0
        %1099 = vmatpush2.bf16.xpose.msra.mxu0 0
        %1100 = vmatprep.subr.bf16.mxu0 0
        %1101 = vmatpush2.bf16.xpose.msra.mxu0 0
        %1102 = vmatprep.subr.bf16.mxu0 0
        %1103 = vmatpush2.bf16.xpose.msra.mxu0 0
        %1104 = vmatprep.mubr.bf16.mxu0 0
        %1105 = vmatmul.mubr.bf16.gmra.mxu0 %v1049
        %v1106 = vpop.f32.mrf.mxu0
        %v1107 = vadd.f32 %v1027, %v1106
        %v1108 = vpop.f32.mrf.mxu0
        %v1109 = vpop.f32.mrf.mxu0
        %v1110 = vadd.f32 %v1028, %v1109
        %v1111 = vpop.f32.mrf.mxu0
        %1112 = vmatprep.mubr.bf16.mxu0 0
        %1113 = vmatmul.mubr.bf16.gmra.mxu0 %v1052
        %v1114 = vpop.f32.mrf.mxu0
        %v1115 = vadd.f32 %v1029, %v1114
        %v1116 = vpop.f32.mrf.mxu0
        %v1117 = vpop.f32.mrf.mxu0
        %v1118 = vadd.f32 %v1030, %v1117
        %v1119 = vpop.f32.mrf.mxu0
        %1120 = vmatprep.mubr.bf16.mxu0 0
        %1121 = vmatmul.mubr.bf16.gmra.mxu0 %v1055
        %v1122 = vpop.f32.mrf.mxu0
        %v1123 = vadd.f32 %v1031, %v1122
        %v1124 = vpop.f32.mrf.mxu0
        %v1125 = vpop.f32.mrf.mxu0
        %v1126 = vadd.f32 %v1032, %v1125
        %v1127 = vpop.f32.mrf.mxu0
        %1128 = vmatprep.mubr.bf16.mxu0 0
        %1129 = vmatmul.mubr.bf16.gmra.mxu0 %v1058
        %v1130 = vpop.f32.mrf.mxu0
        %v1131 = vadd.f32 %v1033, %v1130
        %v1132 = vpop.f32.mrf.mxu0
        %v1133 = vpop.f32.mrf.mxu0
        %v1134 = vadd.f32 %v1034, %v1133
        %v1135 = vpop.f32.mrf.mxu0
        %1136 = vdwg.mxu0
        %v1137 = vsel %vm841, %v1107, -inf
        %1138 = vmax.xlane.f32.xlu0 %v1137
        %v1139 = vpop.xlane.xlu0 %1138
        %v1140 = vsel %vm841, %v1110, -inf
        %1141 = vmax.xlane.f32.xlu0 %v1140
        %v1142 = vpop.xlane.xlu0 %1141
        %v1143 = vsel %vm841, %v1115, -inf
        %1144 = vmax.xlane.f32.xlu0 %v1143
        %v1145 = vpop.xlane.xlu0 %1144
        %v1146 = vsel %vm841, %v1118, -inf
        %1147 = vmax.xlane.f32.xlu0 %v1146
        %v1148 = vpop.xlane.xlu0 %1147
        %v1149 = vsel %vm841, %v1123, -inf
        %1150 = vmax.xlane.f32.xlu0 %v1149
        %v1151 = vpop.xlane.xlu0 %1150
        %v1152 = vsel %vm841, %v1126, -inf
        %1153 = vmax.xlane.f32.xlu0 %v1152
        %v1154 = vpop.xlane.xlu0 %1153
        %v1155 = vsel %vm841, %v1131, -inf
        %1156 = vmax.xlane.f32.xlu0 %v1155
        %v1157 = vpop.xlane.xlu0 %1156
        %v1158 = vsel %vm841, %v1134, -inf
        %1159 = vmax.xlane.f32.xlu0 %v1158
        %v1160 = vpop.xlane.xlu0 %1159
        %v1161 = vsub.f32 %v1107, %v1139
        %v1162 = vsub.f32 %v1110, %v1142
        %v1163 = vsub.f32 %v1115, %v1145
        %v1164 = vsub.f32 %v1118, %v1148
        %v1165 = vsub.f32 %v1123, %v1151
        %v1166 = vsub.f32 %v1126, %v1154
        %v1167 = vsub.f32 %v1131, %v1157
        %v1168 = vsub.f32 %v1134, %v1160
        %v1169 = vmul.f32 %v1161, 1.442695
        %v1170 = vpow.pop %v1169
        %v1171 = vmul.f32 %v1162, 1.442695
        %v1172 = vpow.pop %v1171
        %v1173 = vmul.f32 %v1163, 1.442695
        %v1174 = vpow.pop %v1173
        %v1175 = vmul.f32 %v1164, 1.442695
        %v1176 = vpow.pop %v1175
        %v1177 = vmul.f32 %v1165, 1.442695
        %v1178 = vpow.pop %v1177
        %v1179 = vmul.f32 %v1166, 1.442695
        %v1180 = vpow.pop %v1179
        %v1181 = vmul.f32 %v1167, 1.442695
        %v1182 = vpow.pop %v1181
        %v1183 = vmul.f32 %v1168, 1.442695
        %v1184 = vpow.pop %v1183
        %v1185 = vsel %vm841, %v1170, 0.0
        %1186 = vadd.xlane.f32.xlu0 %v1185
        %v1187 = vpop.xlane.xlu0 %1186
        %v1188 = vsel %vm841, %v1172, 0.0
        %1189 = vadd.xlane.f32.xlu0 %v1188
        %v1190 = vpop.xlane.xlu0 %1189
        %v1191 = vsel %vm841, %v1174, 0.0
        %1192 = vadd.xlane.f32.xlu0 %v1191
        %v1193 = vpop.xlane.xlu0 %1192
        %v1194 = vsel %vm841, %v1176, 0.0
        %1195 = vadd.xlane.f32.xlu0 %v1194
        %v1196 = vpop.xlane.xlu0 %1195
        %v1197 = vsel %vm841, %v1178, 0.0
        %1198 = vadd.xlane.f32.xlu0 %v1197
        %v1199 = vpop.xlane.xlu0 %1198
        %v1200 = vsel %vm841, %v1180, 0.0
        %1201 = vadd.xlane.f32.xlu0 %v1200
        %v1202 = vpop.xlane.xlu0 %1201
        %v1203 = vsel %vm841, %v1182, 0.0
        %1204 = vadd.xlane.f32.xlu0 %v1203
        %v1205 = vpop.xlane.xlu0 %1204
        %v1206 = vsel %vm841, %v1184, 0.0
        %1207 = vadd.xlane.f32.xlu0 %v1206
        %v1208 = vpop.xlane.xlu0 %1207
        %v1209 = vrcp.pop %v1187
        %v1210 = vrcp.pop %v1190
        %v1211 = vrcp.pop %v1193
        %v1212 = vrcp.pop %v1196
        %v1213 = vrcp.pop %v1199
        %v1214 = vrcp.pop %v1202
        %v1215 = vrcp.pop %v1205
        %v1216 = vrcp.pop %v1208
        %v1217 = vmul.f32 %v1170, %v1209
        %v1218 = vmul.f32 %v1172, %v1210
        %v1219 = vmul.f32 %v1174, %v1211
        %v1220 = vmul.f32 %v1176, %v1212
        %v1221 = vmul.f32 %v1178, %v1213
        %v1222 = vmul.f32 %v1180, %v1214
        %v1223 = vmul.f32 %v1182, %v1215
        %v1224 = vmul.f32 %v1184, %v1216
        %v1225 = vpack.c.bf16 %v1218, %v1217
        %v1226 = vpack.c.bf16 %v1220, %v1219
        %v1227 = vpack.c.bf16 %v1222, %v1221
        %v1228 = vpack.c.bf16 %v1224, %v1223
        %1229 = vrot.lane.b32.xlu0 %v1023, 64
        %v1230 = vpop.permute.xlu0 %1229
        %1231 = vrot.lane.b32.xlu0 %v1024, 64
        %v1232 = vpop.permute.xlu0 %1231
        %1233 = vrot.lane.b32.xlu0 %v1025, 64
        %v1234 = vpop.permute.xlu0 %1233
        %1235 = vrot.lane.b32.xlu0 %v1026, 64
        %v1236 = vpop.permute.xlu0 %1235
        %v1242 = vsel %vm841, %v1225, 0
        %v1245 = vsel %vm841, %v1226, 0
        %v1248 = vsel %vm841, %v1227, 0
        %v1251 = vsel %vm841, %v1228, 0
        %1253 = vmatprep.subr.bf16.mxu0 0
        %1254 = vmatpush1.bf16.msra.mxu0 0
        %1255 = vmatprep.subr.bf16.mxu0 0
        %1256 = vmatpush1.bf16.msra.mxu0 0
        %1257 = vmatprep.subr.bf16.mxu0 0
        %1258 = vmatpush1.bf16.msra.mxu0 0
        %1259 = vmatprep.subr.bf16.mxu0 0
        %1260 = vmatpush1.bf16.msra.mxu0 0
        %1261 = vmatprep.subr.bf16.mxu0 0
        %1262 = vmatpush1.bf16.msra.mxu0 %v1236
        %1263 = vmatprep.subr.bf16.mxu0 0
        %1264 = vmatpush1.bf16.msra.mxu0 %v1234
        %1265 = vmatprep.subr.bf16.mxu0 0
        %1266 = vmatpush1.bf16.msra.mxu0 %v1232
        %1267 = vmatprep.subr.bf16.mxu0 0
        %1268 = vmatpush1.bf16.msra.mxu0 %v1230
        %1269 = vmatprep.subr.bf16.mxu0 0
        %1270 = vmatpush2.bf16.msra.mxu0 0
        %1271 = vmatprep.subr.bf16.mxu0 0
        %1272 = vmatpush2.bf16.msra.mxu0 0
        %1273 = vmatprep.subr.bf16.mxu0 0
        %1274 = vmatpush2.bf16.msra.mxu0 0
        %1275 = vmatprep.subr.bf16.mxu0 0
        %1276 = vmatpush2.bf16.msra.mxu0 0
        %1277 = vmatprep.subr.bf16.mxu0 0
        %1278 = vmatpush2.bf16.msra.mxu0 0
        %1279 = vmatprep.subr.bf16.mxu0 0
        %1280 = vmatpush2.bf16.msra.mxu0 0
        %1281 = vmatprep.subr.bf16.mxu0 0
        %1282 = vmatpush2.bf16.msra.mxu0 0
        %1283 = vmatprep.subr.bf16.mxu0 0
        %1284 = vmatpush2.bf16.msra.mxu0 0
        %1285 = vmatprep.mubr.bf16.mxu0 0
        %1286 = vmatmul.mubr.bf16.gmra.mxu0 %v1242
        %v1287 = vpop.f32.mrf.mxu0
        %v1288 = vadd.f32 0.0, %v1287
        %v1289 = vpop.f32.mrf.mxu0
        %v1290 = vpop.f32.mrf.mxu0
        %v1291 = vadd.f32 0.0, %v1290
        %v1292 = vpop.f32.mrf.mxu0
        %1293 = vmatprep.mubr.bf16.mxu0 0
        %1294 = vmatmul.mubr.bf16.gmra.mxu0 %v1245
        %v1295 = vpop.f32.mrf.mxu0
        %v1296 = vadd.f32 0.0, %v1295
        %v1297 = vpop.f32.mrf.mxu0
        %v1298 = vpop.f32.mrf.mxu0
        %v1299 = vadd.f32 0.0, %v1298
        %v1300 = vpop.f32.mrf.mxu0
        %1301 = vmatprep.mubr.bf16.mxu0 0
        %1302 = vmatmul.mubr.bf16.gmra.mxu0 %v1248
        %v1303 = vpop.f32.mrf.mxu0
        %v1304 = vadd.f32 0.0, %v1303
        %v1305 = vpop.f32.mrf.mxu0
        %v1306 = vpop.f32.mrf.mxu0
        %v1307 = vadd.f32 0.0, %v1306
        %v1308 = vpop.f32.mrf.mxu0
        %1309 = vmatprep.mubr.bf16.mxu0 0
        %1310 = vmatmul.mubr.bf16.gmra.mxu0 %v1251
        %v1311 = vpop.f32.mrf.mxu0
        %v1312 = vadd.f32 0.0, %v1311
        %v1313 = vpop.f32.mrf.mxu0
        %v1314 = vpop.f32.mrf.mxu0
        %v1315 = vadd.f32 0.0, %v1314
        %v1316 = vpop.f32.mrf.mxu0
        %1317 = vdwg.mxu0
        %1318 = vst.msk [vmem:[#allocation2] sm:$0xff] %vm1047, %v1288
        %1319 = vst.msk [vmem:[#allocation2 + $0x8] sm:$0xff] %vm1047, %v1291
        %1320 = vst.msk [vmem:[#allocation2 + $0x10] sm:$0xff] %vm1047, %v1296
        %1321 = vst.msk [vmem:[#allocation2 + $0x18] sm:$0xff] %vm1047, %v1299
        %1322 = vst.msk [vmem:[#allocation2 + $0x20] sm:$0xff] %vm1047, %v1304
        %1323 = vst.msk [vmem:[#allocation2 + $0x28] sm:$0xff] %vm1047, %v1307
        %1324 = vst.msk [vmem:[#allocation2 + $0x30] sm:$0xff] %vm1047, %v1312
        %1325 = vst.msk [vmem:[#allocation2 + $0x38] sm:$0xff] %vm1047, %v1315
        %s1326 = scalar_lea.vmem [#allocation9], 64
        %v1327 = vld [vmem:[%s1326] sm:$0xff]
        %v1328 = vld [vmem:[%s1326 + $0x8] sm:$0xff]
        %v1329 = vld [vmem:[%s1326 + $0x10] sm:$0xff]
        %v1330 = vld [vmem:[%s1326 + $0x18] sm:$0xff]
        %v1331 = vld [vmem:[%s1326 + $0x20] sm:$0xff]
        %v1332 = vld [vmem:[%s1326 + $0x28] sm:$0xff]
        %v1333 = vld [vmem:[%s1326 + $0x30] sm:$0xff]
        %v1334 = vld [vmem:[%s1326 + $0x38] sm:$0xff]
        %1335 = vrot.lane.b32.xlu0 %v1023, 120
        %v1336 = vpop.permute.xlu0 %1335
        %1337 = vrot.lane.b32.xlu0 %v1024, 120
        %v1338 = vpop.permute.xlu0 %1337
        %1339 = vrot.lane.b32.xlu0 %v1025, 120
        %v1340 = vpop.permute.xlu0 %1339
        %1341 = vrot.lane.b32.xlu0 %v1026, 120
        %v1342 = vpop.permute.xlu0 %1341
        %1343 = vrot.lane.b32.xlu0 %v1023, 88
        %v1344 = vpop.permute.xlu0 %1343
        %1345 = vrot.lane.b32.xlu0 %v1024, 88
        %v1346 = vpop.permute.xlu0 %1345
        %1347 = vrot.lane.b32.xlu0 %v1025, 88
        %v1348 = vpop.permute.xlu0 %1347
        %1349 = vrot.lane.b32.xlu0 %v1026, 88
        %v1350 = vpop.permute.xlu0 %1349
        %v1352 = vsel %vm1047, %v1336, 0
        %v1355 = vsel %vm1047, %v1338, 0
        %v1358 = vsel %vm1047, %v1340, 0
        %v1361 = vsel %vm1047, %v1342, 0
        %v1364 = vsel %vm1047, %v1344, 0
        %v1367 = vsel %vm1047, %v1346, 0
        %v1370 = vsel %vm1047, %v1348, 0
        %v1373 = vsel %vm1047, %v1350, 0
        %1375 = vmatprep.subr.bf16.mxu0 0
        %1376 = vmatpush1.bf16.xpose.msra.mxu0 0
        %1377 = vmatprep.subr.bf16.mxu0 0
        %1378 = vmatpush1.bf16.xpose.msra.mxu0 0
        %1379 = vmatprep.subr.bf16.mxu0 0
        %1380 = vmatpush1.bf16.xpose.msra.mxu0 0
        %1381 = vmatprep.subr.bf16.mxu0 0
        %1382 = vmatpush1.bf16.xpose.msra.mxu0 0
        %1383 = vmatprep.subr.bf16.mxu0 0
        %1384 = vmatpush1.bf16.xpose.msra.mxu0 %v1373
        %1385 = vmatprep.subr.bf16.mxu0 0
        %1386 = vmatpush1.bf16.xpose.msra.mxu0 %v1370
        %1387 = vmatprep.subr.bf16.mxu0 0
        %1388 = vmatpush1.bf16.xpose.msra.mxu0 %v1367
        %1389 = vmatprep.subr.bf16.mxu0 0
        %1390 = vmatpush1.bf16.xpose.msra.mxu0 %v1364
        %1391 = vmatprep.subr.bf16.mxu0 0
        %1392 = vmatpush2.bf16.xpose.msra.mxu0 0
        %1393 = vmatprep.subr.bf16.mxu0 0
        %1394 = vmatpush2.bf16.xpose.msra.mxu0 0
        %1395 = vmatprep.subr.bf16.mxu0 0
        %1396 = vmatpush2.bf16.xpose.msra.mxu0 0
        %1397 = vmatprep.subr.bf16.mxu0 0
        %1398 = vmatpush2.bf16.xpose.msra.mxu0 0
        %1399 = vmatprep.subr.bf16.mxu0 0
        %1400 = vmatpush2.bf16.xpose.msra.mxu0 0
        %1401 = vmatprep.subr.bf16.mxu0 0
        %1402 = vmatpush2.bf16.xpose.msra.mxu0 0
        %1403 = vmatprep.subr.bf16.mxu0 0
        %1404 = vmatpush2.bf16.xpose.msra.mxu0 0
        %1405 = vmatprep.subr.bf16.mxu0 0
        %1406 = vmatpush2.bf16.xpose.msra.mxu0 0
        %1407 = vmatprep.mubr.bf16.mxu0 0
        %1408 = vmatmul.mubr.bf16.gmra.mxu0 %v1352
        %v1409 = vpop.f32.mrf.mxu0
        %v1410 = vadd.f32 %v1327, %v1409
        %v1411 = vpop.f32.mrf.mxu0
        %v1412 = vpop.f32.mrf.mxu0
        %v1413 = vadd.f32 %v1328, %v1412
        %v1414 = vpop.f32.mrf.mxu0
        %1415 = vmatprep.mubr.bf16.mxu0 0
        %1416 = vmatmul.mubr.bf16.gmra.mxu0 %v1355
        %v1417 = vpop.f32.mrf.mxu0
        %v1418 = vadd.f32 %v1329, %v1417
        %v1419 = vpop.f32.mrf.mxu0
        %v1420 = vpop.f32.mrf.mxu0
        %v1421 = vadd.f32 %v1330, %v1420
        %v1422 = vpop.f32.mrf.mxu0
        %1423 = vmatprep.mubr.bf16.mxu0 0
        %1424 = vmatmul.mubr.bf16.gmra.mxu0 %v1358
        %v1425 = vpop.f32.mrf.mxu0
        %v1426 = vadd.f32 %v1331, %v1425
        %v1427 = vpop.f32.mrf.mxu0
        %v1428 = vpop.f32.mrf.mxu0
        %v1429 = vadd.f32 %v1332, %v1428
        %v1430 = vpop.f32.mrf.mxu0
        %1431 = vmatprep.mubr.bf16.mxu0 0
        %1432 = vmatmul.mubr.bf16.gmra.mxu0 %v1361
        %v1433 = vpop.f32.mrf.mxu0
        %v1434 = vadd.f32 %v1333, %v1433
        %v1435 = vpop.f32.mrf.mxu0
        %v1436 = vpop.f32.mrf.mxu0
        %v1437 = vadd.f32 %v1334, %v1436
        %v1438 = vpop.f32.mrf.mxu0
        %1439 = vdwg.mxu0
        %v1440 = vsel %vm841, %v1410, -inf
        %1441 = vmax.xlane.f32.xlu0 %v1440
        %v1442 = vpop.xlane.xlu0 %1441
        %v1443 = vsel %vm841, %v1413, -inf
        %1444 = vmax.xlane.f32.xlu0 %v1443
        %v1445 = vpop.xlane.xlu0 %1444
        %v1446 = vsel %vm841, %v1418, -inf
        %1447 = vmax.xlane.f32.xlu0 %v1446
        %v1448 = vpop.xlane.xlu0 %1447
        %v1449 = vsel %vm841, %v1421, -inf
        %1450 = vmax.xlane.f32.xlu0 %v1449
        %v1451 = vpop.xlane.xlu0 %1450
        %v1452 = vsel %vm841, %v1426, -inf
        %1453 = vmax.xlane.f32.xlu0 %v1452
        %v1454 = vpop.xlane.xlu0 %1453
        %v1455 = vsel %vm841, %v1429, -inf
        %1456 = vmax.xlane.f32.xlu0 %v1455
        %v1457 = vpop.xlane.xlu0 %1456
        %v1458 = vsel %vm841, %v1434, -inf
        %1459 = vmax.xlane.f32.xlu0 %v1458
        %v1460 = vpop.xlane.xlu0 %1459
        %v1461 = vsel %vm841, %v1437, -inf
        %1462 = vmax.xlane.f32.xlu0 %v1461
        %v1463 = vpop.xlane.xlu0 %1462
        %v1464 = vsub.f32 %v1410, %v1442
        %v1465 = vsub.f32 %v1413, %v1445
        %v1466 = vsub.f32 %v1418, %v1448
        %v1467 = vsub.f32 %v1421, %v1451
        %v1468 = vsub.f32 %v1426, %v1454
        %v1469 = vsub.f32 %v1429, %v1457
        %v1470 = vsub.f32 %v1434, %v1460
        %v1471 = vsub.f32 %v1437, %v1463
        %v1472 = vmul.f32 %v1464, 1.442695
        %v1473 = vpow.pop %v1472
        %v1474 = vmul.f32 %v1465, 1.442695
        %v1475 = vpow.pop %v1474
        %v1476 = vmul.f32 %v1466, 1.442695
        %v1477 = vpow.pop %v1476
        %v1478 = vmul.f32 %v1467, 1.442695
        %v1479 = vpow.pop %v1478
        %v1480 = vmul.f32 %v1468, 1.442695
        %v1481 = vpow.pop %v1480
        %v1482 = vmul.f32 %v1469, 1.442695
        %v1483 = vpow.pop %v1482
        %v1484 = vmul.f32 %v1470, 1.442695
        %v1485 = vpow.pop %v1484
        %v1486 = vmul.f32 %v1471, 1.442695
        %v1487 = vpow.pop %v1486
        %v1488 = vsel %vm841, %v1473, 0.0
        %1489 = vadd.xlane.f32.xlu0 %v1488
        %v1490 = vpop.xlane.xlu0 %1489
        %v1491 = vsel %vm841, %v1475, 0.0
        %1492 = vadd.xlane.f32.xlu0 %v1491
        %v1493 = vpop.xlane.xlu0 %1492
        %v1494 = vsel %vm841, %v1477, 0.0
        %1495 = vadd.xlane.f32.xlu0 %v1494
        %v1496 = vpop.xlane.xlu0 %1495
        %v1497 = vsel %vm841, %v1479, 0.0
        %1498 = vadd.xlane.f32.xlu0 %v1497
        %v1499 = vpop.xlane.xlu0 %1498
        %v1500 = vsel %vm841, %v1481, 0.0
        %1501 = vadd.xlane.f32.xlu0 %v1500
        %v1502 = vpop.xlane.xlu0 %1501
        %v1503 = vsel %vm841, %v1483, 0.0
        %1504 = vadd.xlane.f32.xlu0 %v1503
        %v1505 = vpop.xlane.xlu0 %1504
        %v1506 = vsel %vm841, %v1485, 0.0
        %1507 = vadd.xlane.f32.xlu0 %v1506
        %v1508 = vpop.xlane.xlu0 %1507
        %v1509 = vsel %vm841, %v1487, 0.0
        %1510 = vadd.xlane.f32.xlu0 %v1509
        %v1511 = vpop.xlane.xlu0 %1510
        %v1512 = vrcp.pop %v1490
        %v1513 = vrcp.pop %v1493
        %v1514 = vrcp.pop %v1496
        %v1515 = vrcp.pop %v1499
        %v1516 = vrcp.pop %v1502
        %v1517 = vrcp.pop %v1505
        %v1518 = vrcp.pop %v1508
        %v1519 = vrcp.pop %v1511
        %v1520 = vmul.f32 %v1473, %v1512
        %v1521 = vmul.f32 %v1475, %v1513
        %v1522 = vmul.f32 %v1477, %v1514
        %v1523 = vmul.f32 %v1479, %v1515
        %v1524 = vmul.f32 %v1481, %v1516
        %v1525 = vmul.f32 %v1483, %v1517
        %v1526 = vmul.f32 %v1485, %v1518
        %v1527 = vmul.f32 %v1487, %v1519
        %v1528 = vpack.c.bf16 %v1521, %v1520
        %v1529 = vpack.c.bf16 %v1523, %v1522
        %v1530 = vpack.c.bf16 %v1525, %v1524
        %v1531 = vpack.c.bf16 %v1527, %v1526
        %1532 = vrot.lane.b32.xlu0 %v1023, 56
        %v1533 = vpop.permute.xlu0 %1532
        %1534 = vrot.lane.b32.xlu0 %v1024, 56
        %v1535 = vpop.permute.xlu0 %1534
        %1536 = vrot.lane.b32.xlu0 %v1025, 56
        %v1537 = vpop.permute.xlu0 %1536
        %1538 = vrot.lane.b32.xlu0 %v1026, 56
        %v1539 = vpop.permute.xlu0 %1538
        %v1545 = vsel %vm841, %v1528, 0
        %v1548 = vsel %vm841, %v1529, 0
        %v1551 = vsel %vm841, %v1530, 0
        %v1554 = vsel %vm841, %v1531, 0
        %1556 = vmatprep.subr.bf16.mxu0 0
        %1557 = vmatpush1.bf16.msra.mxu0 0
        %1558 = vmatprep.subr.bf16.mxu0 0
        %1559 = vmatpush1.bf16.msra.mxu0 0
        %1560 = vmatprep.subr.bf16.mxu0 0
        %1561 = vmatpush1.bf16.msra.mxu0 0
        %1562 = vmatprep.subr.bf16.mxu0 0
        %1563 = vmatpush1.bf16.msra.mxu0 0
        %1564 = vmatprep.subr.bf16.mxu0 0
        %1565 = vmatpush1.bf16.msra.mxu0 %v1539
        %1566 = vmatprep.subr.bf16.mxu0 0
        %1567 = vmatpush1.bf16.msra.mxu0 %v1537
        %1568 = vmatprep.subr.bf16.mxu0 0
        %1569 = vmatpush1.bf16.msra.mxu0 %v1535
        %1570 = vmatprep.subr.bf16.mxu0 0
        %1571 = vmatpush1.bf16.msra.mxu0 %v1533
        %1572 = vmatprep.subr.bf16.mxu0 0
        %1573 = vmatpush2.bf16.msra.mxu0 0
        %1574 = vmatprep.subr.bf16.mxu0 0
        %1575 = vmatpush2.bf16.msra.mxu0 0
        %1576 = vmatprep.subr.bf16.mxu0 0
        %1577 = vmatpush2.bf16.msra.mxu0 0
        %1578 = vmatprep.subr.bf16.mxu0 0
        %1579 = vmatpush2.bf16.msra.mxu0 0
        %1580 = vmatprep.subr.bf16.mxu0 0
        %1581 = vmatpush2.bf16.msra.mxu0 0
        %1582 = vmatprep.subr.bf16.mxu0 0
        %1583 = vmatpush2.bf16.msra.mxu0 0
        %1584 = vmatprep.subr.bf16.mxu0 0
        %1585 = vmatpush2.bf16.msra.mxu0 0
        %1586 = vmatprep.subr.bf16.mxu0 0
        %1587 = vmatpush2.bf16.msra.mxu0 0
        %1588 = vmatprep.mubr.bf16.mxu0 0
        %1589 = vmatmul.mubr.bf16.gmra.mxu0 %v1545
        %v1590 = vpop.f32.mrf.mxu0
        %v1591 = vadd.f32 0.0, %v1590
        %v1592 = vpop.f32.mrf.mxu0
        %v1593 = vpop.f32.mrf.mxu0
        %v1594 = vadd.f32 0.0, %v1593
        %v1595 = vpop.f32.mrf.mxu0
        %1596 = vmatprep.mubr.bf16.mxu0 0
        %1597 = vmatmul.mubr.bf16.gmra.mxu0 %v1548
        %v1598 = vpop.f32.mrf.mxu0
        %v1599 = vadd.f32 0.0, %v1598
        %v1600 = vpop.f32.mrf.mxu0
        %v1601 = vpop.f32.mrf.mxu0
        %v1602 = vadd.f32 0.0, %v1601
        %v1603 = vpop.f32.mrf.mxu0
        %1604 = vmatprep.mubr.bf16.mxu0 0
        %1605 = vmatmul.mubr.bf16.gmra.mxu0 %v1551
        %v1606 = vpop.f32.mrf.mxu0
        %v1607 = vadd.f32 0.0, %v1606
        %v1608 = vpop.f32.mrf.mxu0
        %v1609 = vpop.f32.mrf.mxu0
        %v1610 = vadd.f32 0.0, %v1609
        %v1611 = vpop.f32.mrf.mxu0
        %1612 = vmatprep.mubr.bf16.mxu0 0
        %1613 = vmatmul.mubr.bf16.gmra.mxu0 %v1554
        %v1614 = vpop.f32.mrf.mxu0
        %v1615 = vadd.f32 0.0, %v1614
        %v1616 = vpop.f32.mrf.mxu0
        %v1617 = vpop.f32.mrf.mxu0
        %v1618 = vadd.f32 0.0, %v1617
        %v1619 = vpop.f32.mrf.mxu0
        %1620 = vdwg.mxu0
        %1629 = vrot.lane.b32.xlu0 %v1591, 8
        %v1630 = vpop.permute.xlu0 %1629
        %1631 = vrot.lane.b32.xlu0 %v1594, 8
        %v1632 = vpop.permute.xlu0 %1631
        %1633 = vrot.lane.b32.xlu0 %v1599, 8
        %v1634 = vpop.permute.xlu0 %1633
        %1635 = vrot.lane.b32.xlu0 %v1602, 8
        %v1636 = vpop.permute.xlu0 %1635
        %1637 = vrot.lane.b32.xlu0 %v1607, 8
        %v1638 = vpop.permute.xlu0 %1637
        %1639 = vrot.lane.b32.xlu0 %v1610, 8
        %v1640 = vpop.permute.xlu0 %1639
        %1641 = vrot.lane.b32.xlu0 %v1615, 8
        %v1642 = vpop.permute.xlu0 %1641
        %1643 = vrot.lane.b32.xlu0 %v1618, 8
        %v1644 = vpop.permute.xlu0 %1643
        %vm1653 = vcmask 130112
        %1654 = vst.msk [vmem:[#allocation2] sm:$0xff] %vm1653, %v1630
        %1655 = vst.msk [vmem:[#allocation2 + $0x8] sm:$0xff] %vm1653, %v1632
        %1656 = vst.msk [vmem:[#allocation2 + $0x10] sm:$0xff] %vm1653, %v1634
        %1657 = vst.msk [vmem:[#allocation2 + $0x18] sm:$0xff] %vm1653, %v1636
        %1658 = vst.msk [vmem:[#allocation2 + $0x20] sm:$0xff] %vm1653, %v1638
        %1659 = vst.msk [vmem:[#allocation2 + $0x28] sm:$0xff] %vm1653, %v1640
        %1660 = vst.msk [vmem:[#allocation2 + $0x30] sm:$0xff] %vm1653, %v1642
        %1661 = vst.msk [vmem:[#allocation2 + $0x38] sm:$0xff] %vm1653, %v1644
        %s1662 = scalar_lea.vmem [#allocation9], 128
        %v1663 = vld [vmem:[%s1662] sm:$0xff]
        %v1664 = vld [vmem:[%s1662 + $0x8] sm:$0xff]
        %v1665 = vld [vmem:[%s1662 + $0x10] sm:$0xff]
        %v1666 = vld [vmem:[%s1662 + $0x18] sm:$0xff]
        %v1667 = vld [vmem:[%s1662 + $0x20] sm:$0xff]
        %v1668 = vld [vmem:[%s1662 + $0x28] sm:$0xff]
        %v1669 = vld [vmem:[%s1662 + $0x30] sm:$0xff]
        %v1670 = vld [vmem:[%s1662 + $0x38] sm:$0xff]
        %1671 = vrot.lane.b32.xlu0 %v1023, 112
        %v1672 = vpop.permute.xlu0 %1671
        %1673 = vrot.lane.b32.xlu0 %v1024, 112
        %v1674 = vpop.permute.xlu0 %1673
        %1675 = vrot.lane.b32.xlu0 %v1025, 112
        %v1676 = vpop.permute.xlu0 %1675
        %1677 = vrot.lane.b32.xlu0 %v1026, 112
        %v1678 = vpop.permute.xlu0 %1677
        %1679 = vrot.lane.b32.xlu0 %v1023, 80
        %v1680 = vpop.permute.xlu0 %1679
        %1681 = vrot.lane.b32.xlu0 %v1024, 80
        %v1682 = vpop.permute.xlu0 %1681
        %1683 = vrot.lane.b32.xlu0 %v1025, 80
        %v1684 = vpop.permute.xlu0 %1683
        %1685 = vrot.lane.b32.xlu0 %v1026, 80
        %v1686 = vpop.permute.xlu0 %1685
        %v1688 = vsel %vm1047, %v1672, 0
        %v1691 = vsel %vm1047, %v1674, 0
        %v1694 = vsel %vm1047, %v1676, 0
        %v1697 = vsel %vm1047, %v1678, 0
        %v1700 = vsel %vm1047, %v1680, 0
        %v1703 = vsel %vm1047, %v1682, 0
        %v1706 = vsel %vm1047, %v1684, 0
        %v1709 = vsel %vm1047, %v1686, 0
        %1711 = vmatprep.subr.bf16.mxu0 0
        %1712 = vmatpush1.bf16.xpose.msra.mxu0 0
        %1713 = vmatprep.subr.bf16.mxu0 0
        %1714 = vmatpush1.bf16.xpose.msra.mxu0 0
        %1715 = vmatprep.subr.bf16.mxu0 0
        %1716 = vmatpush1.bf16.xpose.msra.mxu0 0
        %1717 = vmatprep.subr.bf16.mxu0 0
        %1718 = vmatpush1.bf16.xpose.msra.mxu0 0
        %1719 = vmatprep.subr.bf16.mxu0 0
        %1720 = vmatpush1.bf16.xpose.msra.mxu0 %v1709
        %1721 = vmatprep.subr.bf16.mxu0 0
        %1722 = vmatpush1.bf16.xpose.msra.mxu0 %v1706
        %1723 = vmatprep.subr.bf16.mxu0 0
        %1724 = vmatpush1.bf16.xpose.msra.mxu0 %v1703
        %1725 = vmatprep.subr.bf16.mxu0 0
        %1726 = vmatpush1.bf16.xpose.msra.mxu0 %v1700
        %1727 = vmatprep.subr.bf16.mxu0 0
        %1728 = vmatpush2.bf16.xpose.msra.mxu0 0
        %1729 = vmatprep.subr.bf16.mxu0 0
        %1730 = vmatpush2.bf16.xpose.msra.mxu0 0
        %1731 = vmatprep.subr.bf16.mxu0 0
        %1732 = vmatpush2.bf16.xpose.msra.mxu0 0
        %1733 = vmatprep.subr.bf16.mxu0 0
        %1734 = vmatpush2.bf16.xpose.msra.mxu0 0
        %1735 = vmatprep.subr.bf16.mxu0 0
        %1736 = vmatpush2.bf16.xpose.msra.mxu0 0
        %1737 = vmatprep.subr.bf16.mxu0 0
        %1738 = vmatpush2.bf16.xpose.msra.mxu0 0
        %1739 = vmatprep.subr.bf16.mxu0 0
        %1740 = vmatpush2.bf16.xpose.msra.mxu0 0
        %1741 = vmatprep.subr.bf16.mxu0 0
        %1742 = vmatpush2.bf16.xpose.msra.mxu0 0
        %1743 = vmatprep.mubr.bf16.mxu0 0
        %1744 = vmatmul.mubr.bf16.gmra.mxu0 %v1688
        %v1745 = vpop.f32.mrf.mxu0
        %v1746 = vadd.f32 %v1663, %v1745
        %v1747 = vpop.f32.mrf.mxu0
        %v1748 = vpop.f32.mrf.mxu0
        %v1749 = vadd.f32 %v1664, %v1748
        %v1750 = vpop.f32.mrf.mxu0
        %1751 = vmatprep.mubr.bf16.mxu0 0
        %1752 = vmatmul.mubr.bf16.gmra.mxu0 %v1691
        %v1753 = vpop.f32.mrf.mxu0
        %v1754 = vadd.f32 %v1665, %v1753
        %v1755 = vpop.f32.mrf.mxu0
        %v1756 = vpop.f32.mrf.mxu0
        %v1757 = vadd.f32 %v1666, %v1756
        %v1758 = vpop.f32.mrf.mxu0
        %1759 = vmatprep.mubr.bf16.mxu0 0
        %1760 = vmatmul.mubr.bf16.gmra.mxu0 %v1694
        %v1761 = vpop.f32.mrf.mxu0
        %v1762 = vadd.f32 %v1667, %v1761
        %v1763 = vpop.f32.mrf.mxu0
        %v1764 = vpop.f32.mrf.mxu0
        %v1765 = vadd.f32 %v1668, %v1764
        %v1766 = vpop.f32.mrf.mxu0
        %1767 = vmatprep.mubr.bf16.mxu0 0
        %1768 = vmatmul.mubr.bf16.gmra.mxu0 %v1697
        %v1769 = vpop.f32.mrf.mxu0
        %v1770 = vadd.f32 %v1669, %v1769
        %v1771 = vpop.f32.mrf.mxu0
        %v1772 = vpop.f32.mrf.mxu0
        %v1773 = vadd.f32 %v1670, %v1772
        %v1774 = vpop.f32.mrf.mxu0
        %1775 = vdwg.mxu0
        %v1776 = vsel %vm841, %v1746, -inf
        %1777 = vmax.xlane.f32.xlu0 %v1776
        %v1778 = vpop.xlane.xlu0 %1777
        %v1779 = vsel %vm841, %v1749, -inf
        %1780 = vmax.xlane.f32.xlu0 %v1779
        %v1781 = vpop.xlane.xlu0 %1780
        %v1782 = vsel %vm841, %v1754, -inf
        %1783 = vmax.xlane.f32.xlu0 %v1782
        %v1784 = vpop.xlane.xlu0 %1783
        %v1785 = vsel %vm841, %v1757, -inf
        %1786 = vmax.xlane.f32.xlu0 %v1785
        %v1787 = vpop.xlane.xlu0 %1786
        %v1788 = vsel %vm841, %v1762, -inf
        %1789 = vmax.xlane.f32.xlu0 %v1788
        %v1790 = vpop.xlane.xlu0 %1789
        %v1791 = vsel %vm841, %v1765, -inf
        %1792 = vmax.xlane.f32.xlu0 %v1791
        %v1793 = vpop.xlane.xlu0 %1792
        %v1794 = vsel %vm841, %v1770, -inf
        %1795 = vmax.xlane.f32.xlu0 %v1794
        %v1796 = vpop.xlane.xlu0 %1795
        %v1797 = vsel %vm841, %v1773, -inf
        %1798 = vmax.xlane.f32.xlu0 %v1797
        %v1799 = vpop.xlane.xlu0 %1798
        %v1800 = vsub.f32 %v1746, %v1778
        %v1801 = vsub.f32 %v1749, %v1781
        %v1802 = vsub.f32 %v1754, %v1784
        %v1803 = vsub.f32 %v1757, %v1787
        %v1804 = vsub.f32 %v1762, %v1790
        %v1805 = vsub.f32 %v1765, %v1793
        %v1806 = vsub.f32 %v1770, %v1796
        %v1807 = vsub.f32 %v1773, %v1799
        %v1808 = vmul.f32 %v1800, 1.442695
        %v1809 = vpow.pop %v1808
        %v1810 = vmul.f32 %v1801, 1.442695
        %v1811 = vpow.pop %v1810
        %v1812 = vmul.f32 %v1802, 1.442695
        %v1813 = vpow.pop %v1812
        %v1814 = vmul.f32 %v1803, 1.442695
        %v1815 = vpow.pop %v1814
        %v1816 = vmul.f32 %v1804, 1.442695
        %v1817 = vpow.pop %v1816
        %v1818 = vmul.f32 %v1805, 1.442695
        %v1819 = vpow.pop %v1818
        %v1820 = vmul.f32 %v1806, 1.442695
        %v1821 = vpow.pop %v1820
        %v1822 = vmul.f32 %v1807, 1.442695
        %v1823 = vpow.pop %v1822
        %v1824 = vsel %vm841, %v1809, 0.0
        %1825 = vadd.xlane.f32.xlu0 %v1824
        %v1826 = vpop.xlane.xlu0 %1825
        %v1827 = vsel %vm841, %v1811, 0.0
        %1828 = vadd.xlane.f32.xlu0 %v1827
        %v1829 = vpop.xlane.xlu0 %1828
        %v1830 = vsel %vm841, %v1813, 0.0
        %1831 = vadd.xlane.f32.xlu0 %v1830
        %v1832 = vpop.xlane.xlu0 %1831
        %v1833 = vsel %vm841, %v1815, 0.0
        %1834 = vadd.xlane.f32.xlu0 %v1833
        %v1835 = vpop.xlane.xlu0 %1834
        %v1836 = vsel %vm841, %v1817, 0.0
        %1837 = vadd.xlane.f32.xlu0 %v1836
        %v1838 = vpop.xlane.xlu0 %1837
        %v1839 = vsel %vm841, %v1819, 0.0
        %1840 = vadd.xlane.f32.xlu0 %v1839
        %v1841 = vpop.xlane.xlu0 %1840
        %v1842 = vsel %vm841, %v1821, 0.0
        %1843 = vadd.xlane.f32.xlu0 %v1842
        %v1844 = vpop.xlane.xlu0 %1843
        %v1845 = vsel %vm841, %v1823, 0.0
        %1846 = vadd.xlane.f32.xlu0 %v1845
        %v1847 = vpop.xlane.xlu0 %1846
        %v1848 = vrcp.pop %v1826
        %v1849 = vrcp.pop %v1829
        %v1850 = vrcp.pop %v1832
        %v1851 = vrcp.pop %v1835
        %v1852 = vrcp.pop %v1838
        %v1853 = vrcp.pop %v1841
        %v1854 = vrcp.pop %v1844
        %v1855 = vrcp.pop %v1847
        %v1856 = vmul.f32 %v1809, %v1848
        %v1857 = vmul.f32 %v1811, %v1849
        %v1858 = vmul.f32 %v1813, %v1850
        %v1859 = vmul.f32 %v1815, %v1851
        %v1860 = vmul.f32 %v1817, %v1852
        %v1861 = vmul.f32 %v1819, %v1853
        %v1862 = vmul.f32 %v1821, %v1854
        %v1863 = vmul.f32 %v1823, %v1855
        %v1864 = vpack.c.bf16 %v1857, %v1856
        %v1865 = vpack.c.bf16 %v1859, %v1858
        %v1866 = vpack.c.bf16 %v1861, %v1860
        %v1867 = vpack.c.bf16 %v1863, %v1862
        %1868 = vrot.lane.b32.xlu0 %v1023, 48
        %v1869 = vpop.permute.xlu0 %1868
        %1870 = vrot.lane.b32.xlu0 %v1024, 48
        %v1871 = vpop.permute.xlu0 %1870
        %1872 = vrot.lane.b32.xlu0 %v1025, 48
        %v1873 = vpop.permute.xlu0 %1872
        %1874 = vrot.lane.b32.xlu0 %v1026, 48
        %v1875 = vpop.permute.xlu0 %1874
        %v1881 = vsel %vm841, %v1864, 0
        %v1884 = vsel %vm841, %v1865, 0
        %v1887 = vsel %vm841, %v1866, 0
        %v1890 = vsel %vm841, %v1867, 0
        %1892 = vmatprep.subr.bf16.mxu0 0
        %1893 = vmatpush1.bf16.msra.mxu0 0
        %1894 = vmatprep.subr.bf16.mxu0 0
        %1895 = vmatpush1.bf16.msra.mxu0 0
        %1896 = vmatprep.subr.bf16.mxu0 0
        %1897 = vmatpush1.bf16.msra.mxu0 0
        %1898 = vmatprep.subr.bf16.mxu0 0
        %1899 = vmatpush1.bf16.msra.mxu0 0
        %1900 = vmatprep.subr.bf16.mxu0 0
        %1901 = vmatpush1.bf16.msra.mxu0 %v1875
        %1902 = vmatprep.subr.bf16.mxu0 0
        %1903 = vmatpush1.bf16.msra.mxu0 %v1873
        %1904 = vmatprep.subr.bf16.mxu0 0
        %1905 = vmatpush1.bf16.msra.mxu0 %v1871
        %1906 = vmatprep.subr.bf16.mxu0 0
        %1907 = vmatpush1.bf16.msra.mxu0 %v1869
        %1908 = vmatprep.subr.bf16.mxu0 0
        %1909 = vmatpush2.bf16.msra.mxu0 0
        %1910 = vmatprep.subr.bf16.mxu0 0
        %1911 = vmatpush2.bf16.msra.mxu0 0
        %1912 = vmatprep.subr.bf16.mxu0 0
        %1913 = vmatpush2.bf16.msra.mxu0 0
        %1914 = vmatprep.subr.bf16.mxu0 0
        %1915 = vmatpush2.bf16.msra.mxu0 0
        %1916 = vmatprep.subr.bf16.mxu0 0
        %1917 = vmatpush2.bf16.msra.mxu0 0
        %1918 = vmatprep.subr.bf16.mxu0 0
        %1919 = vmatpush2.bf16.msra.mxu0 0
        %1920 = vmatprep.subr.bf16.mxu0 0
        %1921 = vmatpush2.bf16.msra.mxu0 0
        %1922 = vmatprep.subr.bf16.mxu0 0
        %1923 = vmatpush2.bf16.msra.mxu0 0
        %1924 = vmatprep.mubr.bf16.mxu0 0
        %1925 = vmatmul.mubr.bf16.gmra.mxu0 %v1881
        %v1926 = vpop.f32.mrf.mxu0
        %v1927 = vadd.f32 0.0, %v1926
        %v1928 = vpop.f32.mrf.mxu0
        %v1929 = vpop.f32.mrf.mxu0
        %v1930 = vadd.f32 0.0, %v1929
        %v1931 = vpop.f32.mrf.mxu0
        %1932 = vmatprep.mubr.bf16.mxu0 0
        %1933 = vmatmul.mubr.bf16.gmra.mxu0 %v1884
        %v1934 = vpop.f32.mrf.mxu0
        %v1935 = vadd.f32 0.0, %v1934
        %v1936 = vpop.f32.mrf.mxu0
        %v1937 = vpop.f32.mrf.mxu0
        %v1938 = vadd.f32 0.0, %v1937
        %v1939 = vpop.f32.mrf.mxu0
        %1940 = vmatprep.mubr.bf16.mxu0 0
        %1941 = vmatmul.mubr.bf16.gmra.mxu0 %v1887
        %v1942 = vpop.f32.mrf.mxu0
        %v1943 = vadd.f32 0.0, %v1942
        %v1944 = vpop.f32.mrf.mxu0
        %v1945 = vpop.f32.mrf.mxu0
        %v1946 = vadd.f32 0.0, %v1945
        %v1947 = vpop.f32.mrf.mxu0
        %1948 = vmatprep.mubr.bf16.mxu0 0
        %1949 = vmatmul.mubr.bf16.gmra.mxu0 %v1890
        %v1950 = vpop.f32.mrf.mxu0
        %v1951 = vadd.f32 0.0, %v1950
        %v1952 = vpop.f32.mrf.mxu0
        %v1953 = vpop.f32.mrf.mxu0
        %v1954 = vadd.f32 0.0, %v1953
        %v1955 = vpop.f32.mrf.mxu0
        %1956 = vdwg.mxu0
        %1965 = vrot.lane.b32.xlu0 %v1927, 16
        %v1966 = vpop.permute.xlu0 %1965
        %1967 = vrot.lane.b32.xlu0 %v1930, 16
        %v1968 = vpop.permute.xlu0 %1967
        %1969 = vrot.lane.b32.xlu0 %v1935, 16
        %v1970 = vpop.permute.xlu0 %1969
        %1971 = vrot.lane.b32.xlu0 %v1938, 16
        %v1972 = vpop.permute.xlu0 %1971
        %1973 = vrot.lane.b32.xlu0 %v1943, 16
        %v1974 = vpop.permute.xlu0 %1973
        %1975 = vrot.lane.b32.xlu0 %v1946, 16
        %v1976 = vpop.permute.xlu0 %1975
        %1977 = vrot.lane.b32.xlu0 %v1951, 16
        %v1978 = vpop.permute.xlu0 %1977
        %1979 = vrot.lane.b32.xlu0 %v1954, 16
        %v1980 = vpop.permute.xlu0 %1979
        %vm1989 = vcmask 195712
        %1990 = vst.msk [vmem:[#allocation2] sm:$0xff] %vm1989, %v1966
        %1991 = vst.msk [vmem:[#allocation2 + $0x8] sm:$0xff] %vm1989, %v1968
        %1992 = vst.msk [vmem:[#allocation2 + $0x10] sm:$0xff] %vm1989, %v1970
        %1993 = vst.msk [vmem:[#allocation2 + $0x18] sm:$0xff] %vm1989, %v1972
        %1994 = vst.msk [vmem:[#allocation2 + $0x20] sm:$0xff] %vm1989, %v1974
        %1995 = vst.msk [vmem:[#allocation2 + $0x28] sm:$0xff] %vm1989, %v1976
        %1996 = vst.msk [vmem:[#allocation2 + $0x30] sm:$0xff] %vm1989, %v1978
        %1997 = vst.msk [vmem:[#allocation2 + $0x38] sm:$0xff] %vm1989, %v1980
        %s1998 = scalar_lea.vmem [#allocation9], 192
        %v1999 = vld [vmem:[%s1998] sm:$0xff]
        %v2000 = vld [vmem:[%s1998 + $0x8] sm:$0xff]
        %v2001 = vld [vmem:[%s1998 + $0x10] sm:$0xff]
        %v2002 = vld [vmem:[%s1998 + $0x18] sm:$0xff]
        %v2003 = vld [vmem:[%s1998 + $0x20] sm:$0xff]
        %v2004 = vld [vmem:[%s1998 + $0x28] sm:$0xff]
        %v2005 = vld [vmem:[%s1998 + $0x30] sm:$0xff]
        %v2006 = vld [vmem:[%s1998 + $0x38] sm:$0xff]
        %2007 = vrot.lane.b32.xlu0 %v1023, 104
        %v2008 = vpop.permute.xlu0 %2007
        %2009 = vrot.lane.b32.xlu0 %v1024, 104
        %v2010 = vpop.permute.xlu0 %2009
        %2011 = vrot.lane.b32.xlu0 %v1025, 104
        %v2012 = vpop.permute.xlu0 %2011
        %2013 = vrot.lane.b32.xlu0 %v1026, 104
        %v2014 = vpop.permute.xlu0 %2013
        %2015 = vrot.lane.b32.xlu0 %v1023, 72
        %v2016 = vpop.permute.xlu0 %2015
        %2017 = vrot.lane.b32.xlu0 %v1024, 72
        %v2018 = vpop.permute.xlu0 %2017
        %2019 = vrot.lane.b32.xlu0 %v1025, 72
        %v2020 = vpop.permute.xlu0 %2019
        %2021 = vrot.lane.b32.xlu0 %v1026, 72
        %v2022 = vpop.permute.xlu0 %2021
        %v2024 = vsel %vm1047, %v2008, 0
        %v2027 = vsel %vm1047, %v2010, 0
        %v2030 = vsel %vm1047, %v2012, 0
        %v2033 = vsel %vm1047, %v2014, 0
        %v2036 = vsel %vm1047, %v2016, 0
        %v2039 = vsel %vm1047, %v2018, 0
        %v2042 = vsel %vm1047, %v2020, 0
        %v2045 = vsel %vm1047, %v2022, 0
        %2047 = vmatprep.subr.bf16.mxu0 0
        %2048 = vmatpush1.bf16.xpose.msra.mxu0 0
        %2049 = vmatprep.subr.bf16.mxu0 0
        %2050 = vmatpush1.bf16.xpose.msra.mxu0 0
        %2051 = vmatprep.subr.bf16.mxu0 0
        %2052 = vmatpush1.bf16.xpose.msra.mxu0 0
        %2053 = vmatprep.subr.bf16.mxu0 0
        %2054 = vmatpush1.bf16.xpose.msra.mxu0 0
        %2055 = vmatprep.subr.bf16.mxu0 0
        %2056 = vmatpush1.bf16.xpose.msra.mxu0 %v2045
        %2057 = vmatprep.subr.bf16.mxu0 0
        %2058 = vmatpush1.bf16.xpose.msra.mxu0 %v2042
        %2059 = vmatprep.subr.bf16.mxu0 0
        %2060 = vmatpush1.bf16.xpose.msra.mxu0 %v2039
        %2061 = vmatprep.subr.bf16.mxu0 0
        %2062 = vmatpush1.bf16.xpose.msra.mxu0 %v2036
        %2063 = vmatprep.subr.bf16.mxu0 0
        %2064 = vmatpush2.bf16.xpose.msra.mxu0 0
        %2065 = vmatprep.subr.bf16.mxu0 0
        %2066 = vmatpush2.bf16.xpose.msra.mxu0 0
        %2067 = vmatprep.subr.bf16.mxu0 0
        %2068 = vmatpush2.bf16.xpose.msra.mxu0 0
        %2069 = vmatprep.subr.bf16.mxu0 0
        %2070 = vmatpush2.bf16.xpose.msra.mxu0 0
        %2071 = vmatprep.subr.bf16.mxu0 0
        %2072 = vmatpush2.bf16.xpose.msra.mxu0 0
        %2073 = vmatprep.subr.bf16.mxu0 0
        %2074 = vmatpush2.bf16.xpose.msra.mxu0 0
        %2075 = vmatprep.subr.bf16.mxu0 0
        %2076 = vmatpush2.bf16.xpose.msra.mxu0 0
        %2077 = vmatprep.subr.bf16.mxu0 0
        %2078 = vmatpush2.bf16.xpose.msra.mxu0 0
        %2079 = vmatprep.mubr.bf16.mxu0 0
        %2080 = vmatmul.mubr.bf16.gmra.mxu0 %v2024
        %v2081 = vpop.f32.mrf.mxu0
        %v2082 = vadd.f32 %v1999, %v2081
        %v2083 = vpop.f32.mrf.mxu0
        %v2084 = vpop.f32.mrf.mxu0
        %v2085 = vadd.f32 %v2000, %v2084
        %v2086 = vpop.f32.mrf.mxu0
        %2087 = vmatprep.mubr.bf16.mxu0 0
        %2088 = vmatmul.mubr.bf16.gmra.mxu0 %v2027
        %v2089 = vpop.f32.mrf.mxu0
        %v2090 = vadd.f32 %v2001, %v2089
        %v2091 = vpop.f32.mrf.mxu0
        %v2092 = vpop.f32.mrf.mxu0
        %v2093 = vadd.f32 %v2002, %v2092
        %v2094 = vpop.f32.mrf.mxu0
        %2095 = vmatprep.mubr.bf16.mxu0 0
        %2096 = vmatmul.mubr.bf16.gmra.mxu0 %v2030
        %v2097 = vpop.f32.mrf.mxu0
        %v2098 = vadd.f32 %v2003, %v2097
        %v2099 = vpop.f32.mrf.mxu0
        %v2100 = vpop.f32.mrf.mxu0
        %v2101 = vadd.f32 %v2004, %v2100
        %v2102 = vpop.f32.mrf.mxu0
        %2103 = vmatprep.mubr.bf16.mxu0 0
        %2104 = vmatmul.mubr.bf16.gmra.mxu0 %v2033
        %v2105 = vpop.f32.mrf.mxu0
        %v2106 = vadd.f32 %v2005, %v2105
        %v2107 = vpop.f32.mrf.mxu0
        %v2108 = vpop.f32.mrf.mxu0
        %v2109 = vadd.f32 %v2006, %v2108
        %v2110 = vpop.f32.mrf.mxu0
        %2111 = vdwg.mxu0
        %v2112 = vsel %vm841, %v2082, -inf
        %2113 = vmax.xlane.f32.xlu0 %v2112
        %v2114 = vpop.xlane.xlu0 %2113
        %v2115 = vsel %vm841, %v2085, -inf
        %2116 = vmax.xlane.f32.xlu0 %v2115
        %v2117 = vpop.xlane.xlu0 %2116
        %v2118 = vsel %vm841, %v2090, -inf
        %2119 = vmax.xlane.f32.xlu0 %v2118
        %v2120 = vpop.xlane.xlu0 %2119
        %v2121 = vsel %vm841, %v2093, -inf
        %2122 = vmax.xlane.f32.xlu0 %v2121
        %v2123 = vpop.xlane.xlu0 %2122
        %v2124 = vsel %vm841, %v2098, -inf
        %2125 = vmax.xlane.f32.xlu0 %v2124
        %v2126 = vpop.xlane.xlu0 %2125
        %v2127 = vsel %vm841, %v2101, -inf
        %2128 = vmax.xlane.f32.xlu0 %v2127
        %v2129 = vpop.xlane.xlu0 %2128
        %v2130 = vsel %vm841, %v2106, -inf
        %2131 = vmax.xlane.f32.xlu0 %v2130
        %v2132 = vpop.xlane.xlu0 %2131
        %v2133 = vsel %vm841, %v2109, -inf
        %2134 = vmax.xlane.f32.xlu0 %v2133
        %v2135 = vpop.xlane.xlu0 %2134
        %v2136 = vsub.f32 %v2082, %v2114
        %v2137 = vsub.f32 %v2085, %v2117
        %v2138 = vsub.f32 %v2090, %v2120
        %v2139 = vsub.f32 %v2093, %v2123
        %v2140 = vsub.f32 %v2098, %v2126
        %v2141 = vsub.f32 %v2101, %v2129
        %v2142 = vsub.f32 %v2106, %v2132
        %v2143 = vsub.f32 %v2109, %v2135
        %v2144 = vmul.f32 %v2136, 1.442695
        %v2145 = vpow.pop %v2144
        %v2146 = vmul.f32 %v2137, 1.442695
        %v2147 = vpow.pop %v2146
        %v2148 = vmul.f32 %v2138, 1.442695
        %v2149 = vpow.pop %v2148
        %v2150 = vmul.f32 %v2139, 1.442695
        %v2151 = vpow.pop %v2150
        %v2152 = vmul.f32 %v2140, 1.442695
        %v2153 = vpow.pop %v2152
        %v2154 = vmul.f32 %v2141, 1.442695
        %v2155 = vpow.pop %v2154
        %v2156 = vmul.f32 %v2142, 1.442695
        %v2157 = vpow.pop %v2156
        %v2158 = vmul.f32 %v2143, 1.442695
        %v2159 = vpow.pop %v2158
        %v2160 = vsel %vm841, %v2145, 0.0
        %2161 = vadd.xlane.f32.xlu0 %v2160
        %v2162 = vpop.xlane.xlu0 %2161
        %v2163 = vsel %vm841, %v2147, 0.0
        %2164 = vadd.xlane.f32.xlu0 %v2163
        %v2165 = vpop.xlane.xlu0 %2164
        %v2166 = vsel %vm841, %v2149, 0.0
        %2167 = vadd.xlane.f32.xlu0 %v2166
        %v2168 = vpop.xlane.xlu0 %2167
        %v2169 = vsel %vm841, %v2151, 0.0
        %2170 = vadd.xlane.f32.xlu0 %v2169
        %v2171 = vpop.xlane.xlu0 %2170
        %v2172 = vsel %vm841, %v2153, 0.0
        %2173 = vadd.xlane.f32.xlu0 %v2172
        %v2174 = vpop.xlane.xlu0 %2173
        %v2175 = vsel %vm841, %v2155, 0.0
        %2176 = vadd.xlane.f32.xlu0 %v2175
        %v2177 = vpop.xlane.xlu0 %2176
        %v2178 = vsel %vm841, %v2157, 0.0
        %2179 = vadd.xlane.f32.xlu0 %v2178
        %v2180 = vpop.xlane.xlu0 %2179
        %v2181 = vsel %vm841, %v2159, 0.0
        %2182 = vadd.xlane.f32.xlu0 %v2181
        %v2183 = vpop.xlane.xlu0 %2182
        %v2184 = vrcp.pop %v2162
        %v2185 = vrcp.pop %v2165
        %v2186 = vrcp.pop %v2168
        %v2187 = vrcp.pop %v2171
        %v2188 = vrcp.pop %v2174
        %v2189 = vrcp.pop %v2177
        %v2190 = vrcp.pop %v2180
        %v2191 = vrcp.pop %v2183
        %v2192 = vmul.f32 %v2145, %v2184
        %v2193 = vmul.f32 %v2147, %v2185
        %v2194 = vmul.f32 %v2149, %v2186
        %v2195 = vmul.f32 %v2151, %v2187
        %v2196 = vmul.f32 %v2153, %v2188
        %v2197 = vmul.f32 %v2155, %v2189
        %v2198 = vmul.f32 %v2157, %v2190
        %v2199 = vmul.f32 %v2159, %v2191
        %v2200 = vpack.c.bf16 %v2193, %v2192
        %v2201 = vpack.c.bf16 %v2195, %v2194
        %v2202 = vpack.c.bf16 %v2197, %v2196
        %v2203 = vpack.c.bf16 %v2199, %v2198
        %2204 = vrot.lane.b32.xlu0 %v1023, 40
        %v2205 = vpop.permute.xlu0 %2204
        %2206 = vrot.lane.b32.xlu0 %v1024, 40
        %v2207 = vpop.permute.xlu0 %2206
        %2208 = vrot.lane.b32.xlu0 %v1025, 40
        %v2209 = vpop.permute.xlu0 %2208
        %2210 = vrot.lane.b32.xlu0 %v1026, 40
        %v2211 = vpop.permute.xlu0 %2210
        %v2217 = vsel %vm841, %v2200, 0
        %v2220 = vsel %vm841, %v2201, 0
        %v2223 = vsel %vm841, %v2202, 0
        %v2226 = vsel %vm841, %v2203, 0
        %2228 = vmatprep.subr.bf16.mxu0 0
        %2229 = vmatpush1.bf16.msra.mxu0 0
        %2230 = vmatprep.subr.bf16.mxu0 0
        %2231 = vmatpush1.bf16.msra.mxu0 0
        %2232 = vmatprep.subr.bf16.mxu0 0
        %2233 = vmatpush1.bf16.msra.mxu0 0
        %2234 = vmatprep.subr.bf16.mxu0 0
        %2235 = vmatpush1.bf16.msra.mxu0 0
        %2236 = vmatprep.subr.bf16.mxu0 0
        %2237 = vmatpush1.bf16.msra.mxu0 %v2211
        %2238 = vmatprep.subr.bf16.mxu0 0
        %2239 = vmatpush1.bf16.msra.mxu0 %v2209
        %2240 = vmatprep.subr.bf16.mxu0 0
        %2241 = vmatpush1.bf16.msra.mxu0 %v2207
        %2242 = vmatprep.subr.bf16.mxu0 0
        %2243 = vmatpush1.bf16.msra.mxu0 %v2205
        %2244 = vmatprep.subr.bf16.mxu0 0
        %2245 = vmatpush2.bf16.msra.mxu0 0
        %2246 = vmatprep.subr.bf16.mxu0 0
        %2247 = vmatpush2.bf16.msra.mxu0 0
        %2248 = vmatprep.subr.bf16.mxu0 0
        %2249 = vmatpush2.bf16.msra.mxu0 0
        %2250 = vmatprep.subr.bf16.mxu0 0
        %2251 = vmatpush2.bf16.msra.mxu0 0
        %2252 = vmatprep.subr.bf16.mxu0 0
        %2253 = vmatpush2.bf16.msra.mxu0 0
        %2254 = vmatprep.subr.bf16.mxu0 0
        %2255 = vmatpush2.bf16.msra.mxu0 0
        %2256 = vmatprep.subr.bf16.mxu0 0
        %2257 = vmatpush2.bf16.msra.mxu0 0
        %2258 = vmatprep.subr.bf16.mxu0 0
        %2259 = vmatpush2.bf16.msra.mxu0 0
        %2260 = vmatprep.mubr.bf16.mxu0 0
        %2261 = vmatmul.mubr.bf16.gmra.mxu0 %v2217
        %v2262 = vpop.f32.mrf.mxu0
        %v2263 = vadd.f32 0.0, %v2262
        %v2264 = vpop.f32.mrf.mxu0
        %v2265 = vpop.f32.mrf.mxu0
        %v2266 = vadd.f32 0.0, %v2265
        %v2267 = vpop.f32.mrf.mxu0
        %2268 = vmatprep.mubr.bf16.mxu0 0
        %2269 = vmatmul.mubr.bf16.gmra.mxu0 %v2220
        %v2270 = vpop.f32.mrf.mxu0
        %v2271 = vadd.f32 0.0, %v2270
        %v2272 = vpop.f32.mrf.mxu0
        %v2273 = vpop.f32.mrf.mxu0
        %v2274 = vadd.f32 0.0, %v2273
        %v2275 = vpop.f32.mrf.mxu0
        %2276 = vmatprep.mubr.bf16.mxu0 0
        %2277 = vmatmul.mubr.bf16.gmra.mxu0 %v2223
        %v2278 = vpop.f32.mrf.mxu0
        %v2279 = vadd.f32 0.0, %v2278
        %v2280 = vpop.f32.mrf.mxu0
        %v2281 = vpop.f32.mrf.mxu0
        %v2282 = vadd.f32 0.0, %v2281
        %v2283 = vpop.f32.mrf.mxu0
        %2284 = vmatprep.mubr.bf16.mxu0 0
        %2285 = vmatmul.mubr.bf16.gmra.mxu0 %v2226
        %v2286 = vpop.f32.mrf.mxu0
        %v2287 = vadd.f32 0.0, %v2286
        %v2288 = vpop.f32.mrf.mxu0
        %v2289 = vpop.f32.mrf.mxu0
        %v2290 = vadd.f32 0.0, %v2289
        %v2291 = vpop.f32.mrf.mxu0
        %2292 = vdwg.mxu0
        %2301 = vrot.lane.b32.xlu0 %v2263, 24
        %v2302 = vpop.permute.xlu0 %2301
        %2303 = vrot.lane.b32.xlu0 %v2266, 24
        %v2304 = vpop.permute.xlu0 %2303
        %2305 = vrot.lane.b32.xlu0 %v2271, 24
        %v2306 = vpop.permute.xlu0 %2305
        %2307 = vrot.lane.b32.xlu0 %v2274, 24
        %v2308 = vpop.permute.xlu0 %2307
        %2309 = vrot.lane.b32.xlu0 %v2279, 24
        %v2310 = vpop.permute.xlu0 %2309
        %2311 = vrot.lane.b32.xlu0 %v2282, 24
        %v2312 = vpop.permute.xlu0 %2311
        %2313 = vrot.lane.b32.xlu0 %v2287, 24
        %v2314 = vpop.permute.xlu0 %2313
        %2315 = vrot.lane.b32.xlu0 %v2290, 24
        %v2316 = vpop.permute.xlu0 %2315
        %vm2325 = vcmask 261312
        %2326 = vst.msk [vmem:[#allocation2] sm:$0xff] %vm2325, %v2302
        %2327 = vst.msk [vmem:[#allocation2 + $0x8] sm:$0xff] %vm2325, %v2304
        %2328 = vst.msk [vmem:[#allocation2 + $0x10] sm:$0xff] %vm2325, %v2306
        %2329 = vst.msk [vmem:[#allocation2 + $0x18] sm:$0xff] %vm2325, %v2308
        %2330 = vst.msk [vmem:[#allocation2 + $0x20] sm:$0xff] %vm2325, %v2310
        %2331 = vst.msk [vmem:[#allocation2 + $0x28] sm:$0xff] %vm2325, %v2312
        %2332 = vst.msk [vmem:[#allocation2 + $0x30] sm:$0xff] %vm2325, %v2314
        %2333 = vst.msk [vmem:[#allocation2 + $0x38] sm:$0xff] %vm2325, %v2316
        %v2334 = vld [vmem:[#allocation2] sm:$0xff]
        %v2335 = vld [vmem:[#allocation2 + $0x8] sm:$0xff]
        %v2336 = vld [vmem:[#allocation2 + $0x10] sm:$0xff]
        %v2337 = vld [vmem:[#allocation2 + $0x18] sm:$0xff]
        %v2338 = vld [vmem:[#allocation2 + $0x20] sm:$0xff]
        %v2339 = vld [vmem:[#allocation2 + $0x28] sm:$0xff]
        %v2340 = vld [vmem:[#allocation2 + $0x30] sm:$0xff]
        %v2341 = vld [vmem:[#allocation2 + $0x38] sm:$0xff]
        %v2342 = vpack.c.bf16 %v2335, %v2334
        %v2343 = vpack.c.bf16 %v2337, %v2336
        %v2344 = vpack.c.bf16 %v2339, %v2338
        %v2345 = vpack.c.bf16 %v2341, %v2340
        %v2346 = vld [vmem:[%s7] sm:$0xf]
        %v2347 = vld [vmem:[%s7 + $0x4] sm:$0xf]
        %v2348 = vld [vmem:[%s7 + $0x8] sm:$0xf]
        %v2349 = vld [vmem:[%s7 + $0xc] sm:$0xf]
        %v2350 = vld [vmem:[%s8] sm:$0x1]
        %v2352 = vlaneseq
        %v2353 = vshrl.u32 %v2352, 7
        %v2354 = vsub.s32 0, %v2353
        %v2355 = vrot.slane %v2350, %v2354
        %v2361 = vunpack.c.l.b16 %v2346
        %v2362 = vunpack.c.l.b16 %v2347
        %v2363 = vunpack.c.l.b16 %v2348
        %v2364 = vunpack.c.l.b16 %v2349
        %v2365 = vpack.c.b16 %v2362, %v2361
        %v2366 = vpack.c.b16 %v2364, %v2363
        %v2370 = vsel %vm683, %v2342, 0
        %v2373 = vsel %vm683, %v2343, 0
        %v2376 = vsel %vm683, %v2344, 0
        %v2379 = vsel %vm683, %v2345, 0
        %2381 = vmatprep.subr.bf16.mxu0 0
        %2382 = vmatpush1.bf16.msra.mxu0 0
        %2383 = vmatprep.subr.bf16.mxu0 0
        %2384 = vmatpush1.bf16.msra.mxu0 0
        %2385 = vmatprep.subr.bf16.mxu0 0
        %2386 = vmatpush1.bf16.msra.mxu0 0
        %2387 = vmatprep.subr.bf16.mxu0 0
        %2388 = vmatpush1.bf16.msra.mxu0 0
        %2389 = vmatprep.subr.bf16.mxu0 0
        %2390 = vmatpush1.bf16.msra.mxu0 0
        %2391 = vmatprep.subr.bf16.mxu0 0
        %2392 = vmatpush1.bf16.msra.mxu0 0
        %2393 = vmatprep.subr.bf16.mxu0 0
        %2394 = vmatpush1.bf16.msra.mxu0 %v2366
        %2395 = vmatprep.subr.bf16.mxu0 0
        %2396 = vmatpush1.bf16.msra.mxu0 %v2365
        %2397 = vmatprep.subr.bf16.mxu0 0
        %2398 = vmatpush2.bf16.msra.mxu0 0
        %2399 = vmatprep.subr.bf16.mxu0 0
        %2400 = vmatpush2.bf16.msra.mxu0 0
        %2401 = vmatprep.subr.bf16.mxu0 0
        %2402 = vmatpush2.bf16.msra.mxu0 0
        %2403 = vmatprep.subr.bf16.mxu0 0
        %2404 = vmatpush2.bf16.msra.mxu0 0
        %2405 = vmatprep.subr.bf16.mxu0 0
        %2406 = vmatpush2.bf16.msra.mxu0 0
        %2407 = vmatprep.subr.bf16.mxu0 0
        %2408 = vmatpush2.bf16.msra.mxu0 0
        %2409 = vmatprep.subr.bf16.mxu0 0
        %2410 = vmatpush2.bf16.msra.mxu0 0
        %2411 = vmatprep.subr.bf16.mxu0 0
        %2412 = vmatpush2.bf16.msra.mxu0 0
        %2413 = vmatprep.mubr.bf16.mxu0 0
        %2414 = vmatmul.mubr.bf16.gmra.mxu0 %v2370
        %v2415 = vpop.f32.mrf.mxu0
        %v2416 = vadd.f32 %v2355, %v2415
        %v2417 = vpop.f32.mrf.mxu0
        %v2418 = vpop.f32.mrf.mxu0
        %v2419 = vadd.f32 %v2355, %v2418
        %v2420 = vpop.f32.mrf.mxu0
        %2421 = vmatprep.mubr.bf16.mxu0 0
        %2422 = vmatmul.mubr.bf16.gmra.mxu0 %v2373
        %v2423 = vpop.f32.mrf.mxu0
        %v2424 = vadd.f32 %v2355, %v2423
        %v2425 = vpop.f32.mrf.mxu0
        %v2426 = vpop.f32.mrf.mxu0
        %v2427 = vadd.f32 %v2355, %v2426
        %v2428 = vpop.f32.mrf.mxu0
        %2429 = vmatprep.mubr.bf16.mxu0 0
        %2430 = vmatmul.mubr.bf16.gmra.mxu0 %v2376
        %v2431 = vpop.f32.mrf.mxu0
        %v2432 = vadd.f32 %v2355, %v2431
        %v2433 = vpop.f32.mrf.mxu0
        %v2434 = vpop.f32.mrf.mxu0
        %v2435 = vadd.f32 %v2355, %v2434
        %v2436 = vpop.f32.mrf.mxu0
        %2437 = vmatprep.mubr.bf16.mxu0 0
        %2438 = vmatmul.mubr.bf16.gmra.mxu0 %v2379
        %v2439 = vpop.f32.mrf.mxu0
        %v2440 = vadd.f32 %v2355, %v2439
        %v2441 = vpop.f32.mrf.mxu0
        %v2442 = vpop.f32.mrf.mxu0
        %v2443 = vadd.f32 %v2355, %v2442
        %v2444 = vpop.f32.mrf.mxu0
        %2445 = vdwg.mxu0
        %v2446 = vpack.c.bf16 %v2419, %v2416
        %v2447 = vpack.c.bf16 %v2427, %v2424
        %v2448 = vpack.c.bf16 %v2435, %v2432
        %v2449 = vpack.c.bf16 %v2443, %v2440
        %v2458 = vunpack.c.l.b16 %v673
        %v2459 = vunpack.c.l.b16 %v674
        %v2460 = vunpack.c.l.b16 %v675
        %v2461 = vunpack.c.l.b16 %v676
        %v2462 = vunpack.c.l.b16 %v677
        %v2463 = vunpack.c.l.b16 %v678
        %v2464 = vunpack.c.l.b16 %v679
        %v2465 = vunpack.c.l.b16 %v680
        %v2466 = vpack.c.b16 %v2459, %v2458
        %v2467 = vpack.c.b16 %v2461, %v2460
        %v2468 = vpack.c.b16 %v2463, %v2462
        %v2469 = vpack.c.b16 %v2465, %v2464
        %v2471 = vsel %vm841, %v2466, 0
        %v2474 = vsel %vm841, %v2467, 0
        %v2477 = vsel %vm841, %v2468, 0
        %v2480 = vsel %vm841, %v2469, 0
        %2482 = vmatprep.subr.bf16.mxu0 0
        %2483 = vmatpush1.bf16.msra.mxu0 0
        %2484 = vmatprep.subr.bf16.mxu0 0
        %2485 = vmatpush1.bf16.msra.mxu0 0
        %2486 = vmatprep.subr.bf16.mxu0 0
        %2487 = vmatpush1.bf16.msra.mxu0 0
        %2488 = vmatprep.subr.bf16.mxu0 0
        %2489 = vmatpush1.bf16.msra.mxu0 0
        %2490 = vmatprep.subr.bf16.mxu0 0
        %2491 = vmatpush1.bf16.msra.mxu0 %v2449
        %2492 = vmatprep.subr.bf16.mxu0 0
        %2493 = vmatpush1.bf16.msra.mxu0 %v2448
        %2494 = vmatprep.subr.bf16.mxu0 0
        %2495 = vmatpush1.bf16.msra.mxu0 %v2447
        %2496 = vmatprep.subr.bf16.mxu0 0
        %2497 = vmatpush1.bf16.msra.mxu0 %v2446
        %2498 = vmatprep.subr.bf16.mxu0 0
        %2499 = vmatpush2.bf16.msra.mxu0 0
        %2500 = vmatprep.subr.bf16.mxu0 0
        %2501 = vmatpush2.bf16.msra.mxu0 0
        %2502 = vmatprep.subr.bf16.mxu0 0
        %2503 = vmatpush2.bf16.msra.mxu0 0
        %2504 = vmatprep.subr.bf16.mxu0 0
        %2505 = vmatpush2.bf16.msra.mxu0 0
        %2506 = vmatprep.subr.bf16.mxu0 0
        %2507 = vmatpush2.bf16.msra.mxu0 0
        %2508 = vmatprep.subr.bf16.mxu0 0
        %2509 = vmatpush2.bf16.msra.mxu0 0
        %2510 = vmatprep.subr.bf16.mxu0 0
        %2511 = vmatpush2.bf16.msra.mxu0 0
        %2512 = vmatprep.subr.bf16.mxu0 0
        %2513 = vmatpush2.bf16.msra.mxu0 0
        %2514 = vmatprep.mubr.bf16.mxu0 0
        %2515 = vmatmul.mubr.bf16.gmra.mxu0 %v2471
        %v2516 = vpop.f32.mrf.mxu0
        %v2517 = vadd.f32 0.0, %v2516
        %v2518 = vpop.f32.mrf.mxu0
        %v2519 = vpop.f32.mrf.mxu0
        %v2520 = vadd.f32 0.0, %v2519
        %v2521 = vpop.f32.mrf.mxu0
        %2522 = vmatprep.mubr.bf16.mxu0 0
        %2523 = vmatmul.mubr.bf16.gmra.mxu0 %v2474
        %v2524 = vpop.f32.mrf.mxu0
        %v2525 = vadd.f32 0.0, %v2524
        %v2526 = vpop.f32.mrf.mxu0
        %v2527 = vpop.f32.mrf.mxu0
        %v2528 = vadd.f32 0.0, %v2527
        %v2529 = vpop.f32.mrf.mxu0
        %2530 = vmatprep.mubr.bf16.mxu0 0
        %2531 = vmatmul.mubr.bf16.gmra.mxu0 %v2477
        %v2532 = vpop.f32.mrf.mxu0
        %v2533 = vadd.f32 0.0, %v2532
        %v2534 = vpop.f32.mrf.mxu0
        %v2535 = vpop.f32.mrf.mxu0
        %v2536 = vadd.f32 0.0, %v2535
        %v2537 = vpop.f32.mrf.mxu0
        %2538 = vmatprep.mubr.bf16.mxu0 0
        %2539 = vmatmul.mubr.bf16.gmra.mxu0 %v2480
        %v2540 = vpop.f32.mrf.mxu0
        %v2541 = vadd.f32 0.0, %v2540
        %v2542 = vpop.f32.mrf.mxu0
        %v2543 = vpop.f32.mrf.mxu0
        %v2544 = vadd.f32 0.0, %v2543
        %v2545 = vpop.f32.mrf.mxu0
        %2546 = vdwg.mxu0
        %v2547 = vld [vmem:[%s10] sm:$0xf]
        %v2548 = vld [vmem:[%s10 + $0x4] sm:$0x1]
        %v2549 = vpack.c.bf16 %v2520, %v2517
        %v2550 = vpack.c.bf16 %v2528, %v2525
        %v2551 = vpack.c.bf16 %v2536, %v2533
        %v2552 = vpack.c.bf16 %v2544, %v2541
        %v2555 = vunpack.c.l.b16 %v2547
        %v2556 = vunpack.c.l.b16 %v2548
        %v2557 = vpack.c.b16 %v2556, %v2555
        %v2559 = vsel %vm683, %v2557, 0
        %v2562 = vsel %vm683, %v2549, 0
        %v2565 = vsel %vm683, %v2550, 0
        %v2568 = vsel %vm683, %v2551, 0
        %v2571 = vsel %vm683, %v2552, 0
        %2573 = vmatprep.subr.bf16.mxu0 0
        %2574 = vmatpush1.bf16.xpose.msra.mxu0 0
        %2575 = vmatprep.subr.bf16.mxu0 0
        %2576 = vmatpush1.bf16.xpose.msra.mxu0 0
        %2577 = vmatprep.subr.bf16.mxu0 0
        %2578 = vmatpush1.bf16.xpose.msra.mxu0 0
        %2579 = vmatprep.subr.bf16.mxu0 0
        %2580 = vmatpush1.bf16.xpose.msra.mxu0 0
        %2581 = vmatprep.subr.bf16.mxu0 0
        %2582 = vmatpush1.bf16.xpose.msra.mxu0 %v2571
        %2583 = vmatprep.subr.bf16.mxu0 0
        %2584 = vmatpush1.bf16.xpose.msra.mxu0 %v2568
        %2585 = vmatprep.subr.bf16.mxu0 0
        %2586 = vmatpush1.bf16.xpose.msra.mxu0 %v2565
        %2587 = vmatprep.subr.bf16.mxu0 0
        %2588 = vmatpush1.bf16.xpose.msra.mxu0 %v2562
        %2589 = vmatprep.subr.bf16.mxu0 0
        %2590 = vmatpush2.bf16.xpose.msra.mxu0 0
        %2591 = vmatprep.subr.bf16.mxu0 0
        %2592 = vmatpush2.bf16.xpose.msra.mxu0 0
        %2593 = vmatprep.subr.bf16.mxu0 0
        %2594 = vmatpush2.bf16.xpose.msra.mxu0 0
        %2595 = vmatprep.subr.bf16.mxu0 0
        %2596 = vmatpush2.bf16.xpose.msra.mxu0 0
        %2597 = vmatprep.subr.bf16.mxu0 0
        %2598 = vmatpush2.bf16.xpose.msra.mxu0 0
        %2599 = vmatprep.subr.bf16.mxu0 0
        %2600 = vmatpush2.bf16.xpose.msra.mxu0 0
        %2601 = vmatprep.subr.bf16.mxu0 0
        %2602 = vmatpush2.bf16.xpose.msra.mxu0 0
        %2603 = vmatprep.subr.bf16.mxu0 0
        %2604 = vmatpush2.bf16.xpose.msra.mxu0 0
        %2605 = vmatprep.mubr.bf16.mxu0 0
        %2606 = vmatmul.mubr.bf16.gmra.mxu0 %v2559
        %v2607 = vpop.f32.mrf.mxu0
        %v2608 = vadd.f32 0.0, %v2607
        %v2609 = vpop.f32.mrf.mxu0
        %v2610 = vpop.f32.mrf.mxu0
        %v2611 = vadd.f32 0.0, %v2610
        %v2612 = vpop.f32.mrf.mxu0
        %2613 = vdwg.mxu0
        %v2614 = vsel %vm841, %v2608, -inf
        %2615 = vmax.xlane.f32.xlu0 %v2614
        %v2616 = vpop.xlane.xlu0 %2615
        %vm2617 = vcmask 517120
        %v2618 = vsel %vm2617, %v2611, -inf
        %2619 = vmax.xlane.f32.xlu0 %v2618
        %v2620 = vpop.xlane.xlu0 %2619
        %v2621 = vsub.f32 %v2608, %v2616
        %v2622 = vsub.f32 %v2611, %v2620
        %v2623 = vmul.f32 %v2621, 1.442695
        %v2624 = vpow.pop %v2623
        %v2625 = vmul.f32 %v2622, 1.442695
        %v2626 = vpow.pop %v2625
        %v2627 = vsel %vm841, %v2624, 0.0
        %2628 = vadd.xlane.f32.xlu0 %v2627
        %v2629 = vpop.xlane.xlu0 %2628
        %v2630 = vsel %vm2617, %v2626, 0.0
        %2631 = vadd.xlane.f32.xlu0 %v2630
        %v2632 = vpop.xlane.xlu0 %2631
        %v2633 = vrcp.pop %v2629
        %v2634 = vrcp.pop %v2632
        %v2635 = vmul.f32 %v2624, %v2633
        %v2636 = vmul.f32 %v2626, %v2634
        %v2637 = vpack.c.bf16 %v2636, %v2635
        %v2639 = vsel %vm841, %v2637, 0
        %2641 = vmatprep.subr.bf16.mxu0 0
        %2642 = vmatpush1.bf16.msra.mxu0 0
        %2643 = vmatprep.subr.bf16.mxu0 0
        %2644 = vmatpush1.bf16.msra.mxu0 0
        %2645 = vmatprep.subr.bf16.mxu0 0
        %2646 = vmatpush1.bf16.msra.mxu0 0
        %2647 = vmatprep.subr.bf16.mxu0 0
        %2648 = vmatpush1.bf16.msra.mxu0 0
        %2649 = vmatprep.subr.bf16.mxu0 0
        %2650 = vmatpush1.bf16.msra.mxu0 %v2552
        %2651 = vmatprep.subr.bf16.mxu0 0
        %2652 = vmatpush1.bf16.msra.mxu0 %v2551
        %2653 = vmatprep.subr.bf16.mxu0 0
        %2654 = vmatpush1.bf16.msra.mxu0 %v2550
        %2655 = vmatprep.subr.bf16.mxu0 0
        %2656 = vmatpush1.bf16.msra.mxu0 %v2549
        %2657 = vmatprep.subr.bf16.mxu0 0
        %2658 = vmatpush2.bf16.msra.mxu0 0
        %2659 = vmatprep.subr.bf16.mxu0 0
        %2660 = vmatpush2.bf16.msra.mxu0 0
        %2661 = vmatprep.subr.bf16.mxu0 0
        %2662 = vmatpush2.bf16.msra.mxu0 0
        %2663 = vmatprep.subr.bf16.mxu0 0
        %2664 = vmatpush2.bf16.msra.mxu0 0
        %2665 = vmatprep.subr.bf16.mxu0 0
        %2666 = vmatpush2.bf16.msra.mxu0 0
        %2667 = vmatprep.subr.bf16.mxu0 0
        %2668 = vmatpush2.bf16.msra.mxu0 0
        %2669 = vmatprep.subr.bf16.mxu0 0
        %2670 = vmatpush2.bf16.msra.mxu0 0
        %2671 = vmatprep.subr.bf16.mxu0 0
        %2672 = vmatpush2.bf16.msra.mxu0 0
        %2673 = vmatprep.mubr.bf16.mxu0 0
        %2674 = vmatmul.mubr.bf16.gmra.mxu0 %v2639
        %v2675 = vpop.f32.mrf.mxu0
        %v2676 = vadd.f32 0.0, %v2675
        %v2677 = vpop.f32.mrf.mxu0
        %v2678 = vpop.f32.mrf.mxu0
        %v2679 = vadd.f32 0.0, %v2678
        %v2680 = vpop.f32.mrf.mxu0
        %2681 = vdwg.mxu0
        %v2682 = vadd.f32 %v657, %v2517
        %v2683 = vadd.f32 %v658, %v2520
        %v2684 = vadd.f32 %v659, %v2525
        %v2685 = vadd.f32 %v660, %v2528
        %v2686 = vadd.f32 %v661, %v2533
        %v2687 = vadd.f32 %v662, %v2536
        %v2688 = vadd.f32 %v663, %v2541
        %v2689 = vadd.f32 %v664, %v2544
        %2690 = vst.msk [vmem:[#allocation3] sm:$0xff] %vm683, %v2682
        %2691 = vst.msk [vmem:[#allocation3 + $0x8] sm:$0xff] %vm683, %v2683
        %2692 = vst.msk [vmem:[#allocation3 + $0x10] sm:$0xff] %vm683, %v2684
        %2693 = vst.msk [vmem:[#allocation3 + $0x18] sm:$0xff] %vm683, %v2685
        %2694 = vst.msk [vmem:[#allocation3 + $0x20] sm:$0xff] %vm683, %v2686
        %2695 = vst.msk [vmem:[#allocation3 + $0x28] sm:$0xff] %vm683, %v2687
        %2696 = vst.msk [vmem:[#allocation3 + $0x30] sm:$0xff] %vm683, %v2688
        %2697 = vst.msk [vmem:[#allocation3 + $0x38] sm:$0xff] %vm683, %v2689
        %v2698 = vld [vmem:[#allocation3] sm:$0xff]
        %v2699 = vld [vmem:[#allocation3 + $0x8] sm:$0x3]
        %v2700 = vadd.f32 %v2698, %v2676
        %v2701 = vadd.f32 %v2699, %v2679
        %2702 = vst.msk [vmem:[#allocation3] sm:$0xff] %vm683, %v2700
        %vm2703 = vcmask 254976
        %2704 = vst.msk [vmem:[#allocation3 + $0x8] sm:$0x3] %vm2703, %v2701
        %v2705 = vld [vmem:[#allocation3] sm:$0xff]
        %v2706 = vld [vmem:[#allocation3 + $0x8] sm:$0xff]
        %v2707 = vld [vmem:[#allocation3 + $0x10] sm:$0xff]
        %v2708 = vld [vmem:[#allocation3 + $0x18] sm:$0xff]
        %v2709 = vld [vmem:[#allocation3 + $0x20] sm:$0xff]
        %v2710 = vld [vmem:[#allocation3 + $0x28] sm:$0xff]
        %v2711 = vld [vmem:[#allocation3 + $0x30] sm:$0xff]
        %v2712 = vld [vmem:[#allocation3 + $0x38] sm:$0xff]
        %v2713 = vld [vmem:[%s11] sm:$0x1]
        %v2714 = vld [vmem:[%s12] sm:$0x1]
        %v2715 = vsel %vm683, %v2705, 0.0
        %2716 = vadd.xlane.f32.xlu0 %v2715
        %v2717 = vpop.xlane.xlu0 %2716
        %v2718 = vsel %vm683, %v2706, 0.0
        %2719 = vadd.xlane.f32.xlu0 %v2718
        %v2720 = vpop.xlane.xlu0 %2719
        %v2721 = vsel %vm683, %v2707, 0.0
        %2722 = vadd.xlane.f32.xlu0 %v2721
        %v2723 = vpop.xlane.xlu0 %2722
        %v2724 = vsel %vm683, %v2708, 0.0
        %2725 = vadd.xlane.f32.xlu0 %v2724
        %v2726 = vpop.xlane.xlu0 %2725
        %v2727 = vsel %vm683, %v2709, 0.0
        %2728 = vadd.xlane.f32.xlu0 %v2727
        %v2729 = vpop.xlane.xlu0 %2728
        %v2730 = vsel %vm683, %v2710, 0.0
        %2731 = vadd.xlane.f32.xlu0 %v2730
        %v2732 = vpop.xlane.xlu0 %2731
        %v2733 = vsel %vm683, %v2711, 0.0
        %2734 = vadd.xlane.f32.xlu0 %v2733
        %v2735 = vpop.xlane.xlu0 %2734
        %v2736 = vsel %vm683, %v2712, 0.0
        %2737 = vadd.xlane.f32.xlu0 %v2736
        %v2738 = vpop.xlane.xlu0 %2737
        %v2739 = vmul.f32 %v2717, %v708
        %v2740 = vmul.f32 %v2720, %v708
        %v2741 = vmul.f32 %v2723, %v708
        %v2742 = vmul.f32 %v2726, %v708
        %v2743 = vmul.f32 %v2729, %v708
        %v2744 = vmul.f32 %v2732, %v708
        %v2745 = vmul.f32 %v2735, %v708
        %v2746 = vmul.f32 %v2738, %v708
        %v2747 = vsub.f32 %v2705, %v2739
        %v2748 = vsub.f32 %v2706, %v2740
        %v2749 = vsub.f32 %v2707, %v2741
        %v2750 = vsub.f32 %v2708, %v2742
        %v2751 = vsub.f32 %v2709, %v2743
        %v2752 = vsub.f32 %v2710, %v2744
        %v2753 = vsub.f32 %v2711, %v2745
        %v2754 = vsub.f32 %v2712, %v2746
        %v2755 = vmul.f32 %v2747, %v2747
        %v2756 = vmul.f32 %v2748, %v2748
        %v2757 = vmul.f32 %v2749, %v2749
        %v2758 = vmul.f32 %v2750, %v2750
        %v2759 = vmul.f32 %v2751, %v2751
        %v2760 = vmul.f32 %v2752, %v2752
        %v2761 = vmul.f32 %v2753, %v2753
        %v2762 = vmul.f32 %v2754, %v2754
        %v2763 = vsel %vm683, %v2755, 0.0
        %2764 = vadd.xlane.f32.xlu0 %v2763
        %v2765 = vpop.xlane.xlu0 %2764
        %v2766 = vsel %vm683, %v2756, 0.0
        %2767 = vadd.xlane.f32.xlu0 %v2766
        %v2768 = vpop.xlane.xlu0 %2767
        %v2769 = vsel %vm683, %v2757, 0.0
        %2770 = vadd.xlane.f32.xlu0 %v2769
        %v2771 = vpop.xlane.xlu0 %2770
        %v2772 = vsel %vm683, %v2758, 0.0
        %2773 = vadd.xlane.f32.xlu0 %v2772
        %v2774 = vpop.xlane.xlu0 %2773
        %v2775 = vsel %vm683, %v2759, 0.0
        %2776 = vadd.xlane.f32.xlu0 %v2775
        %v2777 = vpop.xlane.xlu0 %2776
        %v2778 = vsel %vm683, %v2760, 0.0
        %2779 = vadd.xlane.f32.xlu0 %v2778
        %v2780 = vpop.xlane.xlu0 %2779
        %v2781 = vsel %vm683, %v2761, 0.0
        %2782 = vadd.xlane.f32.xlu0 %v2781
        %v2783 = vpop.xlane.xlu0 %2782
        %v2784 = vsel %vm683, %v2762, 0.0
        %2785 = vadd.xlane.f32.xlu0 %v2784
        %v2786 = vpop.xlane.xlu0 %2785
        %v2787 = vmul.f32 %v2765, %v708
        %v2788 = vmul.f32 %v2768, %v708
        %v2789 = vmul.f32 %v2771, %v708
        %v2790 = vmul.f32 %v2774, %v708
        %v2791 = vmul.f32 %v2777, %v708
        %v2792 = vmul.f32 %v2780, %v708
        %v2793 = vmul.f32 %v2783, %v708
        %v2794 = vmul.f32 %v2786, %v708
        %v2795 = vadd.f32 %v2787, 1e-05
        %v2796 = vadd.f32 %v2788, 1e-05
        %v2797 = vadd.f32 %v2789, 1e-05
        %v2798 = vadd.f32 %v2790, 1e-05
        %v2799 = vadd.f32 %v2791, 1e-05
        %v2800 = vadd.f32 %v2792, 1e-05
        %v2801 = vadd.f32 %v2793, 1e-05
        %v2802 = vadd.f32 %v2794, 1e-05
        %v2803 = vrsqrt.pop %v2795
        %v2804 = vrsqrt.pop %v2796
        %v2805 = vrsqrt.pop %v2797
        %v2806 = vrsqrt.pop %v2798
        %v2807 = vrsqrt.pop %v2799
        %v2808 = vrsqrt.pop %v2800
        %v2809 = vrsqrt.pop %v2801
        %v2810 = vrsqrt.pop %v2802
        %v2811 = vmul.f32 %v2747, %v2803
        %v2812 = vmul.f32 %v2748, %v2804
        %v2813 = vmul.f32 %v2749, %v2805
        %v2814 = vmul.f32 %v2750, %v2806
        %v2815 = vmul.f32 %v2751, %v2807
        %v2816 = vmul.f32 %v2752, %v2808
        %v2817 = vmul.f32 %v2753, %v2809
        %v2818 = vmul.f32 %v2754, %v2810
        %v2820 = vlaneseq
        %v2821 = vshrl.u32 %v2820, 7
        %v2822 = vsub.s32 0, %v2821
        %v2823 = vrot.slane %v2713, %v2822
        %v2825 = vmul.f32 %v2811, %v2823
        %v2826 = vmul.f32 %v2812, %v2823
        %v2827 = vmul.f32 %v2813, %v2823
        %v2828 = vmul.f32 %v2814, %v2823
        %v2829 = vmul.f32 %v2815, %v2823
        %v2830 = vmul.f32 %v2816, %v2823
        %v2831 = vmul.f32 %v2817, %v2823
        %v2832 = vmul.f32 %v2818, %v2823
        %v2834 = vlaneseq
        %v2835 = vshrl.u32 %v2834, 7
        %v2836 = vsub.s32 0, %v2835
        %v2837 = vrot.slane %v2714, %v2836
        %v2839 = vadd.f32 %v2825, %v2837
        %v2840 = vadd.f32 %v2826, %v2837
        %v2841 = vadd.f32 %v2827, %v2837
        %v2842 = vadd.f32 %v2828, %v2837
        %v2843 = vadd.f32 %v2829, %v2837
        %v2844 = vadd.f32 %v2830, %v2837
        %v2845 = vadd.f32 %v2831, %v2837
        %v2846 = vadd.f32 %v2832, %v2837
        %v2847 = vpack.c.bf16 %v2840, %v2839
        %v2848 = vpack.c.bf16 %v2842, %v2841
        %v2849 = vpack.c.bf16 %v2844, %v2843
        %v2850 = vpack.c.bf16 %v2846, %v2845
        %v2851 = vld [vmem:[%s13] sm:$0xf]
        %v2852 = vld [vmem:[%s13 + $0x4] sm:$0xf]
        %v2853 = vld [vmem:[%s13 + $0x8] sm:$0xf]
        %v2854 = vld [vmem:[%s13 + $0xc] sm:$0xf]
        %v2855 = vld [vmem:[%s14] sm:$0x1]
        %v2857 = vlaneseq
        %v2858 = vshrl.u32 %v2857, 7
        %v2859 = vsub.s32 0, %v2858
        %v2860 = vrot.slane %v2855, %v2859
        %v2866 = vunpack.c.l.b16 %v2851
        %v2867 = vunpack.c.l.b16 %v2852
        %v2868 = vunpack.c.l.b16 %v2853
        %v2869 = vunpack.c.l.b16 %v2854
        %v2870 = vpack.c.b16 %v2867, %v2866
        %v2871 = vpack.c.b16 %v2869, %v2868
        %v2875 = vsel %vm683, %v2847, 0
        %v2878 = vsel %vm683, %v2848, 0
        %v2881 = vsel %vm683, %v2849, 0
        %v2884 = vsel %vm683, %v2850, 0
        %2886 = vmatprep.subr.bf16.mxu0 0
        %2887 = vmatpush1.bf16.msra.mxu0 0
        %2888 = vmatprep.subr.bf16.mxu0 0
        %2889 = vmatpush1.bf16.msra.mxu0 0
        %2890 = vmatprep.subr.bf16.mxu0 0
        %2891 = vmatpush1.bf16.msra.mxu0 0
        %2892 = vmatprep.subr.bf16.mxu0 0
        %2893 = vmatpush1.bf16.msra.mxu0 0
        %2894 = vmatprep.subr.bf16.mxu0 0
        %2895 = vmatpush1.bf16.msra.mxu0 0
        %2896 = vmatprep.subr.bf16.mxu0 0
        %2897 = vmatpush1.bf16.msra.mxu0 0
        %2898 = vmatprep.subr.bf16.mxu0 0
        %2899 = vmatpush1.bf16.msra.mxu0 %v2871
        %2900 = vmatprep.subr.bf16.mxu0 0
        %2901 = vmatpush1.bf16.msra.mxu0 %v2870
        %2902 = vmatprep.subr.bf16.mxu0 0
        %2903 = vmatpush2.bf16.msra.mxu0 0
        %2904 = vmatprep.subr.bf16.mxu0 0
        %2905 = vmatpush2.bf16.msra.mxu0 0
        %2906 = vmatprep.subr.bf16.mxu0 0
        %2907 = vmatpush2.bf16.msra.mxu0 0
        %2908 = vmatprep.subr.bf16.mxu0 0
        %2909 = vmatpush2.bf16.msra.mxu0 0
        %2910 = vmatprep.subr.bf16.mxu0 0
        %2911 = vmatpush2.bf16.msra.mxu0 0
        %2912 = vmatprep.subr.bf16.mxu0 0
        %2913 = vmatpush2.bf16.msra.mxu0 0
        %2914 = vmatprep.subr.bf16.mxu0 0
        %2915 = vmatpush2.bf16.msra.mxu0 0
        %2916 = vmatprep.subr.bf16.mxu0 0
        %2917 = vmatpush2.bf16.msra.mxu0 0
        %2918 = vmatprep.mubr.bf16.mxu0 0
        %2919 = vmatmul.mubr.bf16.gmra.mxu0 %v2875
        %v2920 = vpop.f32.mrf.mxu0
        %v2921 = vadd.f32 %v2860, %v2920
        %v2922 = vpop.f32.mrf.mxu0
        %v2923 = vpop.f32.mrf.mxu0
        %v2924 = vadd.f32 %v2860, %v2923
        %v2925 = vpop.f32.mrf.mxu0
        %2926 = vmatprep.mubr.bf16.mxu0 0
        %2927 = vmatmul.mubr.bf16.gmra.mxu0 %v2878
        %v2928 = vpop.f32.mrf.mxu0
        %v2929 = vadd.f32 %v2860, %v2928
        %v2930 = vpop.f32.mrf.mxu0
        %v2931 = vpop.f32.mrf.mxu0
        %v2932 = vadd.f32 %v2860, %v2931
        %v2933 = vpop.f32.mrf.mxu0
        %2934 = vmatprep.mubr.bf16.mxu0 0
        %2935 = vmatmul.mubr.bf16.gmra.mxu0 %v2881
        %v2936 = vpop.f32.mrf.mxu0
        %v2937 = vadd.f32 %v2860, %v2936
        %v2938 = vpop.f32.mrf.mxu0
        %v2939 = vpop.f32.mrf.mxu0
        %v2940 = vadd.f32 %v2860, %v2939
        %v2941 = vpop.f32.mrf.mxu0
        %2942 = vmatprep.mubr.bf16.mxu0 0
        %2943 = vmatmul.mubr.bf16.gmra.mxu0 %v2884
        %v2944 = vpop.f32.mrf.mxu0
        %v2945 = vadd.f32 %v2860, %v2944
        %v2946 = vpop.f32.mrf.mxu0
        %v2947 = vpop.f32.mrf.mxu0
        %v2948 = vadd.f32 %v2860, %v2947
        %v2949 = vpop.f32.mrf.mxu0
        %2950 = vdwg.mxu0
        %v2951 = vmul.f32 %v2921, 0.5
        %v2952 = vmul.f32 %v2924, 0.5
        %v2953 = vmul.f32 %v2929, 0.5
        %v2954 = vmul.f32 %v2932, 0.5
        %v2955 = vmul.f32 %v2937, 0.5
        %v2956 = vmul.f32 %v2940, 0.5
        %v2957 = vmul.f32 %v2945, 0.5
        %v2958 = vmul.f32 %v2948, 0.5
        %v2959 = vmul.f32 %v2921, 0.044715
        %v2960 = vmul.f32 %v2924, 0.044715
        %v2961 = vmul.f32 %v2929, 0.044715
        %v2962 = vmul.f32 %v2932, 0.044715
        %v2963 = vmul.f32 %v2937, 0.044715
        %v2964 = vmul.f32 %v2940, 0.044715
        %v2965 = vmul.f32 %v2945, 0.044715
        %v2966 = vmul.f32 %v2948, 0.044715
        %v2967 = vmul.f32 %v2959, %v2921
        %v2968 = vmul.f32 %v2960, %v2924
        %v2969 = vmul.f32 %v2961, %v2929
        %v2970 = vmul.f32 %v2962, %v2932
        %v2971 = vmul.f32 %v2963, %v2937
        %v2972 = vmul.f32 %v2964, %v2940
        %v2973 = vmul.f32 %v2965, %v2945
        %v2974 = vmul.f32 %v2966, %v2948
        %v2975 = vmul.f32 %v2967, %v2921
        %v2976 = vmul.f32 %v2968, %v2924
        %v2977 = vmul.f32 %v2969, %v2929
        %v2978 = vmul.f32 %v2970, %v2932
        %v2979 = vmul.f32 %v2971, %v2937
        %v2980 = vmul.f32 %v2972, %v2940
        %v2981 = vmul.f32 %v2973, %v2945
        %v2982 = vmul.f32 %v2974, %v2948
        %v2983 = vadd.f32 %v2921, %v2975
        %v2984 = vadd.f32 %v2924, %v2976
        %v2985 = vadd.f32 %v2929, %v2977
        %v2986 = vadd.f32 %v2932, %v2978
        %v2987 = vadd.f32 %v2937, %v2979
        %v2988 = vadd.f32 %v2940, %v2980
        %v2989 = vadd.f32 %v2945, %v2981
        %v2990 = vadd.f32 %v2948, %v2982
        %v2991 = vmul.f32 %v2983, 0.7978846
        %v2992 = vmul.f32 %v2984, 0.7978846
        %v2993 = vmul.f32 %v2985, 0.7978846
        %v2994 = vmul.f32 %v2986, 0.7978846
        %v2995 = vmul.f32 %v2987, 0.7978846
        %v2996 = vmul.f32 %v2988, 0.7978846
        %v2997 = vmul.f32 %v2989, 0.7978846
        %v2998 = vmul.f32 %v2990, 0.7978846
        %v2999 = vtanh.pop %v2991
        %v3000 = vtanh.pop %v2992
        %v3001 = vtanh.pop %v2993
        %v3002 = vtanh.pop %v2994
        %v3003 = vtanh.pop %v2995
        %v3004 = vtanh.pop %v2996
        %v3005 = vtanh.pop %v2997
        %v3006 = vtanh.pop %v2998
        %v3007 = vadd.f32 %v2999, 1.0
        %v3008 = vadd.f32 %v3000, 1.0
        %v3009 = vadd.f32 %v3001, 1.0
        %v3010 = vadd.f32 %v3002, 1.0
        %v3011 = vadd.f32 %v3003, 1.0
        %v3012 = vadd.f32 %v3004, 1.0
        %v3013 = vadd.f32 %v3005, 1.0
        %v3014 = vadd.f32 %v3006, 1.0
        %v3015 = vmul.f32 %v2951, %v3007
        %v3016 = vmul.f32 %v2952, %v3008
        %v3017 = vmul.f32 %v2953, %v3009
        %v3018 = vmul.f32 %v2954, %v3010
        %v3019 = vmul.f32 %v2955, %v3011
        %v3020 = vmul.f32 %v2956, %v3012
        %v3021 = vmul.f32 %v2957, %v3013
        %v3022 = vmul.f32 %v2958, %v3014
        %v3023 = vpack.c.bf16 %v3016, %v3015
        %v3024 = vpack.c.bf16 %v3018, %v3017
        %v3025 = vpack.c.bf16 %v3020, %v3019
        %v3026 = vpack.c.bf16 %v3022, %v3021
        %v3027 = vld [vmem:[%s15] sm:$0xf]
        %v3028 = vld [vmem:[%s15 + $0x4] sm:$0xf]
        %v3029 = vld [vmem:[%s15 + $0x8] sm:$0xf]
        %v3030 = vld [vmem:[%s15 + $0xc] sm:$0xf]
        %v3031 = vld [vmem:[%s15 + $0x10] sm:$0xf]
        %v3032 = vld [vmem:[%s15 + $0x14] sm:$0xf]
        %v3033 = vld [vmem:[%s15 + $0x18] sm:$0xf]
        %v3034 = vld [vmem:[%s15 + $0x1c] sm:$0xf]
        %v3035 = vld [vmem:[%s15 + $0x20] sm:$0xf]
        %v3036 = vld [vmem:[%s15 + $0x24] sm:$0xf]
        %v3037 = vld [vmem:[%s15 + $0x28] sm:$0xf]
        %v3038 = vld [vmem:[%s15 + $0x2c] sm:$0xf]
        %v3039 = vld [vmem:[%s15 + $0x30] sm:$0xf]
        %v3040 = vld [vmem:[%s15 + $0x34] sm:$0xf]
        %v3041 = vld [vmem:[%s15 + $0x38] sm:$0xf]
        %v3042 = vld [vmem:[%s15 + $0x3c] sm:$0xf]
        %v3043 = vld [vmem:[%s16] sm:$0x1]
        %v3045 = vlaneseq
        %v3046 = vshrl.u32 %v3045, 7
        %v3047 = vsub.s32 0, %v3046
        %v3048 = vrot.slane %v3043, %v3047
        %v3066 = vunpack.c.l.b16 %v3027
        %v3067 = vunpack.c.l.b16 %v3028
        %v3068 = vunpack.c.l.b16 %v3029
        %v3069 = vunpack.c.l.b16 %v3030
        %v3070 = vunpack.c.l.b16 %v3031
        %v3071 = vunpack.c.l.b16 %v3032
        %v3072 = vunpack.c.l.b16 %v3033
        %v3073 = vunpack.c.l.b16 %v3034
        %v3074 = vunpack.c.l.b16 %v3035
        %v3075 = vunpack.c.l.b16 %v3036
        %v3076 = vunpack.c.l.b16 %v3037
        %v3077 = vunpack.c.l.b16 %v3038
        %v3078 = vunpack.c.l.b16 %v3039
        %v3079 = vunpack.c.l.b16 %v3040
        %v3080 = vunpack.c.l.b16 %v3041
        %v3081 = vunpack.c.l.b16 %v3042
        %v3082 = vpack.c.b16 %v3067, %v3066
        %v3083 = vpack.c.b16 %v3069, %v3068
        %v3084 = vpack.c.b16 %v3071, %v3070
        %v3085 = vpack.c.b16 %v3073, %v3072
        %v3086 = vpack.c.b16 %v3075, %v3074
        %v3087 = vpack.c.b16 %v3077, %v3076
        %v3088 = vpack.c.b16 %v3079, %v3078
        %v3089 = vpack.c.b16 %v3081, %v3080
        %3098 = vmatprep.subr.bf16.mxu0 0
        %3099 = vmatpush1.bf16.msra.mxu0 %v3089
        %3100 = vmatprep.subr.bf16.mxu0 0
        %3101 = vmatpush1.bf16.msra.mxu0 %v3088
        %3102 = vmatprep.subr.bf16.mxu0 0
        %3103 = vmatpush1.bf16.msra.mxu0 %v3087
        %3104 = vmatprep.subr.bf16.mxu0 0
        %3105 = vmatpush1.bf16.msra.mxu0 %v3086
        %3106 = vmatprep.subr.bf16.mxu0 0
        %3107 = vmatpush1.bf16.msra.mxu0 %v3085
        %3108 = vmatprep.subr.bf16.mxu0 0
        %3109 = vmatpush1.bf16.msra.mxu0 %v3084
        %3110 = vmatprep.subr.bf16.mxu0 0
        %3111 = vmatpush1.bf16.msra.mxu0 %v3083
        %3112 = vmatprep.subr.bf16.mxu0 0
        %3113 = vmatpush1.bf16.msra.mxu0 %v3082
        %3114 = vmatprep.subr.bf16.mxu0 0
        %3115 = vmatpush2.bf16.msra.mxu0 0
        %3116 = vmatprep.subr.bf16.mxu0 0
        %3117 = vmatpush2.bf16.msra.mxu0 0
        %3118 = vmatprep.subr.bf16.mxu0 0
        %3119 = vmatpush2.bf16.msra.mxu0 0
        %3120 = vmatprep.subr.bf16.mxu0 0
        %3121 = vmatpush2.bf16.msra.mxu0 0
        %3122 = vmatprep.subr.bf16.mxu0 0
        %3123 = vmatpush2.bf16.msra.mxu0 0
        %3124 = vmatprep.subr.bf16.mxu0 0
        %3125 = vmatpush2.bf16.msra.mxu0 0
        %3126 = vmatprep.subr.bf16.mxu0 0
        %3127 = vmatpush2.bf16.msra.mxu0 0
        %3128 = vmatprep.subr.bf16.mxu0 0
        %3129 = vmatpush2.bf16.msra.mxu0 0
        %3130 = vmatprep.mubr.bf16.mxu0 0
        %3131 = vmatmul.mubr.bf16.gmra.mxu0 %v3023
        %v3132 = vpop.f32.mrf.mxu0
        %v3133 = vadd.f32 %v3048, %v3132
        %v3134 = vpop.f32.mrf.mxu0
        %v3135 = vpop.f32.mrf.mxu0
        %v3136 = vadd.f32 %v3048, %v3135
        %v3137 = vpop.f32.mrf.mxu0
        %3138 = vmatprep.mubr.bf16.mxu0 0
        %3139 = vmatmul.mubr.bf16.gmra.mxu0 %v3024
        %v3140 = vpop.f32.mrf.mxu0
        %v3141 = vadd.f32 %v3048, %v3140
        %v3142 = vpop.f32.mrf.mxu0
        %v3143 = vpop.f32.mrf.mxu0
        %v3144 = vadd.f32 %v3048, %v3143
        %v3145 = vpop.f32.mrf.mxu0
        %3146 = vmatprep.mubr.bf16.mxu0 0
        %3147 = vmatmul.mubr.bf16.gmra.mxu0 %v3025
        %v3148 = vpop.f32.mrf.mxu0
        %v3149 = vadd.f32 %v3048, %v3148
        %v3150 = vpop.f32.mrf.mxu0
        %v3151 = vpop.f32.mrf.mxu0
        %v3152 = vadd.f32 %v3048, %v3151
        %v3153 = vpop.f32.mrf.mxu0
        %3154 = vmatprep.mubr.bf16.mxu0 0
        %3155 = vmatmul.mubr.bf16.gmra.mxu0 %v3026
        %v3156 = vpop.f32.mrf.mxu0
        %v3157 = vadd.f32 %v3048, %v3156
        %v3158 = vpop.f32.mrf.mxu0
        %v3159 = vpop.f32.mrf.mxu0
        %v3160 = vadd.f32 %v3048, %v3159
        %v3161 = vpop.f32.mrf.mxu0
        %3162 = vdwg.mxu0
        %v3163 = vpack.c.bf16 %v2706, %v2705
        %v3164 = vpack.c.bf16 %v2708, %v2707
        %v3165 = vpack.c.bf16 %v2710, %v2709
        %v3166 = vpack.c.bf16 %v2712, %v2711
        %v3167 = vld [vmem:[%s17] sm:$0xf]
        %v3168 = vld [vmem:[%s17 + $0x4] sm:$0xf]
        %v3169 = vld [vmem:[%s17 + $0x8] sm:$0xf]
        %v3170 = vld [vmem:[%s17 + $0xc] sm:$0xf]
        %v3171 = vld [vmem:[%s18] sm:$0x1]
        %v3173 = vlaneseq
        %v3174 = vshrl.u32 %v3173, 7
        %v3175 = vsub.s32 0, %v3174
        %v3176 = vrot.slane %v3171, %v3175
        %v3182 = vunpack.c.l.b16 %v3167
        %v3183 = vunpack.c.l.b16 %v3168
        %v3184 = vunpack.c.l.b16 %v3169
        %v3185 = vunpack.c.l.b16 %v3170
        %v3186 = vpack.c.b16 %v3183, %v3182
        %v3187 = vpack.c.b16 %v3185, %v3184
        %v3191 = vsel %vm683, %v3163, 0
        %v3194 = vsel %vm683, %v3164, 0
        %v3197 = vsel %vm683, %v3165, 0
        %v3200 = vsel %vm683, %v3166, 0
        %3202 = vmatprep.subr.bf16.mxu0 0
        %3203 = vmatpush1.bf16.msra.mxu0 0
        %3204 = vmatprep.subr.bf16.mxu0 0
        %3205 = vmatpush1.bf16.msra.mxu0 0
        %3206 = vmatprep.subr.bf16.mxu0 0
        %3207 = vmatpush1.bf16.msra.mxu0 0
        %3208 = vmatprep.subr.bf16.mxu0 0
        %3209 = vmatpush1.bf16.msra.mxu0 0
        %3210 = vmatprep.subr.bf16.mxu0 0
        %3211 = vmatpush1.bf16.msra.mxu0 0
        %3212 = vmatprep.subr.bf16.mxu0 0
        %3213 = vmatpush1.bf16.msra.mxu0 0
        %3214 = vmatprep.subr.bf16.mxu0 0
        %3215 = vmatpush1.bf16.msra.mxu0 %v3187
        %3216 = vmatprep.subr.bf16.mxu0 0
        %3217 = vmatpush1.bf16.msra.mxu0 %v3186
        %3218 = vmatprep.subr.bf16.mxu0 0
        %3219 = vmatpush2.bf16.msra.mxu0 0
        %3220 = vmatprep.subr.bf16.mxu0 0
        %3221 = vmatpush2.bf16.msra.mxu0 0
        %3222 = vmatprep.subr.bf16.mxu0 0
        %3223 = vmatpush2.bf16.msra.mxu0 0
        %3224 = vmatprep.subr.bf16.mxu0 0
        %3225 = vmatpush2.bf16.msra.mxu0 0
        %3226 = vmatprep.subr.bf16.mxu0 0
        %3227 = vmatpush2.bf16.msra.mxu0 0
        %3228 = vmatprep.subr.bf16.mxu0 0
        %3229 = vmatpush2.bf16.msra.mxu0 0
        %3230 = vmatprep.subr.bf16.mxu0 0
        %3231 = vmatpush2.bf16.msra.mxu0 0
        %3232 = vmatprep.subr.bf16.mxu0 0
        %3233 = vmatpush2.bf16.msra.mxu0 0
        %3234 = vmatprep.mubr.bf16.mxu0 0
        %3235 = vmatmul.mubr.bf16.gmra.mxu0 %v3191
        %v3236 = vpop.f32.mrf.mxu0
        %v3237 = vadd.f32 %v3176, %v3236
        %v3238 = vpop.f32.mrf.mxu0
        %v3239 = vpop.f32.mrf.mxu0
        %v3240 = vadd.f32 %v3176, %v3239
        %v3241 = vpop.f32.mrf.mxu0
        %3242 = vmatprep.mubr.bf16.mxu0 0
        %3243 = vmatmul.mubr.bf16.gmra.mxu0 %v3194
        %v3244 = vpop.f32.mrf.mxu0
        %v3245 = vadd.f32 %v3176, %v3244
        %v3246 = vpop.f32.mrf.mxu0
        %v3247 = vpop.f32.mrf.mxu0
        %v3248 = vadd.f32 %v3176, %v3247
        %v3249 = vpop.f32.mrf.mxu0
        %3250 = vmatprep.mubr.bf16.mxu0 0
        %3251 = vmatmul.mubr.bf16.gmra.mxu0 %v3197
        %v3252 = vpop.f32.mrf.mxu0
        %v3253 = vadd.f32 %v3176, %v3252
        %v3254 = vpop.f32.mrf.mxu0
        %v3255 = vpop.f32.mrf.mxu0
        %v3256 = vadd.f32 %v3176, %v3255
        %v3257 = vpop.f32.mrf.mxu0
        %3258 = vmatprep.mubr.bf16.mxu0 0
        %3259 = vmatmul.mubr.bf16.gmra.mxu0 %v3200
        %v3260 = vpop.f32.mrf.mxu0
        %v3261 = vadd.f32 %v3176, %v3260
        %v3262 = vpop.f32.mrf.mxu0
        %v3263 = vpop.f32.mrf.mxu0
        %v3264 = vadd.f32 %v3176, %v3263
        %v3265 = vpop.f32.mrf.mxu0
        %3266 = vdwg.mxu0
        %v3267 = vadd.f32 %v2705, %v3133
        %v3268 = vadd.f32 %v2706, %v3136
        %v3269 = vadd.f32 %v2707, %v3141
        %v3270 = vadd.f32 %v2708, %v3144
        %v3271 = vadd.f32 %v2709, %v3149
        %v3272 = vadd.f32 %v2710, %v3152
        %v3273 = vadd.f32 %v2711, %v3157
        %v3274 = vadd.f32 %v2712, %v3160
        %v3275 = vadd.f32 %v3267, %v3237
        %v3276 = vadd.f32 %v3268, %v3240
        %v3277 = vadd.f32 %v3269, %v3245
        %v3278 = vadd.f32 %v3270, %v3248
        %v3279 = vadd.f32 %v3271, %v3253
        %v3280 = vadd.f32 %v3272, %v3256
        %v3281 = vadd.f32 %v3273, %v3261
        %v3282 = vadd.f32 %v3274, %v3264
        %3283 = vst.msk [vmem:[%s655] sm:$0xff] %vm683, %v3275
        %3284 = vst.msk [vmem:[%s655 + $0x8] sm:$0xff] %vm683, %v3276
        %3285 = vst.msk [vmem:[%s655 + $0x10] sm:$0xff] %vm683, %v3277
        %3286 = vst.msk [vmem:[%s655 + $0x18] sm:$0xff] %vm683, %v3278
        %3287 = vst.msk [vmem:[%s655 + $0x20] sm:$0xff] %vm683, %v3279
        %3288 = vst.msk [vmem:[%s655 + $0x28] sm:$0xff] %vm683, %v3280
        %3289 = vst.msk [vmem:[%s655 + $0x30] sm:$0xff] %vm683, %v3281
        %3290 = vst.msk [vmem:[%s655 + $0x38] sm:$0xff] %vm683, %v3282
        %p3291 = scmp.lt.s32.totalorder %s33, 1
        %s3292 = scalar_select %p3291, %s33, 1
        %s3293 = smul.addr %s3292, 8
        %s3294 = smul.addr %s3293, 8
        %s3295 = scalar_lea.vmem %s19, %s3294
        // Predicated region
        $region113: #{_lambda_.1} parent=95 // pred_check
          %p3296 = pneg %p455
        $region114: #{_lambda_.1} parent=95 // pred_check_branch
          %3298 = sbr.rel (%p3296) target = $region116
        $region115: #{_lambda_.1} parent=95 // pred_region
          _
        $region116: #{_lambda_.1} parent=95 // pred_fallthru
          _
      $region96: #{_lambda_.1} parent=5 // pred_fallthru
        _
      %p3299 = scmp.le.s32.totalorder 2, %s28
      // Predicated region
      $region117: #{_lambda_.1} parent=5 // pred_check
        %p3300 = pneg %p3299
      $region118: #{_lambda_.1} parent=5 // pred_check_branch
        %3302 = sbr.rel (%p3300) target = $region120
      $region119: #{_lambda_.1} parent=5 // pred_region
        %s3303 = ssub.s32 %s28, 2
        // Predicated region
        $region121: #{_lambda_.1} parent=119 // pred_check
          %p3304 = pneg %p461
        $region122: #{_lambda_.1} parent=119 // pred_check_branch
          %3306 = sbr.rel (%p3304) target = $region124
        $region123: #{_lambda_.1} parent=119 // pred_region
          %p3307 = scmp.lt.s32.totalorder %s34, 1
          %s3308 = scalar_select %p3307, %s34, 1
          %s3309 = smul.addr %s3308, 8
          %s3310 = smul.addr %s3309, 8
          %s3311 = scalar_lea.vmem %s19, %s3310
        $region124: #{_lambda_.1} parent=119 // pred_fallthru
          _
      $region120: #{_lambda_.1} parent=5 // pred_fallthru
        _
    $region6: #{_lambda_.1} parent=1 // loop_footer
      %s32 = sadd.s32 1, %s28
    $region7: #{_lambda_.1} parent=1 // loop_footer_branch
      %27 = sbr.rel target = $region3
    $region8: #{_lambda_.1} parent=1 // loop_exit
      _
    %3312 = vsyncpa [#allocation5], 1
    %s3313 = scalar_lea.sflag [#allocation5], 1
    %3314 = vsyncpa %s3313, 1
    %3315 = vsyncpa [#allocation7], 1
    %3316 = vsyncpa [#allocation10], 1

</llo_original>
